<compile_context>
chip_gen: v7x
topology: tpu7x:2x2x1
jax: 0.10.0
libtpu: 0.0.40
codegen_flags: <defaults>
</compile_context>

<pallas_src>
import functools

import jax
import jax.numpy as jnp
from jax.experimental import pallas as pl
from jax.experimental.pallas import tpu as pltpu

H = 200            # real GRU hidden size
HP = 256           # lane-padded GRU hidden size
FC1_OUT = 100      # real fc1 out_features
FC1P = 128         # lane-padded fc1 out_features
NUM_CLASSES = 2    # fc2 out_features
NCP = 128          # lane-padded fc2 out_features


def _round_up(x, m):
    return ((x + m - 1) // m) * m


# ----------------------------- Linear kernels ------------------------------

def _linear_kernel(x_ref, w_ref, b_ref, o_ref, *, relu):
    y = jnp.dot(x_ref[...], w_ref[...], preferred_element_type=jnp.float32)
    y = y + b_ref[...]
    if relu:
        y = jnp.maximum(y, 0.0)
    o_ref[...] = y


def pallas_linear(x, w, b, relu=False):
    """x:(M,K) @ w:(K,N) + b:(1,N); N must be a multiple of 128."""
    M, K = x.shape
    N = w.shape[1]
    tm = min(256, _round_up(M, 8))
    Mp = _round_up(M, tm)
    if Mp != M:
        x = jnp.pad(x, ((0, Mp - M), (0, 0)))
    out = pl.pallas_call(
        functools.partial(_linear_kernel, relu=relu),
        out_shape=jax.ShapeDtypeStruct((Mp, N), jnp.float32),
        grid=(Mp // tm,),
        in_specs=[
            pl.BlockSpec((tm, K), lambda i: (i, 0)),
            pl.BlockSpec((K, N), lambda i: (0, 0)),
            pl.BlockSpec((1, N), lambda i: (0, 0)),
        ],
        out_specs=pl.BlockSpec((tm, N), lambda i: (i, 0)),
        compiler_params=pltpu.CompilerParams(
            dimension_semantics=("parallel",)),
    )(x, w, b)
    return out[:M] if Mp != M else out


# ------------------------------- GRU kernel --------------------------------
# One GRU *direction* per grid iteration (d = pl.program_id(0); 0=fwd, 1=bwd).
# The layer input x lives in HBM as (S*Tp, Bp, IN): S input streams stacked on
# the time axis (layer 1: S=1 stream of width 128; layer 2: S=2 streams of
# width HP = the fwd/bwd outputs of layer 1).  The sequence output lives in
# HBM as (2*Tp, Bp, HP), direction-major.  Chunks of TC timesteps are streamed
# with double-buffered DMA; the input projection for the chunk is computed
# in-kernel; the recurrence runs step-by-step with state in VMEM scratch.

def _gru_dir_kernel(len_ref, x_hbm, wx_ref, bx_ref, wh_ref, bhn_ref,
                    seq_hbm, last_ref,
                    x_buf, gx_buf, s_buf, h_ref, in_sems, out_sems,
                    *, S, IN, TC, NC, Tp):
    d = pl.program_id(0)                        # 0 = forward, 1 = backward

    lengths = len_ref[...]                      # (Bp, 1) int32
    len_m1 = lengths - 1
    bx = bx_ref[0]                              # (1, 3*HP)
    bhn = bhn_ref[0]                            # (1, HP) (b_hh of the n gate)
    wh = wh_ref[0]                              # (HP, 3*HP)
    Bp = lengths.shape[0]

    def chunk_t0(c):
        # lowest global timestep covered by chunk c of this direction
        return (1 - d) * (c * TC) + d * (Tp - (c + 1) * TC)

    def start_in(c, slot):
        t0 = chunk_t0(c)
        for s in range(S):
            pltpu.make_async_copy(
                x_hbm.at[pl.ds(s * Tp + t0, TC)],
                x_buf.at[slot * S + s],
                in_sems.at[slot * S + s]).start()

    def wait_in(slot):
        for s in range(S):
            pltpu.make_async_copy(
                x_hbm.at[pl.ds(0, TC)],
                x_buf.at[slot * S + s],
                in_sems.at[slot * S + s]).wait()

    def start_out(c, slot):
        t0 = chunk_t0(c)
        pltpu.make_async_copy(
            s_buf.at[pl.ds(slot * TC, TC)],
            seq_hbm.at[pl.ds(d * Tp + t0, TC)],
            out_sems.at[slot]).start()

    def wait_out(slot):
        pltpu.make_async_copy(
            s_buf.at[pl.ds(slot * TC, TC)],
            seq_hbm.at[pl.ds(0, TC)],
            out_sems.at[slot]).wait()

    h_ref[...] = jnp.zeros_like(h_ref)
    last_ref[...] = jnp.zeros_like(last_ref)
    start_in(0, 0)                              # prime slot 0

    def chunk_body(c, carry):
        slot = jax.lax.rem(c, 2)
        t0 = chunk_t0(c)

        wait_in(slot)

        @pl.when(c + 1 < NC)
        def _():
            start_in(c + 1, 1 - slot)

        # Fused hoisted input projection for the whole chunk (one MXU matmul
        # per stream).  b_ih (all gates) + b_hh (r, z) are folded into bx.
        acc = None
        for s in range(S):
            xs = x_buf[slot * S + s].reshape(TC * Bp, IN)
            part = jnp.dot(xs, wx_ref[0, s * IN:(s + 1) * IN, :],
                           preferred_element_type=jnp.float32)
            acc = part if acc is None else acc + part
        gx_buf[...] = (acc + bx).reshape(TC, Bp, 3 * HP)

        # The seq-out DMA that last used this slot (chunk c-2) must finish
        # before we overwrite the buffer.
        @pl.when(c >= 2)
        def _():
            wait_out(slot)

        def step_body(j, _):
            bi = (1 - d) * j + d * (TC - 1 - j)   # chunk-local time index
            t = t0 + bi                           # global timestep
            gx = gx_buf[bi]                       # (Bp, 3*HP)
            h = h_ref[...]
            gh = jnp.dot(h, wh, preferred_element_type=jnp.float32)
            r = jax.nn.sigmoid(gx[:, 0:HP] + gh[:, 0:HP])
            z = jax.nn.sigmoid(gx[:, HP:2 * HP] + gh[:, HP:2 * HP])
            n = jnp.tanh(gx[:, 2 * HP:3 * HP] + r * (gh[:, 2 * HP:3 * HP] + bhn))
            h_new = (1.0 - z) * n + z * h
            valid = t < lengths                   # (Bp, 1) bool
            h = jnp.where(valid, h_new, h)        # freeze state on padding
            h_ref[...] = h
            s_buf[slot * TC + bi] = jnp.where(valid, h, 0.0)
            last_ref[0] = jnp.where(t == len_m1, h, last_ref[0])
            return 0

        jax.lax.fori_loop(0, TC, step_body, 0)

        start_out(c, slot)
        return 0

    jax.lax.fori_loop(0, NC, chunk_body, 0)

    # Drain the outstanding seq-output DMAs (last one or two chunks).
    for cc in range(max(0, NC - 2), NC):
        wait_out(cc % 2)


def gru_layer(x, lengths_col, p, TC):
    STp, Bp, IN = x.shape
    S = p["wx"].shape[1] // IN
    Tp = STp // S
    assert Tp % TC == 0
    NC = Tp // TC
    kernel = functools.partial(_gru_dir_kernel, S=S, IN=IN, TC=TC, NC=NC, Tp=Tp)
    seq, last = pl.pallas_call(
        kernel,
        out_shape=(jax.ShapeDtypeStruct((2 * Tp, Bp, HP), jnp.float32),
                   jax.ShapeDtypeStruct((2, Bp, HP), jnp.float32)),
        grid=(2,),
        in_specs=[
            pl.BlockSpec((Bp, 1), lambda da: (0, 0)),                  # lengths
            pl.BlockSpec(memory_space=pl.ANY),                         # x (HBM)
            pl.BlockSpec((1, S * IN, 3 * HP), lambda da: (da, 0, 0)),  # wx
            pl.BlockSpec((1, 1, 3 * HP), lambda da: (da, 0, 0)),       # bx
            pl.BlockSpec((1, HP, 3 * HP), lambda da: (da, 0, 0)),      # wh
            pl.BlockSpec((1, 1, HP), lambda da: (da, 0, 0)),           # bhn_n
        ],
        out_specs=(
            pl.BlockSpec(memory_space=pl.ANY),                         # seq (HBM)
            pl.BlockSpec((1, Bp, HP), lambda da: (da, 0, 0)),          # last step
        ),
        scratch_shapes=[
            pltpu.VMEM((2 * S, TC, Bp, IN), jnp.float32),   # x chunk dbl-buffer
            pltpu.VMEM((TC, Bp, 3 * HP), jnp.float32),      # gate pre-acts
            pltpu.VMEM((2 * TC, Bp, HP), jnp.float32),      # seq chunk dbl-buffer
            pltpu.VMEM((Bp, HP), jnp.float32),              # hidden state
            pltpu.SemaphoreType.DMA((2 * S,)),              # input DMA sems
            pltpu.SemaphoreType.DMA((2,)),                  # output DMA sems
        ],
        compiler_params=pltpu.CompilerParams(
            dimension_semantics=("parallel",),
            vmem_limit_bytes=32 * 1024 * 1024),
    )(lengths_col, x, p["wx"], p["bx"], p["wh"], p["bhn"])
    return seq, last


# ----------------------------- Parameter init ------------------------------
# Weights are generated at the true PyTorch shapes (U(-1/sqrt(fan), ...)) and
# zero-embedded into lane-padded buffers.  Gate order is (r, z, n).

def init_params(key, dim_input):
    ki = iter(jax.random.split(key, 64))

    def u(shape, fan):
        bound = 1.0 / (fan ** 0.5)
        return jax.random.uniform(next(ki), shape, jnp.float32, -bound, bound)

    # fc1 (stored transposed: (in, out)), padded 100 -> 128
    w1r = u((dim_input, FC1_OUT), dim_input)
    b1r = u((FC1_OUT,), dim_input)
    w1 = jnp.zeros((dim_input, FC1P), jnp.float32).at[:, :FC1_OUT].set(w1r)
    b1 = jnp.zeros((1, FC1P), jnp.float32).at[0, :FC1_OUT].set(b1r)

    gru = []
    for layer in range(2):
        in_real = FC1_OUT if layer == 0 else 2 * H
        in_pad = FC1P if layer == 0 else 2 * HP
        wx_dirs, bx_dirs, wh_dirs, bhn_dirs = [], [], [], []
        for _d in range(2):
            wx_r = u((3, in_real, H), H)   # weight_ih^T per gate (r,z,n)
            wh_r = u((3, H, H), H)         # weight_hh^T per gate
            bx_r = u((3, H), H)            # bias_ih per gate
            bh_r = u((3, H), H)            # bias_hh per gate

            wx_p = jnp.zeros((in_pad, 3 * HP), jnp.float32)
            wh_p = jnp.zeros((HP, 3 * HP), jnp.float32)
            bx_p = jnp.zeros((1, 3 * HP), jnp.float32)
            for g in range(3):
                wg = wx_r[g]                                   # (in_real, H)
                if layer == 0:
                    wx_p = wx_p.at[:FC1_OUT, g * HP:g * HP + H].set(wg)
                else:
                    # stream 0 rows [0:HP) <- fwd half, stream 1 rows [HP:2HP)
                    wx_p = wx_p.at[:H, g * HP:g * HP + H].set(wg[:H])
                    wx_p = wx_p.at[HP:HP + H, g * HP:g * HP + H].set(wg[H:])
                wh_p = wh_p.at[:H, g * HP:g * HP + H].set(wh_r[g])
                # fold b_ih (all gates) + b_hh (r, z) into the projection bias
                bias = bx_r[g] + (bh_r[g] if g < 2 else 0.0)
                bx_p = bx_p.at[0, g * HP:g * HP + H].set(bias)
            bhn_p = jnp.zeros((1, HP), jnp.float32).at[0, :H].set(bh_r[2])

            wx_dirs.append(wx_p)
            bx_dirs.append(bx_p)
            wh_dirs.append(wh_p)
            bhn_dirs.append(bhn_p)

        gru.append(dict(
            wx=jnp.stack(wx_dirs, axis=0),      # (2, in_pad, 3*HP)
            bx=jnp.stack(bx_dirs, axis=0),      # (2, 1, 3*HP)
            wh=jnp.stack(wh_dirs, axis=0),      # (2, HP, 3*HP)
            bhn=jnp.stack(bhn_dirs, axis=0),    # (2, 1, HP)
        ))

    # fc2: real input rows are [0:H) (fwd) and [HP:HP+H) (bwd); N padded to 128
    w2r = u((2 * H, NUM_CLASSES), 2 * H)
    b2r = u((NUM_CLASSES,), 2 * H)
    w2 = jnp.zeros((2 * HP, NCP), jnp.float32)
    w2 = w2.at[:H, :NUM_CLASSES].set(w2r[:H])
    w2 = w2.at[HP:HP + H, :NUM_CLASSES].set(w2r[H:])
    b2 = jnp.zeros((1, NCP), jnp.float32).at[0, :NUM_CLASSES].set(b2r)

    return dict(w1=w1, b1=b1, gru=gru, w2=w2, b2=b2)


# -------------------------------- Forward ----------------------------------

def _choose_chunk(T, Bp):
    # Streaming VMEM bytes per timestep (worst case: layer 2, S=2, IN=HP):
    # x double buffer (2*S*IN) + gate buffer & matmul temp (2*3*HP) + seq
    # double buffer (2*HP), all f32.
    per_t = 4 * Bp * (2 * 2 * HP + 6 * HP + 2 * HP)
    budget = 10 * 1024 * 1024
    return int(max(1, min(T, budget // per_t, 64)))


def rnn_forward(params, seqs, lengths):
    """seqs: (B, T, D) f32; lengths: (B,) ints with 1 <= len <= T (descending,
    as required by pack_padded_sequence(enforce_sorted=True))."""
    B, T, D = seqs.shape
    Bp = _round_up(B, 8)                 # sublane-pad the batch
    TC = _choose_chunk(T, Bp)
    NC = pl.cdiv(T, TC)
    Tp = NC * TC                         # chunk-pad the time axis

    seqs_p = jnp.pad(seqs, ((0, Bp - B), (0, Tp - T), (0, 0)))
    lengths_col = jnp.pad(lengths.astype(jnp.int32), (0, Bp - B)).reshape(Bp, 1)

    # fc1 + ReLU computed time-major (transpose the narrow raw input instead
    # of the wide fc1 output).
    # TODO(synk): nn.Dropout(0.25) / GRU inter-layer dropout are stochastic in
    # training mode; this implements inference (identity) semantics.
    x_tm = seqs_p.transpose(1, 0, 2)                              # (Tp, Bp, D)
    h1 = pallas_linear(x_tm.reshape(Tp * Bp, D), params["w1"], params["b1"],
                       relu=True)                                 # (Tp*Bp, 128)
    x0 = h1.reshape(Tp, Bp, FC1P)                                 # S=1 stream

    seq1, _ = gru_layer(x0, lengths_col, params["gru"][0], TC)    # (2*Tp,Bp,HP)
    _, last = gru_layer(seq1, lengths_col, params["gru"][1], TC)  # (2,Bp,HP)

    # fused "output at t = len-1" gather: fwd lanes then bwd lanes
    last_cat = jnp.concatenate([last[0], last[1]], axis=-1)       # (Bp, 2*HP)
    logits = pallas_linear(last_cat, params["w2"], params["b2"], relu=False)
    return logits[:B, :NUM_CLASSES]


if __name__ == "__main__":
    key = jax.random.PRNGKey(0)
    kp, kx = jax.random.split(key)

    dim_input = 16
    B, T = 2, 8
    params = init_params(kp, dim_input)
    seqs = jax.random.normal(kx, (B, T, dim_input), jnp.float32)
    # pack_padded_sequence(enforce_sorted=True) expects descending lengths >= 1
    lengths = jnp.array([8, 5], dtype=jnp.int32)

    out = jax.jit(rnn_forward)(params, seqs, lengths)
    out = jax.block_until_ready(out)
    assert out.shape == (B, NUM_CLASSES)
    print("KERNEL_OK")
</pallas_src>

<mosaic_0001>
module attributes {stable_mosaic.version = 11 : i64} {
  func.func @_linear_kernel(%arg0: i32, %arg1: memref<64x16xf32, #tpu.memory_space<vmem>>, %arg2: memref<16x128xf32, #tpu.memory_space<vmem>>, %arg3: memref<1x128xf32, #tpu.memory_space<vmem>>, %arg4: memref<64x128xf32, #tpu.memory_space<vmem>>) attributes {dimension_semantics = [#tpu.dimension_semantics<parallel>], iteration_bounds = array<i64: 1>, scalar_prefetch = 0 : i64, scratch_operands = 0 : i64, tpu.core_type = #tpu.core_type<tc>, window_params = [{transform_indices = @transform_0, window_bounds = array<i64: 64, 16>}, {pipeline_mode = #tpu.pipeline_mode<synchronous>, transform_indices = @transform_1, window_bounds = array<i64: 16, 128>}, {pipeline_mode = #tpu.pipeline_mode<synchronous>, transform_indices = @transform_2, window_bounds = array<i64: 1, 128>}, {transform_indices = @transform_3, window_bounds = array<i64: 64, 128>}]} {
    %c0 = arith.constant 0 : index
    %c0_0 = arith.constant 0 : index
    %0 = vector.load %arg1[%c0, %c0_0] : memref<64x16xf32, #tpu.memory_space<vmem>>, vector<64x16xf32>
    %c0_1 = arith.constant 0 : index
    %c0_2 = arith.constant 0 : index
    %1 = vector.load %arg2[%c0_1, %c0_2] : memref<16x128xf32, #tpu.memory_space<vmem>>, vector<16x128xf32>
    %cst = arith.constant dense<0.000000e+00> : vector<64x128xf32>
    %2 = tpu.matmul %0, %1, %cst {dimension_numbers = #tpu.dot_dimension_numbers<[1], [0], [0], [1], [0, 0, 1, 1], [], []>} : vector<64x16xf32>, vector<16x128xf32>, vector<64x128xf32> -> vector<64x128xf32>
    %c0_3 = arith.constant 0 : index
    %c0_4 = arith.constant 0 : index
    %3 = vector.load %arg3[%c0_3, %c0_4] : memref<1x128xf32, #tpu.memory_space<vmem>>, vector<1x128xf32>
    %4 = vector.broadcast %3 : vector<1x128xf32> to vector<64x128xf32>
    %5 = arith.addf %2, %4 : vector<64x128xf32>
    %cst_5 = arith.constant 0.000000e+00 : f32
    %6 = vector.broadcast %cst_5 : f32 to vector<64x128xf32>
    %7 = arith.maximumf %5, %6 : vector<64x128xf32>
    %c0_6 = arith.constant 0 : index
    %c0_7 = arith.constant 0 : index
    %8 = vector.load %arg4[%c0_6, %c0_7] : memref<64x128xf32, #tpu.memory_space<vmem>>, vector<64x128xf32>
    tpu.vector_store %arg4[%c0_6, %c0_7], %7 {strides = array<i32>} : memref<64x128xf32, #tpu.memory_space<vmem>>, vector<64x128xf32>,
    return
  }
  func.func @transform_0(%arg0: i32) -> (i32, i32) {
    %c0_i32 = arith.constant 0 : i32
    %c0_i32_0 = arith.constant 0 : i32
    return %arg0, %c0_i32 : i32, i32
  }
  func.func @transform_1(%arg0: i32) -> (i32, i32) {
    %c0_i32 = arith.constant 0 : i32
    %c0_i32_0 = arith.constant 0 : i32
    %c0_i32_1 = arith.constant 0 : i32
    return %c0_i32, %c0_i32_0 : i32, i32
  }
  func.func @transform_2(%arg0: i32) -> (i32, i32) {
    %c0_i32 = arith.constant 0 : i32
    %c0_i32_0 = arith.constant 0 : i32
    %c0_i32_1 = arith.constant 0 : i32
    return %c0_i32, %c0_i32_0 : i32, i32
  }
  func.func @transform_3(%arg0: i32) -> (i32, i32) {
    %c0_i32 = arith.constant 0 : i32
    %c0_i32_0 = arith.constant 0 : i32
    return %arg0, %c0_i32 : i32, i32
  }
}

module attributes {stable_mosaic.version = 11 : i64} {
  func.func @_linear_kernel(%arg0: i32, %arg1: memref<8x512xf32, #tpu.memory_space<vmem>>, %arg2: memref<512x128xf32, #tpu.memory_space<vmem>>, %arg3: memref<1x128xf32, #tpu.memory_space<vmem>>, %arg4: memref<8x128xf32, #tpu.memory_space<vmem>>) attributes {dimension_semantics = [#tpu.dimension_semantics<parallel>], iteration_bounds = array<i64: 1>, scalar_prefetch = 0 : i64, scratch_operands = 0 : i64, tpu.core_type = #tpu.core_type<tc>, window_params = [{transform_indices = @transform_0, window_bounds = array<i64: 8, 512>}, {pipeline_mode = #tpu.pipeline_mode<synchronous>, transform_indices = @transform_1, window_bounds = array<i64: 512, 128>}, {pipeline_mode = #tpu.pipeline_mode<synchronous>, transform_indices = @transform_2, window_bounds = array<i64: 1, 128>}, {transform_indices = @transform_3, window_bounds = array<i64: 8, 128>}]} {
    %c0 = arith.constant 0 : index
    %c0_0 = arith.constant 0 : index
    %0 = vector.load %arg1[%c0, %c0_0] : memref<8x512xf32, #tpu.memory_space<vmem>>, vector<8x512xf32>
    %c0_1 = arith.constant 0 : index
    %c0_2 = arith.constant 0 : index
    %1 = vector.load %arg2[%c0_1, %c0_2] : memref<512x128xf32, #tpu.memory_space<vmem>>, vector<512x128xf32>
    %cst = arith.constant dense<0.000000e+00> : vector<8x128xf32>
    %2 = tpu.matmul %0, %1, %cst {dimension_numbers = #tpu.dot_dimension_numbers<[1], [0], [0], [1], [0, 0, 1, 1], [], []>} : vector<8x512xf32>, vector<512x128xf32>, vector<8x128xf32> -> vector<8x128xf32>
    %c0_3 = arith.constant 0 : index
    %c0_4 = arith.constant 0 : index
    %3 = vector.load %arg3[%c0_3, %c0_4] : memref<1x128xf32, #tpu.memory_space<vmem>>, vector<1x128xf32>
    %4 = vector.broadcast %3 : vector<1x128xf32> to vector<8x128xf32>
    %5 = arith.addf %2, %4 : vector<8x128xf32>
    %c0_5 = arith.constant 0 : index
    %c0_6 = arith.constant 0 : index
    %6 = vector.load %arg4[%c0_5, %c0_6] : memref<8x128xf32, #tpu.memory_space<vmem>>, vector<8x128xf32>
    tpu.vector_store %arg4[%c0_5, %c0_6], %5 {strides = array<i32>} : memref<8x128xf32, #tpu.memory_space<vmem>>, vector<8x128xf32>,
    return
  }
  func.func @transform_0(%arg0: i32) -> (i32, i32) {
    %c0_i32 = arith.constant 0 : i32
    %c0_i32_0 = arith.constant 0 : i32
    return %arg0, %c0_i32 : i32, i32
  }
  func.func @transform_1(%arg0: i32) -> (i32, i32) {
    %c0_i32 = arith.constant 0 : i32
    %c0_i32_0 = arith.constant 0 : i32
    %c0_i32_1 = arith.constant 0 : i32
    return %c0_i32, %c0_i32_0 : i32, i32
  }
  func.func @transform_2(%arg0: i32) -> (i32, i32) {
    %c0_i32 = arith.constant 0 : i32
    %c0_i32_0 = arith.constant 0 : i32
    %c0_i32_1 = arith.constant 0 : i32
    return %c0_i32, %c0_i32_0 : i32, i32
  }
  func.func @transform_3(%arg0: i32) -> (i32, i32) {
    %c0_i32 = arith.constant 0 : i32
    %c0_i32_0 = arith.constant 0 : i32
    return %arg0, %c0_i32 : i32, i32
  }
}

module attributes {stable_mosaic.version = 11 : i64} {
  func.func @_gru_dir_kernel(%arg0: i32, %arg1: memref<8x1xi32, #tpu.memory_space<vmem>>, %arg2: memref<16x8x256xf32, #tpu.memory_space<any>>, %arg3: memref<1x512x768xf32, #tpu.memory_space<vmem>>, %arg4: memref<1x1x768xf32, #tpu.memory_space<vmem>>, %arg5: memref<1x256x768xf32, #tpu.memory_space<vmem>>, %arg6: memref<1x1x256xf32, #tpu.memory_space<vmem>>, %arg7: memref<16x8x256xf32, #tpu.memory_space<any>>, %arg8: memref<1x8x256xf32, #tpu.memory_space<vmem>>, %arg9: memref<4x8x8x256xf32, #tpu.memory_space<vmem>>, %arg10: memref<8x8x768xf32, #tpu.memory_space<vmem>>, %arg11: memref<16x8x256xf32, #tpu.memory_space<vmem>>, %arg12: memref<8x256xf32, #tpu.memory_space<vmem>>, %arg13: memref<4x!tpu.dma_semaphore, #tpu.memory_space<semaphore_mem>>, %arg14: memref<2x!tpu.dma_semaphore, #tpu.memory_space<semaphore_mem>>) attributes {dimension_semantics = [#tpu.dimension_semantics<parallel>], iteration_bounds = array<i64: 2>, scalar_prefetch = 0 : i64, scratch_operands = 6 : i64, tpu.core_type = #tpu.core_type<tc>, window_params = [{pipeline_mode = #tpu.pipeline_mode<synchronous>, transform_indices = @transform_0, window_bounds = array<i64: 8, 1>}, {}, {transform_indices = @transform_2, window_bounds = array<i64: 1, 512, 768>}, {transform_indices = @transform_3, window_bounds = array<i64: 1, 1, 768>}, {transform_indices = @transform_4, window_bounds = array<i64: 1, 256, 768>}, {transform_indices = @transform_5, window_bounds = array<i64: 1, 1, 256>}, {}, {transform_indices = @transform_7, window_bounds = array<i64: 1, 8, 256>}]} {
    %c0 = arith.constant 0 : index
    %c0_0 = arith.constant 0 : index
    %0 = vector.load %arg1[%c0, %c0_0] : memref<8x1xi32, #tpu.memory_space<vmem>>, vector<8x1xi32>
    %c1_i32 = arith.constant 1 : i32
    %1 = vector.broadcast %c1_i32 : i32 to vector<8x1xi32>
    %2 = arith.subi %0, %1 : vector<8x1xi32>
    %c0_1 = arith.constant 0 : index
    %c0_2 = arith.constant 0 : index
    %c0_3 = arith.constant 0 : index
    %3 = vector.load %arg4[%c0_1, %c0_2, %c0_3] : memref<1x1x768xf32, #tpu.memory_space<vmem>>, vector<1x1x768xf32>
    %4 = vector.shape_cast %3 : vector<1x1x768xf32> to vector<1x768xf32>
    %c0_4 = arith.constant 0 : index
    %c0_5 = arith.constant 0 : index
    %c0_6 = arith.constant 0 : index
    %5 = vector.load %arg6[%c0_4, %c0_5, %c0_6] : memref<1x1x256xf32, #tpu.memory_space<vmem>>, vector<1x1x256xf32>
    %6 = vector.shape_cast %5 : vector<1x1x256xf32> to vector<1x256xf32>
    %c0_7 = arith.constant 0 : index
    %c0_8 = arith.constant 0 : index
    %c0_9 = arith.constant 0 : index
    %7 = vector.load %arg5[%c0_7, %c0_8, %c0_9] : memref<1x256x768xf32, #tpu.memory_space<vmem>>, vector<1x256x768xf32>
    %8 = vector.shape_cast %7 : vector<1x256x768xf32> to vector<256x768xf32>
    %cst = arith.constant 0.000000e+00 : f32
    %9 = vector.broadcast %cst : f32 to vector<8x256xf32>
    %c0_10 = arith.constant 0 : index
    %c0_11 = arith.constant 0 : index
    %10 = vector.load %arg12[%c0_10, %c0_11] : memref<8x256xf32, #tpu.memory_space<vmem>>, vector<8x256xf32>
    tpu.vector_store %arg12[%c0_10, %c0_11], %9 {strides = array<i32>} : memref<8x256xf32, #tpu.memory_space<vmem>>, vector<8x256xf32>,
    %cst_12 = arith.constant 0.000000e+00 : f32
    %11 = vector.broadcast %cst_12 : f32 to vector<1x8x256xf32>
    %c0_13 = arith.constant 0 : index
    %c0_14 = arith.constant 0 : index
    %c0_15 = arith.constant 0 : index
    %12 = vector.load %arg8[%c0_13, %c0_14, %c0_15] : memref<1x8x256xf32, #tpu.memory_space<vmem>>, vector<1x8x256xf32>
    tpu.vector_store %arg8[%c0_13, %c0_14, %c0_15], %11 {strides = array<i32>} : memref<1x8x256xf32, #tpu.memory_space<vmem>>, vector<1x8x256xf32>,
    %c1_i32_16 = arith.constant 1 : i32
    %13 = arith.subi %c1_i32_16, %arg0 : i32
    %c0_i32 = arith.constant 0 : i32
    %14 = arith.muli %13, %c0_i32 : i32
    %c0_i32_17 = arith.constant 0 : i32
    %15 = arith.muli %arg0, %c0_i32_17 : i32
    %16 = arith.addi %14, %15 : i32
    %c0_i32_18 = arith.constant 0 : i32
    %17 = arith.addi %c0_i32_18, %16 : i32
    %c0_i32_19 = arith.constant 0 : i32
    %c0_i32_20 = arith.constant 0 : i32
    %c0_i32_21 = arith.constant 0 : i32
    %c0_i32_22 = arith.constant 0 : i32
    %18 = tpu.memref_slice %arg2[%17, %c0_i32_21, %c0_i32_22] : memref<16x8x256xf32, #tpu.memory_space<any>> -> memref<8x8x256xf32, #tpu.memory_space<any>>
    %c0_i32_23 = arith.constant 0 : i32
    %c0_i32_24 = arith.constant 0 : i32
    %c0_i32_25 = arith.constant 0 : i32
    %19 = tpu.memref_slice %arg9[%c0_i32_19, %c0_i32_23, %c0_i32_24, %c0_i32_25] : memref<4x8x8x256xf32, #tpu.memory_space<vmem>> -> memref<1x8x8x256xf32, #tpu.memory_space<vmem>>
    %20 = tpu.memref_squeeze %19 : memref<1x8x8x256xf32, #tpu.memory_space<vmem>> -> memref<8x8x256xf32, #tpu.memory_space<vmem>>
    %21 = tpu.memref_slice %arg13[%c0_i32_20] : memref<4x!tpu.dma_semaphore, #tpu.memory_space<semaphore_mem>> -> memref<1x!tpu.dma_semaphore, #tpu.memory_space<semaphore_mem>>
    %22 = tpu.memref_squeeze %21 : memref<1x!tpu.dma_semaphore, #tpu.memory_space<semaphore_mem>> -> memref<!tpu.dma_semaphore, #tpu.memory_space<semaphore_mem>>
    tpu.enqueue_dma source(%18 : memref<8x8x256xf32, #tpu.memory_space<any>>) target(%20 : memref<8x8x256xf32, #tpu.memory_space<vmem>>) target_semaphore(%22 : memref<!tpu.dma_semaphore, #tpu.memory_space<semaphore_mem>>)
    %c8_i32 = arith.constant 8 : i32
    %23 = arith.addi %c8_i32, %16 : i32
    %c1_i32_26 = arith.constant 1 : i32
    %c1_i32_27 = arith.constant 1 : i32
    %c0_i32_28 = arith.constant 0 : i32
    %c0_i32_29 = arith.constant 0 : i32
    %24 = tpu.memref_slice %arg2[%23, %c0_i32_28, %c0_i32_29] : memref<16x8x256xf32, #tpu.memory_space<any>> -> memref<8x8x256xf32, #tpu.memory_space<any>>
    %c0_i32_30 = arith.constant 0 : i32
    %c0_i32_31 = arith.constant 0 : i32
    %c0_i32_32 = arith.constant 0 : i32
    %25 = tpu.memref_slice %arg9[%c1_i32_26, %c0_i32_30, %c0_i32_31, %c0_i32_32] : memref<4x8x8x256xf32, #tpu.memory_space<vmem>> -> memref<1x8x8x256xf32, #tpu.memory_space<vmem>>
    %26 = tpu.memref_squeeze %25 : memref<1x8x8x256xf32, #tpu.memory_space<vmem>> -> memref<8x8x256xf32, #tpu.memory_space<vmem>>
    %27 = tpu.memref_slice %arg13[%c1_i32_27] : memref<4x!tpu.dma_semaphore, #tpu.memory_space<semaphore_mem>> -> memref<1x!tpu.dma_semaphore, #tpu.memory_space<semaphore_mem>>
    %28 = tpu.memref_squeeze %27 : memref<1x!tpu.dma_semaphore, #tpu.memory_space<semaphore_mem>> -> memref<!tpu.dma_semaphore, #tpu.memory_space<semaphore_mem>>
    tpu.enqueue_dma source(%24 : memref<8x8x256xf32, #tpu.memory_space<any>>) target(%26 : memref<8x8x256xf32, #tpu.memory_space<vmem>>) target_semaphore(%28 : memref<!tpu.dma_semaphore, #tpu.memory_space<semaphore_mem>>)
    %c0_i32_33 = arith.constant 0 : i32
    %c2_i32 = arith.constant 2 : i32
    %29 = arith.remsi %c0_i32_33, %c2_i32 : i32
    %c1_i32_34 = arith.constant 1 : i32
    %30 = arith.subi %c1_i32_34, %arg0 : i32
    %c8_i32_35 = arith.constant 8 : i32
    %31 = arith.muli %c0_i32_33, %c8_i32_35 : i32
    %32 = arith.muli %30, %31 : i32
    %c1_i32_36 = arith.constant 1 : i32
    %33 = arith.addi %c0_i32_33, %c1_i32_36 : i32
    %c8_i32_37 = arith.constant 8 : i32
    %34 = arith.muli %33, %c8_i32_37 : i32
    %c8_i32_38 = arith.constant 8 : i32
    %35 = arith.subi %c8_i32_38, %34 : i32
    %36 = arith.muli %arg0, %35 : i32
    %37 = arith.addi %32, %36 : i32
    %c2_i32_39 = arith.constant 2 : i32
    %38 = arith.muli %29, %c2_i32_39 : i32
    %c0_i32_40 = arith.constant 0 : i32
    %39 = arith.addi %38, %c0_i32_40 : i32
    %c2_i32_41 = arith.constant 2 : i32
    %40 = arith.muli %29, %c2_i32_41 : i32
    %c0_i32_42 = arith.constant 0 : i32
    %41 = arith.addi %40, %c0_i32_42 : i32
    %c0_i32_43 = arith.constant 0 : i32
    %c0_i32_44 = arith.constant 0 : i32
    %c0_i32_45 = arith.constant 0 : i32
    %42 = tpu.memref_slice %arg2[%c0_i32_43, %c0_i32_44, %c0_i32_45] : memref<16x8x256xf32, #tpu.memory_space<any>> -> memref<8x8x256xf32, #tpu.memory_space<any>>
    %c0_i32_46 = arith.constant 0 : i32
    %c0_i32_47 = arith.constant 0 : i32
    %c0_i32_48 = arith.constant 0 : i32
    %43 = tpu.memref_slice %arg9[%39, %c0_i32_46, %c0_i32_47, %c0_i32_48] : memref<4x8x8x256xf32, #tpu.memory_space<vmem>> -> memref<1x8x8x256xf32, #tpu.memory_space<vmem>>
    %44 = tpu.memref_squeeze %43 : memref<1x8x8x256xf32, #tpu.memory_space<vmem>> -> memref<8x8x256xf32, #tpu.memory_space<vmem>>
    %45 = tpu.memref_slice %arg13[%41] : memref<4x!tpu.dma_semaphore, #tpu.memory_space<semaphore_mem>> -> memref<1x!tpu.dma_semaphore, #tpu.memory_space<semaphore_mem>>
    %46 = tpu.memref_squeeze %45 : memref<1x!tpu.dma_semaphore, #tpu.memory_space<semaphore_mem>> -> memref<!tpu.dma_semaphore, #tpu.memory_space<semaphore_mem>>
    tpu.wait_dma2 semaphore(%46 : memref<!tpu.dma_semaphore, #tpu.memory_space<semaphore_mem>>) src(%42 : memref<8x8x256xf32, #tpu.memory_space<any>>) dst(%44 : memref<8x8x256xf32, #tpu.memory_space<vmem>>)
    %c2_i32_49 = arith.constant 2 : i32
    %47 = arith.muli %29, %c2_i32_49 : i32
    %c1_i32_50 = arith.constant 1 : i32
    %48 = arith.addi %47, %c1_i32_50 : i32
    %c2_i32_51 = arith.constant 2 : i32
    %49 = arith.muli %29, %c2_i32_51 : i32
    %c1_i32_52 = arith.constant 1 : i32
    %50 = arith.addi %49, %c1_i32_52 : i32
    %c0_i32_53 = arith.constant 0 : i32
    %c0_i32_54 = arith.constant 0 : i32
    %c0_i32_55 = arith.constant 0 : i32
    %51 = tpu.memref_slice %arg2[%c0_i32_53, %c0_i32_54, %c0_i32_55] : memref<16x8x256xf32, #tpu.memory_space<any>> -> memref<8x8x256xf32, #tpu.memory_space<any>>
    %c0_i32_56 = arith.constant 0 : i32
    %c0_i32_57 = arith.constant 0 : i32
    %c0_i32_58 = arith.constant 0 : i32
    %52 = tpu.memref_slice %arg9[%48, %c0_i32_56, %c0_i32_57, %c0_i32_58] : memref<4x8x8x256xf32, #tpu.memory_space<vmem>> -> memref<1x8x8x256xf32, #tpu.memory_space<vmem>>
    %53 = tpu.memref_squeeze %52 : memref<1x8x8x256xf32, #tpu.memory_space<vmem>> -> memref<8x8x256xf32, #tpu.memory_space<vmem>>
    %54 = tpu.memref_slice %arg13[%50] : memref<4x!tpu.dma_semaphore, #tpu.memory_space<semaphore_mem>> -> memref<1x!tpu.dma_semaphore, #tpu.memory_space<semaphore_mem>>
    %55 = tpu.memref_squeeze %54 : memref<1x!tpu.dma_semaphore, #tpu.memory_space<semaphore_mem>> -> memref<!tpu.dma_semaphore, #tpu.memory_space<semaphore_mem>>
    tpu.wait_dma2 semaphore(%55 : memref<!tpu.dma_semaphore, #tpu.memory_space<semaphore_mem>>) src(%51 : memref<8x8x256xf32, #tpu.memory_space<any>>) dst(%53 : memref<8x8x256xf32, #tpu.memory_space<vmem>>)
    %c1_i32_59 = arith.constant 1 : i32
    %56 = arith.addi %c0_i32_33, %c1_i32_59 : i32
    %c1_i32_60 = arith.constant 1 : i32
    %57 = arith.cmpi slt, %56, %c1_i32_60 : i32
    %58 = arith.extui %57 : i1 to i32
    %c0_i32_61 = arith.constant 0 : i32
    %59 = arith.cmpi ne, %58, %c0_i32_61 : i32
    scf.if %59 {
      %c1_i32_107 = arith.constant 1 : i32
      %106 = arith.addi %c0_i32_33, %c1_i32_107 : i32
      %c1_i32_108 = arith.constant 1 : i32
      %107 = arith.subi %c1_i32_108, %29 : i32
      %c1_i32_109 = arith.constant 1 : i32
      %108 = arith.subi %c1_i32_109, %arg0 : i32
      %c8_i32_110 = arith.constant 8 : i32
      %109 = arith.muli %106, %c8_i32_110 : i32
      %110 = arith.muli %108, %109 : i32
      %c1_i32_111 = arith.constant 1 : i32
      %111 = arith.addi %106, %c1_i32_111 : i32
      %c8_i32_112 = arith.constant 8 : i32
      %112 = arith.muli %111, %c8_i32_112 : i32
      %c8_i32_113 = arith.constant 8 : i32
      %113 = arith.subi %c8_i32_113, %112 : i32
      %114 = arith.muli %arg0, %113 : i32
      %115 = arith.addi %110, %114 : i32
      %c0_i32_114 = arith.constant 0 : i32
      %116 = arith.addi %c0_i32_114, %115 : i32
      %c2_i32_115 = arith.constant 2 : i32
      %117 = arith.muli %107, %c2_i32_115 : i32
      %c0_i32_116 = arith.constant 0 : i32
      %118 = arith.addi %117, %c0_i32_116 : i32
      %c2_i32_117 = arith.constant 2 : i32
      %119 = arith.muli %107, %c2_i32_117 : i32
      %c0_i32_118 = arith.constant 0 : i32
      %120 = arith.addi %119, %c0_i32_118 : i32
      %c0_i32_119 = arith.constant 0 : i32
      %c0_i32_120 = arith.constant 0 : i32
      %121 = tpu.memref_slice %arg2[%116, %c0_i32_119, %c0_i32_120] : memref<16x8x256xf32, #tpu.memory_space<any>> -> memref<8x8x256xf32, #tpu.memory_space<any>>
      %c0_i32_121 = arith.constant 0 : i32
      %c0_i32_122 = arith.constant 0 : i32
      %c0_i32_123 = arith.constant 0 : i32
      %122 = tpu.memref_slice %arg9[%118, %c0_i32_121, %c0_i32_122, %c0_i32_123] : memref<4x8x8x256xf32, #tpu.memory_space<vmem>> -> memref<1x8x8x256xf32, #tpu.memory_space<vmem>>
      %123 = tpu.memref_squeeze %122 : memref<1x8x8x256xf32, #tpu.memory_space<vmem>> -> memref<8x8x256xf32, #tpu.memory_space<vmem>>
      %124 = tpu.memref_slice %arg13[%120] : memref<4x!tpu.dma_semaphore, #tpu.memory_space<semaphore_mem>> -> memref<1x!tpu.dma_semaphore, #tpu.memory_space<semaphore_mem>>
      %125 = tpu.memref_squeeze %124 : memref<1x!tpu.dma_semaphore, #tpu.memory_space<semaphore_mem>> -> memref<!tpu.dma_semaphore, #tpu.memory_space<semaphore_mem>>
      tpu.enqueue_dma source(%121 : memref<8x8x256xf32, #tpu.memory_space<any>>) target(%123 : memref<8x8x256xf32, #tpu.memory_space<vmem>>) target_semaphore(%125 : memref<!tpu.dma_semaphore, #tpu.memory_space<semaphore_mem>>)
      %c8_i32_124 = arith.constant 8 : i32
      %126 = arith.addi %c8_i32_124, %115 : i32
      %c2_i32_125 = arith.constant 2 : i32
      %127 = arith.muli %107, %c2_i32_125 : i32
      %c1_i32_126 = arith.constant 1 : i32
      %128 = arith.addi %127, %c1_i32_126 : i32
      %c2_i32_127 = arith.constant 2 : i32
      %129 = arith.muli %107, %c2_i32_127 : i32
      %c1_i32_128 = arith.constant 1 : i32
      %130 = arith.addi %129, %c1_i32_128 : i32
      %c0_i32_129 = arith.constant 0 : i32
      %c0_i32_130 = arith.constant 0 : i32
      %131 = tpu.memref_slice %arg2[%126, %c0_i32_129, %c0_i32_130] : memref<16x8x256xf32, #tpu.memory_space<any>> -> memref<8x8x256xf32, #tpu.memory_space<any>>
      %c0_i32_131 = arith.constant 0 : i32
      %c0_i32_132 = arith.constant 0 : i32
      %c0_i32_133 = arith.constant 0 : i32
      %132 = tpu.memref_slice %arg9[%128, %c0_i32_131, %c0_i32_132, %c0_i32_133] : memref<4x8x8x256xf32, #tpu.memory_space<vmem>> -> memref<1x8x8x256xf32, #tpu.memory_space<vmem>>
      %133 = tpu.memref_squeeze %132 : memref<1x8x8x256xf32, #tpu.memory_space<vmem>> -> memref<8x8x256xf32, #tpu.memory_space<vmem>>
      %134 = tpu.memref_slice %arg13[%130] : memref<4x!tpu.dma_semaphore, #tpu.memory_space<semaphore_mem>> -> memref<1x!tpu.dma_semaphore, #tpu.memory_space<semaphore_mem>>
      %135 = tpu.memref_squeeze %134 : memref<1x!tpu.dma_semaphore, #tpu.memory_space<semaphore_mem>> -> memref<!tpu.dma_semaphore, #tpu.memory_space<semaphore_mem>>
      tpu.enqueue_dma source(%131 : memref<8x8x256xf32, #tpu.memory_space<any>>) target(%133 : memref<8x8x256xf32, #tpu.memory_space<vmem>>) target_semaphore(%135 : memref<!tpu.dma_semaphore, #tpu.memory_space<semaphore_mem>>)
    } else {
    }
    %c2_i32_62 = arith.constant 2 : i32
    %60 = arith.muli %29, %c2_i32_62 : i32
    %c0_i32_63 = arith.constant 0 : i32
    %61 = arith.addi %60, %c0_i32_63 : i32
    %62 = arith.index_cast %61 : i32 to index
    %c0_64 = arith.constant 0 : index
    %c0_65 = arith.constant 0 : index
    %c0_66 = arith.constant 0 : index
    %63 = vector.load %arg9[%62, %c0_64, %c0_65, %c0_66] : memref<4x8x8x256xf32, #tpu.memory_space<vmem>>, vector<1x8x8x256xf32>
    %64 = vector.shape_cast %63 : vector<1x8x8x256xf32> to vector<8x8x256xf32>
    %65 = vector.shape_cast %64 : vector<8x8x256xf32> to vector<64x256xf32>
    %c0_67 = arith.constant 0 : index
    %c0_68 = arith.constant 0 : index
    %c0_69 = arith.constant 0 : index
    %66 = vector.load %arg3[%c0_67, %c0_68, %c0_69] : memref<1x512x768xf32, #tpu.memory_space<vmem>>, vector<1x256x768xf32>
    %67 = vector.shape_cast %66 : vector<1x256x768xf32> to vector<256x768xf32>
    %cst_70 = arith.constant dense<0.000000e+00> : vector<64x768xf32>
    %68 = tpu.matmul %65, %67, %cst_70 {dimension_numbers = #tpu.dot_dimension_numbers<[1], [0], [0], [1], [0, 0, 1, 1], [], []>} : vector<64x256xf32>, vector<256x768xf32>, vector<64x768xf32> -> vector<64x768xf32>
    %c2_i32_71 = arith.constant 2 : i32
    %69 = arith.muli %29, %c2_i32_71 : i32
    %c1_i32_72 = arith.constant 1 : i32
    %70 = arith.addi %69, %c1_i32_72 : i32
    %71 = arith.index_cast %70 : i32 to index
    %c0_73 = arith.constant 0 : index
    %c0_74 = arith.constant 0 : index
    %c0_75 = arith.constant 0 : index
    %72 = vector.load %arg9[%71, %c0_73, %c0_74, %c0_75] : memref<4x8x8x256xf32, #tpu.memory_space<vmem>>, vector<1x8x8x256xf32>
    %73 = vector.shape_cast %72 : vector<1x8x8x256xf32> to vector<8x8x256xf32>
    %74 = vector.shape_cast %73 : vector<8x8x256xf32> to vector<64x256xf32>
    %c0_76 = arith.constant 0 : index
    %c256 = arith.constant 256 : index
    %c0_77 = arith.constant 0 : index
    %75 = vector.load %arg3[%c0_76, %c256, %c0_77] : memref<1x512x768xf32, #tpu.memory_space<vmem>>, vector<1x256x768xf32>
    %76 = vector.shape_cast %75 : vector<1x256x768xf32> to vector<256x768xf32>
    %cst_78 = arith.constant dense<0.000000e+00> : vector<64x768xf32>
    %77 = tpu.matmul %74, %76, %cst_78 {dimension_numbers = #tpu.dot_dimension_numbers<[1], [0], [0], [1], [0, 0, 1, 1], [], []>} : vector<64x256xf32>, vector<256x768xf32>, vector<64x768xf32> -> vector<64x768xf32>
    %78 = arith.addf %68, %77 : vector<64x768xf32>
    %79 = vector.broadcast %4 : vector<1x768xf32> to vector<64x768xf32>
    %80 = arith.addf %78, %79 : vector<64x768xf32>
    %81 = vector.shape_cast %80 : vector<64x768xf32> to vector<8x8x768xf32>
    %c0_79 = arith.constant 0 : index
    %c0_80 = arith.constant 0 : index
    %c0_81 = arith.constant 0 : index
    %82 = vector.load %arg10[%c0_79, %c0_80, %c0_81] : memref<8x8x768xf32, #tpu.memory_space<vmem>>, vector<8x8x768xf32>
    tpu.vector_store %arg10[%c0_79, %c0_80, %c0_81], %81 {strides = array<i32>} : memref<8x8x768xf32, #tpu.memory_space<vmem>>, vector<8x8x768xf32>,
    %c2_i32_82 = arith.constant 2 : i32
    %83 = arith.cmpi sge, %c0_i32_33, %c2_i32_82 : i32
    %84 = arith.extui %83 : i1 to i32
    %c0_i32_83 = arith.constant 0 : i32
    %85 = arith.cmpi ne, %84, %c0_i32_83 : i32
    scf.if %85 {
      %c8_i32_107 = arith.constant 8 : i32
      %106 = arith.muli %29, %c8_i32_107 : i32
      %c0_i32_108 = arith.constant 0 : i32
      %c0_i32_109 = arith.constant 0 : i32
      %107 = tpu.memref_slice %arg11[%106, %c0_i32_108, %c0_i32_109] : memref<16x8x256xf32, #tpu.memory_space<vmem>> -> memref<8x8x256xf32, #tpu.memory_space<vmem>>
      %c0_i32_110 = arith.constant 0 : i32
      %c0_i32_111 = arith.constant 0 : i32
      %c0_i32_112 = arith.constant 0 : i32
      %108 = tpu.memref_slice %arg7[%c0_i32_110, %c0_i32_111, %c0_i32_112] : memref<16x8x256xf32, #tpu.memory_space<any>> -> memref<8x8x256xf32, #tpu.memory_space<any>>
      %109 = tpu.memref_slice %arg14[%29] : memref<2x!tpu.dma_semaphore, #tpu.memory_space<semaphore_mem>> -> memref<1x!tpu.dma_semaphore, #tpu.memory_space<semaphore_mem>>
      %110 = tpu.memref_squeeze %109 : memref<1x!tpu.dma_semaphore, #tpu.memory_space<semaphore_mem>> -> memref<!tpu.dma_semaphore, #tpu.memory_space<semaphore_mem>>
      tpu.wait_dma2 semaphore(%110 : memref<!tpu.dma_semaphore, #tpu.memory_space<semaphore_mem>>) src(%107 : memref<8x8x256xf32, #tpu.memory_space<vmem>>) dst(%108 : memref<8x8x256xf32, #tpu.memory_space<any>>)
    } else {
    }
    %c0_i32_84 = arith.constant 0 : i32
    %c8_i32_85 = arith.constant 8 : i32
    %86 = arith.addi %c0_i32_84, %c8_i32_85 : i32
    %c1_i32_86 = arith.constant 1 : i32
    scf.for %arg15 = %c0_i32_84 to %86 step %c1_i32_86  : i32 {
      %c1_i32_107 = arith.constant 1 : i32
      %106 = arith.subi %c1_i32_107, %arg0 : i32
      %107 = arith.muli %106, %arg15 : i32
      %c7_i32 = arith.constant 7 : i32
      %108 = arith.subi %c7_i32, %arg15 : i32
      %109 = arith.muli %arg0, %108 : i32
      %110 = arith.addi %107, %109 : i32
      %111 = arith.addi %37, %110 : i32
      %112 = arith.index_cast %110 : i32 to index
      %c0_108 = arith.constant 0 : index
      %c0_109 = arith.constant 0 : index
      %113 = vector.load %arg10[%112, %c0_108, %c0_109] : memref<8x8x768xf32, #tpu.memory_space<vmem>>, vector<1x8x768xf32>
      %114 = vector.shape_cast %113 : vector<1x8x768xf32> to vector<8x768xf32>
      %c0_110 = arith.constant 0 : index
      %c0_111 = arith.constant 0 : index
      %115 = vector.load %arg12[%c0_110, %c0_111] : memref<8x256xf32, #tpu.memory_space<vmem>>, vector<8x256xf32>
      %cst_112 = arith.constant dense<0.000000e+00> : vector<8x768xf32>
      %116 = tpu.matmul %115, %8, %cst_112 {dimension_numbers = #tpu.dot_dimension_numbers<[1], [0], [0], [1], [0, 0, 1, 1], [], []>} : vector<8x256xf32>, vector<256x768xf32>, vector<8x768xf32> -> vector<8x768xf32>
      %117 = vector.extract_strided_slice %114 {offsets = [0, 0], sizes = [8, 256], strides = [1, 1]} : vector<8x768xf32> to vector<8x256xf32>
      %118 = vector.extract_strided_slice %116 {offsets = [0, 0], sizes = [8, 256], strides = [1, 1]} : vector<8x768xf32> to vector<8x256xf32>
      %119 = arith.addf %117, %118 : vector<8x256xf32>
      %120 = arith.negf %119 : vector<8x256xf32>
      %121 = math.exp %120 : vector<8x256xf32>
      %cst_113 = arith.constant 1.000000e+00 : f32
      %122 = vector.broadcast %cst_113 : f32 to vector<8x256xf32>
      %123 = arith.addf %122, %121 : vector<8x256xf32>
      %124 = arith.divf %122, %123 : vector<8x256xf32>
      %125 = vector.extract_strided_slice %114 {offsets = [0, 256], sizes = [8, 256], strides = [1, 1]} : vector<8x768xf32> to vector<8x256xf32>
      %126 = vector.extract_strided_slice %116 {offsets = [0, 256], sizes = [8, 256], strides = [1, 1]} : vector<8x768xf32> to vector<8x256xf32>
      %127 = arith.addf %125, %126 : vector<8x256xf32>
      %128 = arith.negf %127 : vector<8x256xf32>
      %129 = math.exp %128 : vector<8x256xf32>
      %cst_114 = arith.constant 1.000000e+00 : f32
      %130 = vector.broadcast %cst_114 : f32 to vector<8x256xf32>
      %131 = arith.addf %130, %129 : vector<8x256xf32>
      %132 = arith.divf %130, %131 : vector<8x256xf32>
      %133 = vector.extract_strided_slice %114 {offsets = [0, 512], sizes = [8, 256], strides = [1, 1]} : vector<8x768xf32> to vector<8x256xf32>
      %134 = vector.extract_strided_slice %116 {offsets = [0, 512], sizes = [8, 256], strides = [1, 1]} : vector<8x768xf32> to vector<8x256xf32>
      %135 = vector.broadcast %6 : vector<1x256xf32> to vector<8x256xf32>
      %136 = arith.addf %134, %135 : vector<8x256xf32>
      %137 = arith.mulf %124, %136 : vector<8x256xf32>
      %138 = arith.addf %133, %137 : vector<8x256xf32>
      %139 = math.tanh %138 : vector<8x256xf32>
      %cst_115 = arith.constant 1.000000e+00 : f32
      %140 = vector.broadcast %cst_115 : f32 to vector<8x256xf32>
      %141 = arith.subf %140, %132 : vector<8x256xf32>
      %142 = arith.mulf %141, %139 : vector<8x256xf32>
      %143 = arith.mulf %132, %115 : vector<8x256xf32>
      %144 = arith.addf %142, %143 : vector<8x256xf32>
      %145 = vector.broadcast %111 : i32 to vector<8x1xi32>
      %146 = arith.cmpi slt, %145, %0 : vector<8x1xi32>
      %147 = vector.shape_cast %146 : vector<8x1xi1> to vector<8x1xi1>
      %148 = vector.broadcast %147 : vector<8x1xi1> to vector<8x256xi1>
      %149 = arith.select %148, %144, %115 : vector<8x256xi1>, vector<8x256xf32>
      %c0_116 = arith.constant 0 : index
      %c0_117 = arith.constant 0 : index
      %150 = vector.load %arg12[%c0_116, %c0_117] : memref<8x256xf32, #tpu.memory_space<vmem>>, vector<8x256xf32>
      tpu.vector_store %arg12[%c0_116, %c0_117], %149 {strides = array<i32>} : memref<8x256xf32, #tpu.memory_space<vmem>>, vector<8x256xf32>,
      %cst_118 = arith.constant 0.000000e+00 : f32
      %151 = vector.shape_cast %146 : vector<8x1xi1> to vector<8x1xi1>
      %152 = vector.broadcast %151 : vector<8x1xi1> to vector<8x256xi1>
      %153 = vector.broadcast %cst_118 : f32 to vector<8x256xf32>
      %154 = arith.select %152, %149, %153 : vector<8x256xi1>, vector<8x256xf32>
      %c8_i32_119 = arith.constant 8 : i32
      %155 = arith.muli %29, %c8_i32_119 : i32
      %156 = arith.addi %155, %110 : i32
      %157 = arith.index_cast %156 : i32 to index
      %c0_120 = arith.constant 0 : index
      %c0_121 = arith.constant 0 : index
      %158 = vector.load %arg11[%157, %c0_120, %c0_121] : memref<16x8x256xf32, #tpu.memory_space<vmem>>, vector<1x8x256xf32>
      %159 = vector.shape_cast %158 : vector<1x8x256xf32> to vector<8x256xf32>
      %160 = vector.shape_cast %154 : vector<8x256xf32> to vector<1x8x256xf32>
      tpu.vector_store %arg11[%157, %c0_120, %c0_121], %160 {strides = array<i32>} : memref<16x8x256xf32, #tpu.memory_space<vmem>>, vector<1x8x256xf32>,
      %161 = vector.broadcast %111 : i32 to vector<8x1xi32>
      %162 = arith.cmpi eq, %161, %2 : vector<8x1xi32>
      %c0_122 = arith.constant 0 : index
      %c0_123 = arith.constant 0 : index
      %c0_124 = arith.constant 0 : index
      %163 = vector.load %arg8[%c0_122, %c0_123, %c0_124] : memref<1x8x256xf32, #tpu.memory_space<vmem>>, vector<1x8x256xf32>
      %164 = vector.shape_cast %163 : vector<1x8x256xf32> to vector<8x256xf32>
      %165 = vector.shape_cast %162 : vector<8x1xi1> to vector<8x1xi1>
      %166 = vector.broadcast %165 : vector<8x1xi1> to vector<8x256xi1>
      %167 = arith.select %166, %149, %164 : vector<8x256xi1>, vector<8x256xf32>
      %c0_125 = arith.constant 0 : index
      %c0_126 = arith.constant 0 : index
      %c0_127 = arith.constant 0 : index
      %168 = vector.load %arg8[%c0_125, %c0_126, %c0_127] : memref<1x8x256xf32, #tpu.memory_space<vmem>>, vector<1x8x256xf32>
      %169 = vector.shape_cast %168 : vector<1x8x256xf32> to vector<8x256xf32>
      %170 = vector.shape_cast %167 : vector<8x256xf32> to vector<1x8x256xf32>
      tpu.vector_store %arg8[%c0_125, %c0_126, %c0_127], %170 {strides = array<i32>} : memref<1x8x256xf32, #tpu.memory_space<vmem>>, vector<1x8x256xf32>,
    }
    %c8_i32_87 = arith.constant 8 : i32
    %c1_i32_88 = arith.constant 1 : i32
    %87 = arith.subi %c1_i32_88, %arg0 : i32
    %c8_i32_89 = arith.constant 8 : i32
    %88 = arith.muli %c0_i32_33, %c8_i32_89 : i32
    %89 = arith.muli %87, %88 : i32
    %c1_i32_90 = arith.constant 1 : i32
    %90 = arith.addi %c0_i32_33, %c1_i32_90 : i32
    %c8_i32_91 = arith.constant 8 : i32
    %91 = arith.muli %90, %c8_i32_91 : i32
    %c8_i32_92 = arith.constant 8 : i32
    %92 = arith.subi %c8_i32_92, %91 : i32
    %93 = arith.muli %arg0, %92 : i32
    %94 = arith.addi %89, %93 : i32
    %c8_i32_93 = arith.constant 8 : i32
    %95 = arith.muli %29, %c8_i32_93 : i32
    %c8_i32_94 = arith.constant 8 : i32
    %96 = arith.muli %arg0, %c8_i32_94 : i32
    %97 = arith.addi %96, %94 : i32
    %c0_i32_95 = arith.constant 0 : i32
    %c0_i32_96 = arith.constant 0 : i32
    %98 = tpu.memref_slice %arg11[%95, %c0_i32_95, %c0_i32_96] : memref<16x8x256xf32, #tpu.memory_space<vmem>> -> memref<8x8x256xf32, #tpu.memory_space<vmem>>
    %c0_i32_97 = arith.constant 0 : i32
    %c0_i32_98 = arith.constant 0 : i32
    %99 = tpu.memref_slice %arg7[%97, %c0_i32_97, %c0_i32_98] : memref<16x8x256xf32, #tpu.memory_space<any>> -> memref<8x8x256xf32, #tpu.memory_space<any>>
    %100 = tpu.memref_slice %arg14[%29] : memref<2x!tpu.dma_semaphore, #tpu.memory_space<semaphore_mem>> -> memref<1x!tpu.dma_semaphore, #tpu.memory_space<semaphore_mem>>
    %101 = tpu.memref_squeeze %100 : memref<1x!tpu.dma_semaphore, #tpu.memory_space<semaphore_mem>> -> memref<!tpu.dma_semaphore, #tpu.memory_space<semaphore_mem>>
    tpu.enqueue_dma source(%98 : memref<8x8x256xf32, #tpu.memory_space<vmem>>) target(%99 : memref<8x8x256xf32, #tpu.memory_space<any>>) target_semaphore(%101 : memref<!tpu.dma_semaphore, #tpu.memory_space<semaphore_mem>>)
    %c1_i32_99 = arith.constant 1 : i32
    %c0_i32_100 = arith.constant 0 : i32
    %c0_i32_101 = arith.constant 0 : i32
    %c0_i32_102 = arith.constant 0 : i32
    %c0_i32_103 = arith.constant 0 : i32
    %102 = tpu.memref_slice %arg11[%c0_i32_101, %c0_i32_102, %c0_i32_103] : memref<16x8x256xf32, #tpu.memory_space<vmem>> -> memref<8x8x256xf32, #tpu.memory_space<vmem>>
    %c0_i32_104 = arith.constant 0 : i32
    %c0_i32_105 = arith.constant 0 : i32
    %c0_i32_106 = arith.constant 0 : i32
    %103 = tpu.memref_slice %arg7[%c0_i32_104, %c0_i32_105, %c0_i32_106] : memref<16x8x256xf32, #tpu.memory_space<any>> -> memref<8x8x256xf32, #tpu.memory_space<any>>
    %104 = tpu.memref_slice %arg14[%c0_i32_100] : memref<2x!tpu.dma_semaphore, #tpu.memory_space<semaphore_mem>> -> memref<1x!tpu.dma_semaphore, #tpu.memory_space<semaphore_mem>>
    %105 = tpu.memref_squeeze %104 : memref<1x!tpu.dma_semaphore, #tpu.memory_space<semaphore_mem>> -> memref<!tpu.dma_semaphore, #tpu.memory_space<semaphore_mem>>
    tpu.wait_dma2 semaphore(%105 : memref<!tpu.dma_semaphore, #tpu.memory_space<semaphore_mem>>) src(%102 : memref<8x8x256xf32, #tpu.memory_space<vmem>>) dst(%103 : memref<8x8x256xf32, #tpu.memory_space<any>>)
    return
  }
  func.func @transform_0(%arg0: i32) -> (i32, i32) {
    %c0_i32 = arith.constant 0 : i32
    %c0_i32_0 = arith.constant 0 : i32
    %c0_i32_1 = arith.constant 0 : i32
    return %c0_i32, %c0_i32_0 : i32, i32
  }
  func.func @transform_2(%arg0: i32) -> (i32, i32, i32) {
    %c0_i32 = arith.constant 0 : i32
    %c0_i32_0 = arith.constant 0 : i32
    %c0_i32_1 = arith.constant 0 : i32
    return %arg0, %c0_i32, %c0_i32_0 : i32, i32, i32
  }
  func.func @transform_3(%arg0: i32) -> (i32, i32, i32) {
    %c0_i32 = arith.constant 0 : i32
    %c0_i32_0 = arith.constant 0 : i32
    %c0_i32_1 = arith.constant 0 : i32
    return %arg0, %c0_i32, %c0_i32_0 : i32, i32, i32
  }
  func.func @transform_4(%arg0: i32) -> (i32, i32, i32) {
    %c0_i32 = arith.constant 0 : i32
    %c0_i32_0 = arith.constant 0 : i32
    %c0_i32_1 = arith.constant 0 : i32
    return %arg0, %c0_i32, %c0_i32_0 : i32, i32, i32
  }
  func.func @transform_5(%arg0: i32) -> (i32, i32, i32) {
    %c0_i32 = arith.constant 0 : i32
    %c0_i32_0 = arith.constant 0 : i32
    %c0_i32_1 = arith.constant 0 : i32
    return %arg0, %c0_i32, %c0_i32_0 : i32, i32, i32
  }
  func.func @transform_7(%arg0: i32) -> (i32, i32, i32) {
    %c0_i32 = arith.constant 0 : i32
    %c0_i32_0 = arith.constant 0 : i32
    %c0_i32_1 = arith.constant 0 : i32
    return %arg0, %c0_i32, %c0_i32_0 : i32, i32, i32
  }
}

module attributes {stable_mosaic.version = 11 : i64} {
  func.func @_gru_dir_kernel(%arg0: i32, %arg1: memref<8x1xi32, #tpu.memory_space<vmem>>, %arg2: memref<8x8x128xf32, #tpu.memory_space<any>>, %arg3: memref<1x128x768xf32, #tpu.memory_space<vmem>>, %arg4: memref<1x1x768xf32, #tpu.memory_space<vmem>>, %arg5: memref<1x256x768xf32, #tpu.memory_space<vmem>>, %arg6: memref<1x1x256xf32, #tpu.memory_space<vmem>>, %arg7: memref<16x8x256xf32, #tpu.memory_space<any>>, %arg8: memref<1x8x256xf32, #tpu.memory_space<vmem>>, %arg9: memref<2x8x8x128xf32, #tpu.memory_space<vmem>>, %arg10: memref<8x8x768xf32, #tpu.memory_space<vmem>>, %arg11: memref<16x8x256xf32, #tpu.memory_space<vmem>>, %arg12: memref<8x256xf32, #tpu.memory_space<vmem>>, %arg13: memref<2x!tpu.dma_semaphore, #tpu.memory_space<semaphore_mem>>, %arg14: memref<2x!tpu.dma_semaphore, #tpu.memory_space<semaphore_mem>>) attributes {dimension_semantics = [#tpu.dimension_semantics<parallel>], iteration_bounds = array<i64: 2>, scalar_prefetch = 0 : i64, scratch_operands = 6 : i64, tpu.core_type = #tpu.core_type<tc>, window_params = [{pipeline_mode = #tpu.pipeline_mode<synchronous>, transform_indices = @transform_0, window_bounds = array<i64: 8, 1>}, {}, {transform_indices = @transform_2, window_bounds = array<i64: 1, 128, 768>}, {transform_indices = @transform_3, window_bounds = array<i64: 1, 1, 768>}, {transform_indices = @transform_4, window_bounds = array<i64: 1, 256, 768>}, {transform_indices = @transform_5, window_bounds = array<i64: 1, 1, 256>}, {}, {transform_indices = @transform_7, window_bounds = array<i64: 1, 8, 256>}]} {
    %c0 = arith.constant 0 : index
    %c0_0 = arith.constant 0 : index
    %0 = vector.load %arg1[%c0, %c0_0] : memref<8x1xi32, #tpu.memory_space<vmem>>, vector<8x1xi32>
    %c1_i32 = arith.constant 1 : i32
    %1 = vector.broadcast %c1_i32 : i32 to vector<8x1xi32>
    %2 = arith.subi %0, %1 : vector<8x1xi32>
    %c0_1 = arith.constant 0 : index
    %c0_2 = arith.constant 0 : index
    %c0_3 = arith.constant 0 : index
    %3 = vector.load %arg4[%c0_1, %c0_2, %c0_3] : memref<1x1x768xf32, #tpu.memory_space<vmem>>, vector<1x1x768xf32>
    %4 = vector.shape_cast %3 : vector<1x1x768xf32> to vector<1x768xf32>
    %c0_4 = arith.constant 0 : index
    %c0_5 = arith.constant 0 : index
    %c0_6 = arith.constant 0 : index
    %5 = vector.load %arg6[%c0_4, %c0_5, %c0_6] : memref<1x1x256xf32, #tpu.memory_space<vmem>>, vector<1x1x256xf32>
    %6 = vector.shape_cast %5 : vector<1x1x256xf32> to vector<1x256xf32>
    %c0_7 = arith.constant 0 : index
    %c0_8 = arith.constant 0 : index
    %c0_9 = arith.constant 0 : index
    %7 = vector.load %arg5[%c0_7, %c0_8, %c0_9] : memref<1x256x768xf32, #tpu.memory_space<vmem>>, vector<1x256x768xf32>
    %8 = vector.shape_cast %7 : vector<1x256x768xf32> to vector<256x768xf32>
    %cst = arith.constant 0.000000e+00 : f32
    %9 = vector.broadcast %cst : f32 to vector<8x256xf32>
    %c0_10 = arith.constant 0 : index
    %c0_11 = arith.constant 0 : index
    %10 = vector.load %arg12[%c0_10, %c0_11] : memref<8x256xf32, #tpu.memory_space<vmem>>, vector<8x256xf32>
    tpu.vector_store %arg12[%c0_10, %c0_11], %9 {strides = array<i32>} : memref<8x256xf32, #tpu.memory_space<vmem>>, vector<8x256xf32>,
    %cst_12 = arith.constant 0.000000e+00 : f32
    %11 = vector.broadcast %cst_12 : f32 to vector<1x8x256xf32>
    %c0_13 = arith.constant 0 : index
    %c0_14 = arith.constant 0 : index
    %c0_15 = arith.constant 0 : index
    %12 = vector.load %arg8[%c0_13, %c0_14, %c0_15] : memref<1x8x256xf32, #tpu.memory_space<vmem>>, vector<1x8x256xf32>
    tpu.vector_store %arg8[%c0_13, %c0_14, %c0_15], %11 {strides = array<i32>} : memref<1x8x256xf32, #tpu.memory_space<vmem>>, vector<1x8x256xf32>,
    %c1_i32_16 = arith.constant 1 : i32
    %13 = arith.subi %c1_i32_16, %arg0 : i32
    %c0_i32 = arith.constant 0 : i32
    %14 = arith.muli %13, %c0_i32 : i32
    %c0_i32_17 = arith.constant 0 : i32
    %15 = arith.muli %arg0, %c0_i32_17 : i32
    %16 = arith.addi %14, %15 : i32
    %c0_i32_18 = arith.constant 0 : i32
    %17 = arith.addi %c0_i32_18, %16 : i32
    %c0_i32_19 = arith.constant 0 : i32
    %c0_i32_20 = arith.constant 0 : i32
    %c0_i32_21 = arith.constant 0 : i32
    %c0_i32_22 = arith.constant 0 : i32
    %18 = tpu.memref_slice %arg2[%17, %c0_i32_21, %c0_i32_22] : memref<8x8x128xf32, #tpu.memory_space<any>> -> memref<8x8x128xf32, #tpu.memory_space<any>>
    %c0_i32_23 = arith.constant 0 : i32
    %c0_i32_24 = arith.constant 0 : i32
    %c0_i32_25 = arith.constant 0 : i32
    %19 = tpu.memref_slice %arg9[%c0_i32_19, %c0_i32_23, %c0_i32_24, %c0_i32_25] : memref<2x8x8x128xf32, #tpu.memory_space<vmem>> -> memref<1x8x8x128xf32, #tpu.memory_space<vmem>>
    %20 = tpu.memref_squeeze %19 : memref<1x8x8x128xf32, #tpu.memory_space<vmem>> -> memref<8x8x128xf32, #tpu.memory_space<vmem>>
    %21 = tpu.memref_slice %arg13[%c0_i32_20] : memref<2x!tpu.dma_semaphore, #tpu.memory_space<semaphore_mem>> -> memref<1x!tpu.dma_semaphore, #tpu.memory_space<semaphore_mem>>
    %22 = tpu.memref_squeeze %21 : memref<1x!tpu.dma_semaphore, #tpu.memory_space<semaphore_mem>> -> memref<!tpu.dma_semaphore, #tpu.memory_space<semaphore_mem>>
    tpu.enqueue_dma source(%18 : memref<8x8x128xf32, #tpu.memory_space<any>>) target(%20 : memref<8x8x128xf32, #tpu.memory_space<vmem>>) target_semaphore(%22 : memref<!tpu.dma_semaphore, #tpu.memory_space<semaphore_mem>>)
    %c0_i32_26 = arith.constant 0 : i32
    %c2_i32 = arith.constant 2 : i32
    %23 = arith.remsi %c0_i32_26, %c2_i32 : i32
    %c1_i32_27 = arith.constant 1 : i32
    %24 = arith.subi %c1_i32_27, %arg0 : i32
    %c8_i32 = arith.constant 8 : i32
    %25 = arith.muli %c0_i32_26, %c8_i32 : i32
    %26 = arith.muli %24, %25 : i32
    %c1_i32_28 = arith.constant 1 : i32
    %27 = arith.addi %c0_i32_26, %c1_i32_28 : i32
    %c8_i32_29 = arith.constant 8 : i32
    %28 = arith.muli %27, %c8_i32_29 : i32
    %c8_i32_30 = arith.constant 8 : i32
    %29 = arith.subi %c8_i32_30, %28 : i32
    %30 = arith.muli %arg0, %29 : i32
    %31 = arith.addi %26, %30 : i32
    %c1_i32_31 = arith.constant 1 : i32
    %32 = arith.muli %23, %c1_i32_31 : i32
    %c0_i32_32 = arith.constant 0 : i32
    %33 = arith.addi %32, %c0_i32_32 : i32
    %c1_i32_33 = arith.constant 1 : i32
    %34 = arith.muli %23, %c1_i32_33 : i32
    %c0_i32_34 = arith.constant 0 : i32
    %35 = arith.addi %34, %c0_i32_34 : i32
    %c0_i32_35 = arith.constant 0 : i32
    %c0_i32_36 = arith.constant 0 : i32
    %c0_i32_37 = arith.constant 0 : i32
    %36 = tpu.memref_slice %arg2[%c0_i32_35, %c0_i32_36, %c0_i32_37] : memref<8x8x128xf32, #tpu.memory_space<any>> -> memref<8x8x128xf32, #tpu.memory_space<any>>
    %c0_i32_38 = arith.constant 0 : i32
    %c0_i32_39 = arith.constant 0 : i32
    %c0_i32_40 = arith.constant 0 : i32
    %37 = tpu.memref_slice %arg9[%33, %c0_i32_38, %c0_i32_39, %c0_i32_40] : memref<2x8x8x128xf32, #tpu.memory_space<vmem>> -> memref<1x8x8x128xf32, #tpu.memory_space<vmem>>
    %38 = tpu.memref_squeeze %37 : memref<1x8x8x128xf32, #tpu.memory_space<vmem>> -> memref<8x8x128xf32, #tpu.memory_space<vmem>>
    %39 = tpu.memref_slice %arg13[%35] : memref<2x!tpu.dma_semaphore, #tpu.memory_space<semaphore_mem>> -> memref<1x!tpu.dma_semaphore, #tpu.memory_space<semaphore_mem>>
    %40 = tpu.memref_squeeze %39 : memref<1x!tpu.dma_semaphore, #tpu.memory_space<semaphore_mem>> -> memref<!tpu.dma_semaphore, #tpu.memory_space<semaphore_mem>>
    tpu.wait_dma2 semaphore(%40 : memref<!tpu.dma_semaphore, #tpu.memory_space<semaphore_mem>>) src(%36 : memref<8x8x128xf32, #tpu.memory_space<any>>) dst(%38 : memref<8x8x128xf32, #tpu.memory_space<vmem>>)
    %c1_i32_41 = arith.constant 1 : i32
    %41 = arith.addi %c0_i32_26, %c1_i32_41 : i32
    %c1_i32_42 = arith.constant 1 : i32
    %42 = arith.cmpi slt, %41, %c1_i32_42 : i32
    %43 = arith.extui %42 : i1 to i32
    %c0_i32_43 = arith.constant 0 : i32
    %44 = arith.cmpi ne, %43, %c0_i32_43 : i32
    scf.if %44 {
      %c1_i32_81 = arith.constant 1 : i32
      %81 = arith.addi %c0_i32_26, %c1_i32_81 : i32
      %c1_i32_82 = arith.constant 1 : i32
      %82 = arith.subi %c1_i32_82, %23 : i32
      %c1_i32_83 = arith.constant 1 : i32
      %83 = arith.subi %c1_i32_83, %arg0 : i32
      %c8_i32_84 = arith.constant 8 : i32
      %84 = arith.muli %81, %c8_i32_84 : i32
      %85 = arith.muli %83, %84 : i32
      %c1_i32_85 = arith.constant 1 : i32
      %86 = arith.addi %81, %c1_i32_85 : i32
      %c8_i32_86 = arith.constant 8 : i32
      %87 = arith.muli %86, %c8_i32_86 : i32
      %c8_i32_87 = arith.constant 8 : i32
      %88 = arith.subi %c8_i32_87, %87 : i32
      %89 = arith.muli %arg0, %88 : i32
      %90 = arith.addi %85, %89 : i32
      %c0_i32_88 = arith.constant 0 : i32
      %91 = arith.addi %c0_i32_88, %90 : i32
      %c1_i32_89 = arith.constant 1 : i32
      %92 = arith.muli %82, %c1_i32_89 : i32
      %c0_i32_90 = arith.constant 0 : i32
      %93 = arith.addi %92, %c0_i32_90 : i32
      %c1_i32_91 = arith.constant 1 : i32
      %94 = arith.muli %82, %c1_i32_91 : i32
      %c0_i32_92 = arith.constant 0 : i32
      %95 = arith.addi %94, %c0_i32_92 : i32
      %c0_i32_93 = arith.constant 0 : i32
      %c0_i32_94 = arith.constant 0 : i32
      %96 = tpu.memref_slice %arg2[%91, %c0_i32_93, %c0_i32_94] : memref<8x8x128xf32, #tpu.memory_space<any>> -> memref<8x8x128xf32, #tpu.memory_space<any>>
      %c0_i32_95 = arith.constant 0 : i32
      %c0_i32_96 = arith.constant 0 : i32
      %c0_i32_97 = arith.constant 0 : i32
      %97 = tpu.memref_slice %arg9[%93, %c0_i32_95, %c0_i32_96, %c0_i32_97] : memref<2x8x8x128xf32, #tpu.memory_space<vmem>> -> memref<1x8x8x128xf32, #tpu.memory_space<vmem>>
      %98 = tpu.memref_squeeze %97 : memref<1x8x8x128xf32, #tpu.memory_space<vmem>> -> memref<8x8x128xf32, #tpu.memory_space<vmem>>
      %99 = tpu.memref_slice %arg13[%95] : memref<2x!tpu.dma_semaphore, #tpu.memory_space<semaphore_mem>> -> memref<1x!tpu.dma_semaphore, #tpu.memory_space<semaphore_mem>>
      %100 = tpu.memref_squeeze %99 : memref<1x!tpu.dma_semaphore, #tpu.memory_space<semaphore_mem>> -> memref<!tpu.dma_semaphore, #tpu.memory_space<semaphore_mem>>
      tpu.enqueue_dma source(%96 : memref<8x8x128xf32, #tpu.memory_space<any>>) target(%98 : memref<8x8x128xf32, #tpu.memory_space<vmem>>) target_semaphore(%100 : memref<!tpu.dma_semaphore, #tpu.memory_space<semaphore_mem>>)
    } else {
    }
    %c1_i32_44 = arith.constant 1 : i32
    %45 = arith.muli %23, %c1_i32_44 : i32
    %c0_i32_45 = arith.constant 0 : i32
    %46 = arith.addi %45, %c0_i32_45 : i32
    %47 = arith.index_cast %46 : i32 to index
    %c0_46 = arith.constant 0 : index
    %c0_47 = arith.constant 0 : index
    %c0_48 = arith.constant 0 : index
    %48 = vector.load %arg9[%47, %c0_46, %c0_47, %c0_48] : memref<2x8x8x128xf32, #tpu.memory_space<vmem>>, vector<1x8x8x128xf32>
    %49 = vector.shape_cast %48 : vector<1x8x8x128xf32> to vector<8x8x128xf32>
    %50 = vector.shape_cast %49 : vector<8x8x128xf32> to vector<64x128xf32>
    %c0_49 = arith.constant 0 : index
    %c0_50 = arith.constant 0 : index
    %c0_51 = arith.constant 0 : index
    %51 = vector.load %arg3[%c0_49, %c0_50, %c0_51] : memref<1x128x768xf32, #tpu.memory_space<vmem>>, vector<1x128x768xf32>
    %52 = vector.shape_cast %51 : vector<1x128x768xf32> to vector<128x768xf32>
    %cst_52 = arith.constant dense<0.000000e+00> : vector<64x768xf32>
    %53 = tpu.matmul %50, %52, %cst_52 {dimension_numbers = #tpu.dot_dimension_numbers<[1], [0], [0], [1], [0, 0, 1, 1], [], []>} : vector<64x128xf32>, vector<128x768xf32>, vector<64x768xf32> -> vector<64x768xf32>
    %54 = vector.broadcast %4 : vector<1x768xf32> to vector<64x768xf32>
    %55 = arith.addf %53, %54 : vector<64x768xf32>
    %56 = vector.shape_cast %55 : vector<64x768xf32> to vector<8x8x768xf32>
    %c0_53 = arith.constant 0 : index
    %c0_54 = arith.constant 0 : index
    %c0_55 = arith.constant 0 : index
    %57 = vector.load %arg10[%c0_53, %c0_54, %c0_55] : memref<8x8x768xf32, #tpu.memory_space<vmem>>, vector<8x8x768xf32>
    tpu.vector_store %arg10[%c0_53, %c0_54, %c0_55], %56 {strides = array<i32>} : memref<8x8x768xf32, #tpu.memory_space<vmem>>, vector<8x8x768xf32>,
    %c2_i32_56 = arith.constant 2 : i32
    %58 = arith.cmpi sge, %c0_i32_26, %c2_i32_56 : i32
    %59 = arith.extui %58 : i1 to i32
    %c0_i32_57 = arith.constant 0 : i32
    %60 = arith.cmpi ne, %59, %c0_i32_57 : i32
    scf.if %60 {
      %c8_i32_81 = arith.constant 8 : i32
      %81 = arith.muli %23, %c8_i32_81 : i32
      %c0_i32_82 = arith.constant 0 : i32
      %c0_i32_83 = arith.constant 0 : i32
      %82 = tpu.memref_slice %arg11[%81, %c0_i32_82, %c0_i32_83] : memref<16x8x256xf32, #tpu.memory_space<vmem>> -> memref<8x8x256xf32, #tpu.memory_space<vmem>>
      %c0_i32_84 = arith.constant 0 : i32
      %c0_i32_85 = arith.constant 0 : i32
      %c0_i32_86 = arith.constant 0 : i32
      %83 = tpu.memref_slice %arg7[%c0_i32_84, %c0_i32_85, %c0_i32_86] : memref<16x8x256xf32, #tpu.memory_space<any>> -> memref<8x8x256xf32, #tpu.memory_space<any>>
      %84 = tpu.memref_slice %arg14[%23] : memref<2x!tpu.dma_semaphore, #tpu.memory_space<semaphore_mem>> -> memref<1x!tpu.dma_semaphore, #tpu.memory_space<semaphore_mem>>
      %85 = tpu.memref_squeeze %84 : memref<1x!tpu.dma_semaphore, #tpu.memory_space<semaphore_mem>> -> memref<!tpu.dma_semaphore, #tpu.memory_space<semaphore_mem>>
      tpu.wait_dma2 semaphore(%85 : memref<!tpu.dma_semaphore, #tpu.memory_space<semaphore_mem>>) src(%82 : memref<8x8x256xf32, #tpu.memory_space<vmem>>) dst(%83 : memref<8x8x256xf32, #tpu.memory_space<any>>)
    } else {
    }
    %c0_i32_58 = arith.constant 0 : i32
    %c8_i32_59 = arith.constant 8 : i32
    %61 = arith.addi %c0_i32_58, %c8_i32_59 : i32
    %c1_i32_60 = arith.constant 1 : i32
    scf.for %arg15 = %c0_i32_58 to %61 step %c1_i32_60  : i32 {
      %c1_i32_81 = arith.constant 1 : i32
      %81 = arith.subi %c1_i32_81, %arg0 : i32
      %82 = arith.muli %81, %arg15 : i32
      %c7_i32 = arith.constant 7 : i32
      %83 = arith.subi %c7_i32, %arg15 : i32
      %84 = arith.muli %arg0, %83 : i32
      %85 = arith.addi %82, %84 : i32
      %86 = arith.addi %31, %85 : i32
      %87 = arith.index_cast %85 : i32 to index
      %c0_82 = arith.constant 0 : index
      %c0_83 = arith.constant 0 : index
      %88 = vector.load %arg10[%87, %c0_82, %c0_83] : memref<8x8x768xf32, #tpu.memory_space<vmem>>, vector<1x8x768xf32>
      %89 = vector.shape_cast %88 : vector<1x8x768xf32> to vector<8x768xf32>
      %c0_84 = arith.constant 0 : index
      %c0_85 = arith.constant 0 : index
      %90 = vector.load %arg12[%c0_84, %c0_85] : memref<8x256xf32, #tpu.memory_space<vmem>>, vector<8x256xf32>
      %cst_86 = arith.constant dense<0.000000e+00> : vector<8x768xf32>
      %91 = tpu.matmul %90, %8, %cst_86 {dimension_numbers = #tpu.dot_dimension_numbers<[1], [0], [0], [1], [0, 0, 1, 1], [], []>} : vector<8x256xf32>, vector<256x768xf32>, vector<8x768xf32> -> vector<8x768xf32>
      %92 = vector.extract_strided_slice %89 {offsets = [0, 0], sizes = [8, 256], strides = [1, 1]} : vector<8x768xf32> to vector<8x256xf32>
      %93 = vector.extract_strided_slice %91 {offsets = [0, 0], sizes = [8, 256], strides = [1, 1]} : vector<8x768xf32> to vector<8x256xf32>
      %94 = arith.addf %92, %93 : vector<8x256xf32>
      %95 = arith.negf %94 : vector<8x256xf32>
      %96 = math.exp %95 : vector<8x256xf32>
      %cst_87 = arith.constant 1.000000e+00 : f32
      %97 = vector.broadcast %cst_87 : f32 to vector<8x256xf32>
      %98 = arith.addf %97, %96 : vector<8x256xf32>
      %99 = arith.divf %97, %98 : vector<8x256xf32>
      %100 = vector.extract_strided_slice %89 {offsets = [0, 256], sizes = [8, 256], strides = [1, 1]} : vector<8x768xf32> to vector<8x256xf32>
      %101 = vector.extract_strided_slice %91 {offsets = [0, 256], sizes = [8, 256], strides = [1, 1]} : vector<8x768xf32> to vector<8x256xf32>
      %102 = arith.addf %100, %101 : vector<8x256xf32>
      %103 = arith.negf %102 : vector<8x256xf32>
      %104 = math.exp %103 : vector<8x256xf32>
      %cst_88 = arith.constant 1.000000e+00 : f32
      %105 = vector.broadcast %cst_88 : f32 to vector<8x256xf32>
      %106 = arith.addf %105, %104 : vector<8x256xf32>
      %107 = arith.divf %105, %106 : vector<8x256xf32>
      %108 = vector.extract_strided_slice %89 {offsets = [0, 512], sizes = [8, 256], strides = [1, 1]} : vector<8x768xf32> to vector<8x256xf32>
      %109 = vector.extract_strided_slice %91 {offsets = [0, 512], sizes = [8, 256], strides = [1, 1]} : vector<8x768xf32> to vector<8x256xf32>
      %110 = vector.broadcast %6 : vector<1x256xf32> to vector<8x256xf32>
      %111 = arith.addf %109, %110 : vector<8x256xf32>
      %112 = arith.mulf %99, %111 : vector<8x256xf32>
      %113 = arith.addf %108, %112 : vector<8x256xf32>
      %114 = math.tanh %113 : vector<8x256xf32>
      %cst_89 = arith.constant 1.000000e+00 : f32
      %115 = vector.broadcast %cst_89 : f32 to vector<8x256xf32>
      %116 = arith.subf %115, %107 : vector<8x256xf32>
      %117 = arith.mulf %116, %114 : vector<8x256xf32>
      %118 = arith.mulf %107, %90 : vector<8x256xf32>
      %119 = arith.addf %117, %118 : vector<8x256xf32>
      %120 = vector.broadcast %86 : i32 to vector<8x1xi32>
      %121 = arith.cmpi slt, %120, %0 : vector<8x1xi32>
      %122 = vector.shape_cast %121 : vector<8x1xi1> to vector<8x1xi1>
      %123 = vector.broadcast %122 : vector<8x1xi1> to vector<8x256xi1>
      %124 = arith.select %123, %119, %90 : vector<8x256xi1>, vector<8x256xf32>
      %c0_90 = arith.constant 0 : index
      %c0_91 = arith.constant 0 : index
      %125 = vector.load %arg12[%c0_90, %c0_91] : memref<8x256xf32, #tpu.memory_space<vmem>>, vector<8x256xf32>
      tpu.vector_store %arg12[%c0_90, %c0_91], %124 {strides = array<i32>} : memref<8x256xf32, #tpu.memory_space<vmem>>, vector<8x256xf32>,
      %cst_92 = arith.constant 0.000000e+00 : f32
      %126 = vector.shape_cast %121 : vector<8x1xi1> to vector<8x1xi1>
      %127 = vector.broadcast %126 : vector<8x1xi1> to vector<8x256xi1>
      %128 = vector.broadcast %cst_92 : f32 to vector<8x256xf32>
      %129 = arith.select %127, %124, %128 : vector<8x256xi1>, vector<8x256xf32>
      %c8_i32_93 = arith.constant 8 : i32
      %130 = arith.muli %23, %c8_i32_93 : i32
      %131 = arith.addi %130, %85 : i32
      %132 = arith.index_cast %131 : i32 to index
      %c0_94 = arith.constant 0 : index
      %c0_95 = arith.constant 0 : index
      %133 = vector.load %arg11[%132, %c0_94, %c0_95] : memref<16x8x256xf32, #tpu.memory_space<vmem>>, vector<1x8x256xf32>
      %134 = vector.shape_cast %133 : vector<1x8x256xf32> to vector<8x256xf32>
      %135 = vector.shape_cast %129 : vector<8x256xf32> to vector<1x8x256xf32>
      tpu.vector_store %arg11[%132, %c0_94, %c0_95], %135 {strides = array<i32>} : memref<16x8x256xf32, #tpu.memory_space<vmem>>, vector<1x8x256xf32>,
      %136 = vector.broadcast %86 : i32 to vector<8x1xi32>
      %137 = arith.cmpi eq, %136, %2 : vector<8x1xi32>
      %c0_96 = arith.constant 0 : index
      %c0_97 = arith.constant 0 : index
      %c0_98 = arith.constant 0 : index
      %138 = vector.load %arg8[%c0_96, %c0_97, %c0_98] : memref<1x8x256xf32, #tpu.memory_space<vmem>>, vector<1x8x256xf32>
      %139 = vector.shape_cast %138 : vector<1x8x256xf32> to vector<8x256xf32>
      %140 = vector.shape_cast %137 : vector<8x1xi1> to vector<8x1xi1>
      %141 = vector.broadcast %140 : vector<8x1xi1> to vector<8x256xi1>
      %142 = arith.select %141, %124, %139 : vector<8x256xi1>, vector<8x256xf32>
      %c0_99 = arith.constant 0 : index
      %c0_100 = arith.constant 0 : index
      %c0_101 = arith.constant 0 : index
      %143 = vector.load %arg8[%c0_99, %c0_100, %c0_101] : memref<1x8x256xf32, #tpu.memory_space<vmem>>, vector<1x8x256xf32>
      %144 = vector.shape_cast %143 : vector<1x8x256xf32> to vector<8x256xf32>
      %145 = vector.shape_cast %142 : vector<8x256xf32> to vector<1x8x256xf32>
      tpu.vector_store %arg8[%c0_99, %c0_100, %c0_101], %145 {strides = array<i32>} : memref<1x8x256xf32, #tpu.memory_space<vmem>>, vector<1x8x256xf32>,
    }
    %c8_i32_61 = arith.constant 8 : i32
    %c1_i32_62 = arith.constant 1 : i32
    %62 = arith.subi %c1_i32_62, %arg0 : i32
    %c8_i32_63 = arith.constant 8 : i32
    %63 = arith.muli %c0_i32_26, %c8_i32_63 : i32
    %64 = arith.muli %62, %63 : i32
    %c1_i32_64 = arith.constant 1 : i32
    %65 = arith.addi %c0_i32_26, %c1_i32_64 : i32
    %c8_i32_65 = arith.constant 8 : i32
    %66 = arith.muli %65, %c8_i32_65 : i32
    %c8_i32_66 = arith.constant 8 : i32
    %67 = arith.subi %c8_i32_66, %66 : i32
    %68 = arith.muli %arg0, %67 : i32
    %69 = arith.addi %64, %68 : i32
    %c8_i32_67 = arith.constant 8 : i32
    %70 = arith.muli %23, %c8_i32_67 : i32
    %c8_i32_68 = arith.constant 8 : i32
    %71 = arith.muli %arg0, %c8_i32_68 : i32
    %72 = arith.addi %71, %69 : i32
    %c0_i32_69 = arith.constant 0 : i32
    %c0_i32_70 = arith.constant 0 : i32
    %73 = tpu.memref_slice %arg11[%70, %c0_i32_69, %c0_i32_70] : memref<16x8x256xf32, #tpu.memory_space<vmem>> -> memref<8x8x256xf32, #tpu.memory_space<vmem>>
    %c0_i32_71 = arith.constant 0 : i32
    %c0_i32_72 = arith.constant 0 : i32
    %74 = tpu.memref_slice %arg7[%72, %c0_i32_71, %c0_i32_72] : memref<16x8x256xf32, #tpu.memory_space<any>> -> memref<8x8x256xf32, #tpu.memory_space<any>>
    %75 = tpu.memref_slice %arg14[%23] : memref<2x!tpu.dma_semaphore, #tpu.memory_space<semaphore_mem>> -> memref<1x!tpu.dma_semaphore, #tpu.memory_space<semaphore_mem>>
    %76 = tpu.memref_squeeze %75 : memref<1x!tpu.dma_semaphore, #tpu.memory_space<semaphore_mem>> -> memref<!tpu.dma_semaphore, #tpu.memory_space<semaphore_mem>>
    tpu.enqueue_dma source(%73 : memref<8x8x256xf32, #tpu.memory_space<vmem>>) target(%74 : memref<8x8x256xf32, #tpu.memory_space<any>>) target_semaphore(%76 : memref<!tpu.dma_semaphore, #tpu.memory_space<semaphore_mem>>)
    %c1_i32_73 = arith.constant 1 : i32
    %c0_i32_74 = arith.constant 0 : i32
    %c0_i32_75 = arith.constant 0 : i32
    %c0_i32_76 = arith.constant 0 : i32
    %c0_i32_77 = arith.constant 0 : i32
    %77 = tpu.memref_slice %arg11[%c0_i32_75, %c0_i32_76, %c0_i32_77] : memref<16x8x256xf32, #tpu.memory_space<vmem>> -> memref<8x8x256xf32, #tpu.memory_space<vmem>>
    %c0_i32_78 = arith.constant 0 : i32
    %c0_i32_79 = arith.constant 0 : i32
    %c0_i32_80 = arith.constant 0 : i32
    %78 = tpu.memref_slice %arg7[%c0_i32_78, %c0_i32_79, %c0_i32_80] : memref<16x8x256xf32, #tpu.memory_space<any>> -> memref<8x8x256xf32, #tpu.memory_space<any>>
    %79 = tpu.memref_slice %arg14[%c0_i32_74] : memref<2x!tpu.dma_semaphore, #tpu.memory_space<semaphore_mem>> -> memref<1x!tpu.dma_semaphore, #tpu.memory_space<semaphore_mem>>
    %80 = tpu.memref_squeeze %79 : memref<1x!tpu.dma_semaphore, #tpu.memory_space<semaphore_mem>> -> memref<!tpu.dma_semaphore, #tpu.memory_space<semaphore_mem>>
    tpu.wait_dma2 semaphore(%80 : memref<!tpu.dma_semaphore, #tpu.memory_space<semaphore_mem>>) src(%77 : memref<8x8x256xf32, #tpu.memory_space<vmem>>) dst(%78 : memref<8x8x256xf32, #tpu.memory_space<any>>)
    return
  }
  func.func @transform_0(%arg0: i32) -> (i32, i32) {
    %c0_i32 = arith.constant 0 : i32
    %c0_i32_0 = arith.constant 0 : i32
    %c0_i32_1 = arith.constant 0 : i32
    return %c0_i32, %c0_i32_0 : i32, i32
  }
  func.func @transform_2(%arg0: i32) -> (i32, i32, i32) {
    %c0_i32 = arith.constant 0 : i32
    %c0_i32_0 = arith.constant 0 : i32
    %c0_i32_1 = arith.constant 0 : i32
    return %arg0, %c0_i32, %c0_i32_0 : i32, i32, i32
  }
  func.func @transform_3(%arg0: i32) -> (i32, i32, i32) {
    %c0_i32 = arith.constant 0 : i32
    %c0_i32_0 = arith.constant 0 : i32
    %c0_i32_1 = arith.constant 0 : i32
    return %arg0, %c0_i32, %c0_i32_0 : i32, i32, i32
  }
  func.func @transform_4(%arg0: i32) -> (i32, i32, i32) {
    %c0_i32 = arith.constant 0 : i32
    %c0_i32_0 = arith.constant 0 : i32
    %c0_i32_1 = arith.constant 0 : i32
    return %arg0, %c0_i32, %c0_i32_0 : i32, i32, i32
  }
  func.func @transform_5(%arg0: i32) -> (i32, i32, i32) {
    %c0_i32 = arith.constant 0 : i32
    %c0_i32_0 = arith.constant 0 : i32
    %c0_i32_1 = arith.constant 0 : i32
    return %arg0, %c0_i32, %c0_i32_0 : i32, i32, i32
  }
  func.func @transform_7(%arg0: i32) -> (i32, i32, i32) {
    %c0_i32 = arith.constant 0 : i32
    %c0_i32_0 = arith.constant 0 : i32
    %c0_i32_1 = arith.constant 0 : i32
    return %arg0, %c0_i32, %c0_i32_0 : i32, i32, i32
  }
}

</mosaic_0001>

<llo_original>
// kernel: rnn_forward.4
$region0: #{rnn_forward.4}
  #allocation0 [shape = 'u32[]', space=smem, size = 0x4, offset = 0x4, fixed_abs, tag = 'smem constant byte address 0x4 - core index']
  #allocation1 [shape = 'u32[144,128]{1,0:T(1,128)}', space=vmem, size = 0x12000, scoped, tag = 'internal scratch']
  %s0 = inlined_call_operand.vmem [shape: f32[64,16], index: 0, kind: input, shape index: {}]
  %s1 = inlined_call_operand.hbm [shape: f32[16,128], index: 1, kind: input, shape index: {}]
  %s2 = inlined_call_operand.hbm [shape: f32[1,128], index: 2, kind: input, shape index: {}]
  %s3 = inlined_call_operand.vmem [shape: f32[64,128], index: 3, kind: output, shape index: {}]
  %s4 = sld [smem:[#allocation0]]
  $region30: #{rnn_forward.4} parent=0
    _
  %s6 = ssub.s32 1, %s4
  %s7 = scalar_select 0, %s6, %s4
  $region1: #{rnn_forward.4} parent=0
    #allocation2 [shape = 'u8[8192]{0}', space=vmem, size = 0x2000, scoped, tag = 'input window, operand 1, single buffered']
    #allocation3 [shape = 's32[1]{0}', space=sflag, size = 0x4, scoped, tag = 'scoped memory for rnn_forward.4']
    #allocation4 [shape = 'u8[512]{0}', space=vmem, size = 0x400, scoped, tag = 'input window, operand 2, single buffered']
    #allocation5 [shape = 's32[1]{0}', space=sflag, size = 0x4, scoped, tag = 'scoped memory for rnn_forward.4']
    %8 = vsyncpa [#allocation3], 0
    %9 = vsyncpa [#allocation5], 0
    // Predicated region
    $region2: #{rnn_forward.4} parent=1 // pred_check
      _
    $region3: #{rnn_forward.4} parent=1 // pred_check_branch
      %11 = sbr.rel (0) target = $region5
    $region4: #{rnn_forward.4} parent=1 // pred_region
      _
    $region5: #{rnn_forward.4} parent=1 // pred_fallthru
      _
    // Predicated region
    $region6: #{rnn_forward.4} parent=1 // pred_check
      _
    $region7: #{rnn_forward.4} parent=1 // pred_check_branch
      %13 = sbr.rel (0) target = $region9
    $region8: #{rnn_forward.4} parent=1 // pred_region
      %s15 = ssub.s32 256, 256
      %16 = vsyncadd [#allocation3], %s15
      %s17 = sshll.u32 [#allocation2], 4
      %s18 = int_to_ptr.vmem [resolvable:$true] %s17
      %23 = dma.hbm_to_vmem [thread:$0]  %s1, 256, %s18, [#allocation3], 128, 128, 8
    $region9: #{rnn_forward.4} parent=1 // pred_fallthru
      _
    // Predicated region
    $region10: #{rnn_forward.4} parent=1 // pred_check
      _
    $region11: #{rnn_forward.4} parent=1 // pred_check_branch
      %25 = sbr.rel (0) target = $region13
    $region12: #{rnn_forward.4} parent=1 // pred_region
      %s27 = ssub.s32 16, 16
      %28 = vsyncadd [#allocation5], %s27
      %s30 = sshll.u32 [#allocation4], 4
      %s31 = int_to_ptr.vmem [resolvable:$true] %s30
      %33 = dma.hbm_to_vmem [thread:$0]  %s2, 16, %s31, [#allocation5]
    $region13: #{rnn_forward.4} parent=1 // pred_fallthru
      _
    // Predicated region
    $region14: #{rnn_forward.4} parent=1 // pred_check
      _
    $region15: #{rnn_forward.4} parent=1 // pred_check_branch
      %35 = sbr.rel (0) target = $region17
    $region16: #{rnn_forward.4} parent=1 // pred_region
      %36 = dma.done [#allocation3], 256
    $region17: #{rnn_forward.4} parent=1 // pred_fallthru
      _
    // Predicated region
    $region18: #{rnn_forward.4} parent=1 // pred_check
      _
    $region19: #{rnn_forward.4} parent=1 // pred_check_branch
      %38 = sbr.rel (0) target = $region21
    $region20: #{rnn_forward.4} parent=1 // pred_region
      %39 = dma.done [#allocation5], 16
    $region21: #{rnn_forward.4} parent=1 // pred_fallthru
      _
    %v40 = vld [vmem:[%s0] sm:$0xff]
    %v41 = vld [vmem:[%s0 + $0x8] sm:$0xff]
    %v42 = vld [vmem:[%s0 + $0x10] sm:$0xff]
    %v43 = vld [vmem:[%s0 + $0x18] sm:$0xff]
    %v44 = vld [vmem:[%s0 + $0x20] sm:$0xff]
    %v45 = vld [vmem:[%s0 + $0x28] sm:$0xff]
    %v46 = vld [vmem:[%s0 + $0x30] sm:$0xff]
    %v47 = vld [vmem:[%s0 + $0x38] sm:$0xff]
    %v48 = vld [vmem:[#allocation2] sm:$0xff]
    %v49 = vld [vmem:[#allocation2 + $0x8] sm:$0xff]
    %v50 = vld [vmem:[#allocation4] sm:$0x1]
    %v52 = vlaneseq
    %v53 = vshrl.u32 %v52, 7
    %v54 = vsub.s32 0, %v53
    %v55 = vrot.slane %v50, %v54
    %vm57 = vcmask 130048
    %v59 = vsel %vm57, %v40, 0
    %v62 = vsel %vm57, %v41, 0
    %v65 = vsel %vm57, %v42, 0
    %v68 = vsel %vm57, %v43, 0
    %v71 = vsel %vm57, %v44, 0
    %v74 = vsel %vm57, %v45, 0
    %v77 = vsel %vm57, %v46, 0
    %v80 = vsel %vm57, %v47, 0
    %82 = vmatprep.subr.mxu0 0.0
    %83 = vmatpush1.msra.mxu0 %v48
    %84 = vmatprep.subr.mxu0 0.0
    %85 = vmatpush1.msra.mxu0 %v49
    %86 = vmatprep.subr.mxu0 0.0
    %87 = vmatpush1.msra.mxu0 0.0
    %88 = vmatprep.subr.mxu0 0.0
    %89 = vmatpush1.msra.mxu0 0.0
    %90 = vmatprep.subr.mxu0 0.0
    %91 = vmatpush1.msra.mxu0 0.0
    %92 = vmatprep.subr.mxu0 0.0
    %93 = vmatpush1.msra.mxu0 0.0
    %94 = vmatprep.subr.mxu0 0.0
    %95 = vmatpush1.msra.mxu0 0.0
    %96 = vmatprep.subr.mxu0 0.0
    %97 = vmatpush1.msra.mxu0 0.0
    %98 = vmatprep.subr.mxu0 0.0
    %99 = vmatpush1.msra.mxu0 0.0
    %100 = vmatprep.subr.mxu0 0.0
    %101 = vmatpush1.msra.mxu0 0.0
    %102 = vmatprep.subr.mxu0 0.0
    %103 = vmatpush1.msra.mxu0 0.0
    %104 = vmatprep.subr.mxu0 0.0
    %105 = vmatpush1.msra.mxu0 0.0
    %106 = vmatprep.subr.mxu0 0.0
    %107 = vmatpush1.msra.mxu0 0.0
    %108 = vmatprep.subr.mxu0 0.0
    %109 = vmatpush1.msra.mxu0 0.0
    %110 = vmatprep.subr.mxu0 0.0
    %111 = vmatpush1.msra.mxu0 0.0
    %112 = vmatprep.subr.mxu0 0.0
    %113 = vmatpush1.msra.mxu0 0.0
    %114 = vmatprep.subr.mxu0 0.0
    %115 = vmatpush1.msra.mxu0 0.0
    %116 = vmatprep.subr.mxu0 0.0
    %117 = vmatpush1.msra.mxu0 0.0
    %118 = vmatprep.subr.mxu0 0.0
    %119 = vmatpush1.msra.mxu0 0.0
    %120 = vmatprep.subr.mxu0 0.0
    %121 = vmatpush1.msra.mxu0 0.0
    %122 = vmatprep.subr.mxu0 0.0
    %123 = vmatpush1.msra.mxu0 0.0
    %124 = vmatprep.subr.mxu0 0.0
    %125 = vmatpush1.msra.mxu0 0.0
    %126 = vmatprep.subr.mxu0 0.0
    %127 = vmatpush1.msra.mxu0 0.0
    %128 = vmatprep.subr.mxu0 0.0
    %129 = vmatpush1.msra.mxu0 0.0
    %130 = vmatprep.subr.mxu0 0.0
    %131 = vmatpush1.msra.mxu0 0.0
    %132 = vmatprep.subr.mxu0 0.0
    %133 = vmatpush1.msra.mxu0 0.0
    %134 = vmatprep.subr.mxu0 0.0
    %135 = vmatpush1.msra.mxu0 0.0
    %136 = vmatprep.subr.mxu0 0.0
    %137 = vmatpush1.msra.mxu0 0.0
    %138 = vmatprep.subr.mxu0 0.0
    %139 = vmatpush1.msra.mxu0 0.0
    %140 = vmatprep.subr.mxu0 0.0
    %141 = vmatpush1.msra.mxu0 0.0
    %142 = vmatprep.subr.mxu0 0.0
    %143 = vmatpush1.msra.mxu0 0.0
    %144 = vmatprep.subr.mxu0 0.0
    %145 = vmatpush1.msra.mxu0 0.0
    %146 = vmatprep.mubr.f32.mxu0 0.0
    %147 = vmatmul.mubr.f32.gmra.mrb[0].mxu0 %v59
    %v148 = vpop.f32.mrb[0].mxu0
    %v149 = vadd.f32 %v55, %v148
    %v150 = vpop.f32.mrb[0].mxu0
    %151 = vmatprep.mubr.f32.mxu0 0.0
    %152 = vmatmul.mubr.f32.gmra.mrb[0].mxu0 %v62
    %v153 = vpop.f32.mrb[0].mxu0
    %v154 = vadd.f32 %v55, %v153
    %v155 = vpop.f32.mrb[0].mxu0
    %156 = vmatprep.mubr.f32.mxu0 0.0
    %157 = vmatmul.mubr.f32.gmra.mrb[0].mxu0 %v65
    %v158 = vpop.f32.mrb[0].mxu0
    %v159 = vadd.f32 %v55, %v158
    %v160 = vpop.f32.mrb[0].mxu0
    %161 = vmatprep.mubr.f32.mxu0 0.0
    %162 = vmatmul.mubr.f32.gmra.mrb[0].mxu0 %v68
    %v163 = vpop.f32.mrb[0].mxu0
    %v164 = vadd.f32 %v55, %v163
    %v165 = vpop.f32.mrb[0].mxu0
    %166 = vmatprep.mubr.f32.mxu0 0.0
    %167 = vmatmul.mubr.f32.gmra.mrb[0].mxu0 %v71
    %v168 = vpop.f32.mrb[0].mxu0
    %v169 = vadd.f32 %v55, %v168
    %v170 = vpop.f32.mrb[0].mxu0
    %171 = vmatprep.mubr.f32.mxu0 0.0
    %172 = vmatmul.mubr.f32.gmra.mrb[0].mxu0 %v74
    %v173 = vpop.f32.mrb[0].mxu0
    %v174 = vadd.f32 %v55, %v173
    %v175 = vpop.f32.mrb[0].mxu0
    %176 = vmatprep.mubr.f32.mxu0 0.0
    %177 = vmatmul.mubr.f32.gmra.mrb[0].mxu0 %v77
    %v178 = vpop.f32.mrb[0].mxu0
    %v179 = vadd.f32 %v55, %v178
    %v180 = vpop.f32.mrb[0].mxu0
    %181 = vmatprep.mubr.f32.mxu0 0.0
    %182 = vmatmul.mubr.f32.gmra.mrb[0].mxu0 %v80
    %v183 = vpop.f32.mrb[0].mxu0
    %v184 = vadd.f32 %v55, %v183
    %v185 = vpop.f32.mrb[0].mxu0
    %186 = vdwg.mxu0
    %v187 = vmax.f32 %v149, 0.0
    %v188 = vmax.f32 %v154, 0.0
    %v189 = vmax.f32 %v159, 0.0
    %v190 = vmax.f32 %v164, 0.0
    %v191 = vmax.f32 %v169, 0.0
    %v192 = vmax.f32 %v174, 0.0
    %v193 = vmax.f32 %v179, 0.0
    %v194 = vmax.f32 %v184, 0.0
    %195 = vst [vmem:[%s3] sm:$0xff] %v187
    %196 = vst [vmem:[%s3 + $0x8] sm:$0xff] %v188
    %197 = vst [vmem:[%s3 + $0x10] sm:$0xff] %v189
    %198 = vst [vmem:[%s3 + $0x18] sm:$0xff] %v190
    %199 = vst [vmem:[%s3 + $0x20] sm:$0xff] %v191
    %200 = vst [vmem:[%s3 + $0x28] sm:$0xff] %v192
    %201 = vst [vmem:[%s3 + $0x30] sm:$0xff] %v193
    %202 = vst [vmem:[%s3 + $0x38] sm:$0xff] %v194
    // Predicated region
    $region22: #{rnn_forward.4} parent=1 // pred_check
      _
    $region23: #{rnn_forward.4} parent=1 // pred_check_branch
      %204 = sbr.rel (0) target = $region25
    $region24: #{rnn_forward.4} parent=1 // pred_region
      _
    $region25: #{rnn_forward.4} parent=1 // pred_fallthru
      _
    // Predicated region
    $region26: #{rnn_forward.4} parent=1 // pred_check
      _
    $region27: #{rnn_forward.4} parent=1 // pred_check_branch
      %206 = sbr.rel (0) target = $region29
    $region28: #{rnn_forward.4} parent=1 // pred_region
      _
    $region29: #{rnn_forward.4} parent=1 // pred_fallthru
      _
    %207 = vsyncpa [#allocation3], 1
    %208 = vsyncpa [#allocation5], 1

// kernel: rnn_forward.7
$region0: #{rnn_forward.7}
  #allocation0 [shape = 'u32[]', space=smem, size = 0x4, offset = 0x4, fixed_abs, tag = 'smem constant byte address 0x4 - core index']
  #allocation1 [shape = 'u32[144,128]{1,0:T(1,128)}', space=vmem, size = 0x12000, scoped, tag = 'internal scratch']
  %s0 = inlined_call_operand.vmem [shape: f32[8,512], index: 0, kind: input, shape index: {}]
  %s1 = inlined_call_operand.vmem [shape: f32[512,128], index: 1, kind: input, shape index: {}]
  %s2 = inlined_call_operand.vmem [shape: f32[1,128], index: 2, kind: input, shape index: {}]
  %s3 = inlined_call_operand.vmem [shape: f32[8,128], index: 3, kind: output, shape index: {}]
  %s4 = sld [smem:[#allocation0]]
  $region22: #{rnn_forward.7} parent=0
    _
  %s6 = ssub.s32 1, %s4
  %s7 = scalar_select 0, %s6, %s4
  // Predicated region
  $region2: #{rnn_forward.7} parent=0 // pred_check
    _
  $region3: #{rnn_forward.7} parent=0 // pred_check_branch
    %9 = sbr.rel (0) target = $region5
  $region4: #{rnn_forward.7} parent=0 // pred_region
    _
  $region5: #{rnn_forward.7} parent=0 // pred_fallthru
    _
  // Predicated region
  $region6: #{rnn_forward.7} parent=0 // pred_check
    _
  $region7: #{rnn_forward.7} parent=0 // pred_check_branch
    %11 = sbr.rel (0) target = $region9
  $region8: #{rnn_forward.7} parent=0 // pred_region
    _
  $region9: #{rnn_forward.7} parent=0 // pred_fallthru
    _
  // Predicated region
  $region10: #{rnn_forward.7} parent=0 // pred_check
    _
  $region11: #{rnn_forward.7} parent=0 // pred_check_branch
    %13 = sbr.rel (0) target = $region13
  $region12: #{rnn_forward.7} parent=0 // pred_region
    _
  $region13: #{rnn_forward.7} parent=0 // pred_fallthru
    _
  %v14 = vld [vmem:[%s0] sm:$0xff]
  %v15 = vld [vmem:[%s0 + $0x8] sm:$0xff]
  %v16 = vld [vmem:[%s0 + $0x10] sm:$0xff]
  %v17 = vld [vmem:[%s0 + $0x18] sm:$0xff]
  %v18 = vld [vmem:[%s1] sm:$0xff]
  %v19 = vld [vmem:[%s1 + $0x8] sm:$0xff]
  %v20 = vld [vmem:[%s1 + $0x10] sm:$0xff]
  %v21 = vld [vmem:[%s1 + $0x18] sm:$0xff]
  %v22 = vld [vmem:[%s1 + $0x20] sm:$0xff]
  %v23 = vld [vmem:[%s1 + $0x28] sm:$0xff]
  %v24 = vld [vmem:[%s1 + $0x30] sm:$0xff]
  %v25 = vld [vmem:[%s1 + $0x38] sm:$0xff]
  %v26 = vld [vmem:[%s1 + $0x40] sm:$0xff]
  %v27 = vld [vmem:[%s1 + $0x48] sm:$0xff]
  %v28 = vld [vmem:[%s1 + $0x50] sm:$0xff]
  %v29 = vld [vmem:[%s1 + $0x58] sm:$0xff]
  %v30 = vld [vmem:[%s1 + $0x60] sm:$0xff]
  %v31 = vld [vmem:[%s1 + $0x68] sm:$0xff]
  %v32 = vld [vmem:[%s1 + $0x70] sm:$0xff]
  %v33 = vld [vmem:[%s1 + $0x78] sm:$0xff]
  %v34 = vld [vmem:[%s1 + $0x80] sm:$0xff]
  %v35 = vld [vmem:[%s1 + $0x88] sm:$0xff]
  %v36 = vld [vmem:[%s1 + $0x90] sm:$0xff]
  %v37 = vld [vmem:[%s1 + $0x98] sm:$0xff]
  %v38 = vld [vmem:[%s1 + $0xa0] sm:$0xff]
  %v39 = vld [vmem:[%s1 + $0xa8] sm:$0xff]
  %v40 = vld [vmem:[%s1 + $0xb0] sm:$0xff]
  %v41 = vld [vmem:[%s1 + $0xb8] sm:$0xff]
  %v42 = vld [vmem:[%s1 + $0xc0] sm:$0xff]
  %v43 = vld [vmem:[%s1 + $0xc8] sm:$0xff]
  %v44 = vld [vmem:[%s1 + $0xd0] sm:$0xff]
  %v45 = vld [vmem:[%s1 + $0xd8] sm:$0xff]
  %v46 = vld [vmem:[%s1 + $0xe0] sm:$0xff]
  %v47 = vld [vmem:[%s1 + $0xe8] sm:$0xff]
  %v48 = vld [vmem:[%s1 + $0xf0] sm:$0xff]
  %v49 = vld [vmem:[%s1 + $0xf8] sm:$0xff]
  %v50 = vld [vmem:[%s1 + $0x100] sm:$0xff]
  %v51 = vld [vmem:[%s1 + $0x108] sm:$0xff]
  %v52 = vld [vmem:[%s1 + $0x110] sm:$0xff]
  %v53 = vld [vmem:[%s1 + $0x118] sm:$0xff]
  %v54 = vld [vmem:[%s1 + $0x120] sm:$0xff]
  %v55 = vld [vmem:[%s1 + $0x128] sm:$0xff]
  %v56 = vld [vmem:[%s1 + $0x130] sm:$0xff]
  %v57 = vld [vmem:[%s1 + $0x138] sm:$0xff]
  %v58 = vld [vmem:[%s1 + $0x140] sm:$0xff]
  %v59 = vld [vmem:[%s1 + $0x148] sm:$0xff]
  %v60 = vld [vmem:[%s1 + $0x150] sm:$0xff]
  %v61 = vld [vmem:[%s1 + $0x158] sm:$0xff]
  %v62 = vld [vmem:[%s1 + $0x160] sm:$0xff]
  %v63 = vld [vmem:[%s1 + $0x168] sm:$0xff]
  %v64 = vld [vmem:[%s1 + $0x170] sm:$0xff]
  %v65 = vld [vmem:[%s1 + $0x178] sm:$0xff]
  %v66 = vld [vmem:[%s1 + $0x180] sm:$0xff]
  %v67 = vld [vmem:[%s1 + $0x188] sm:$0xff]
  %v68 = vld [vmem:[%s1 + $0x190] sm:$0xff]
  %v69 = vld [vmem:[%s1 + $0x198] sm:$0xff]
  %v70 = vld [vmem:[%s1 + $0x1a0] sm:$0xff]
  %v71 = vld [vmem:[%s1 + $0x1a8] sm:$0xff]
  %v72 = vld [vmem:[%s1 + $0x1b0] sm:$0xff]
  %v73 = vld [vmem:[%s1 + $0x1b8] sm:$0xff]
  %v74 = vld [vmem:[%s1 + $0x1c0] sm:$0xff]
  %v75 = vld [vmem:[%s1 + $0x1c8] sm:$0xff]
  %v76 = vld [vmem:[%s1 + $0x1d0] sm:$0xff]
  %v77 = vld [vmem:[%s1 + $0x1d8] sm:$0xff]
  %v78 = vld [vmem:[%s1 + $0x1e0] sm:$0xff]
  %v79 = vld [vmem:[%s1 + $0x1e8] sm:$0xff]
  %v80 = vld [vmem:[%s1 + $0x1f0] sm:$0xff]
  %v81 = vld [vmem:[%s1 + $0x1f8] sm:$0xff]
  %v82 = vld [vmem:[%s2] sm:$0x1]
  %v84 = vlaneseq
  %v85 = vshrl.u32 %v84, 7
  %v86 = vsub.s32 0, %v85
  %v87 = vrot.slane %v82, %v86
  %89 = vmatprep.subr.mxu0 0.0
  %90 = vmatpush1.msra.mxu0 %v18
  %91 = vmatprep.subr.mxu0 0.0
  %92 = vmatpush1.msra.mxu0 %v19
  %93 = vmatprep.subr.mxu0 0.0
  %94 = vmatpush1.msra.mxu0 %v20
  %95 = vmatprep.subr.mxu0 0.0
  %96 = vmatpush1.msra.mxu0 %v21
  %97 = vmatprep.subr.mxu0 0.0
  %98 = vmatpush1.msra.mxu0 %v22
  %99 = vmatprep.subr.mxu0 0.0
  %100 = vmatpush1.msra.mxu0 %v23
  %101 = vmatprep.subr.mxu0 0.0
  %102 = vmatpush1.msra.mxu0 %v24
  %103 = vmatprep.subr.mxu0 0.0
  %104 = vmatpush1.msra.mxu0 %v25
  %105 = vmatprep.subr.mxu0 0.0
  %106 = vmatpush1.msra.mxu0 %v26
  %107 = vmatprep.subr.mxu0 0.0
  %108 = vmatpush1.msra.mxu0 %v27
  %109 = vmatprep.subr.mxu0 0.0
  %110 = vmatpush1.msra.mxu0 %v28
  %111 = vmatprep.subr.mxu0 0.0
  %112 = vmatpush1.msra.mxu0 %v29
  %113 = vmatprep.subr.mxu0 0.0
  %114 = vmatpush1.msra.mxu0 %v30
  %115 = vmatprep.subr.mxu0 0.0
  %116 = vmatpush1.msra.mxu0 %v31
  %117 = vmatprep.subr.mxu0 0.0
  %118 = vmatpush1.msra.mxu0 %v32
  %119 = vmatprep.subr.mxu0 0.0
  %120 = vmatpush1.msra.mxu0 %v33
  %121 = vmatprep.subr.mxu0 0.0
  %122 = vmatpush1.msra.mxu0 %v34
  %123 = vmatprep.subr.mxu0 0.0
  %124 = vmatpush1.msra.mxu0 %v35
  %125 = vmatprep.subr.mxu0 0.0
  %126 = vmatpush1.msra.mxu0 %v36
  %127 = vmatprep.subr.mxu0 0.0
  %128 = vmatpush1.msra.mxu0 %v37
  %129 = vmatprep.subr.mxu0 0.0
  %130 = vmatpush1.msra.mxu0 %v38
  %131 = vmatprep.subr.mxu0 0.0
  %132 = vmatpush1.msra.mxu0 %v39
  %133 = vmatprep.subr.mxu0 0.0
  %134 = vmatpush1.msra.mxu0 %v40
  %135 = vmatprep.subr.mxu0 0.0
  %136 = vmatpush1.msra.mxu0 %v41
  %137 = vmatprep.subr.mxu0 0.0
  %138 = vmatpush1.msra.mxu0 %v42
  %139 = vmatprep.subr.mxu0 0.0
  %140 = vmatpush1.msra.mxu0 %v43
  %141 = vmatprep.subr.mxu0 0.0
  %142 = vmatpush1.msra.mxu0 %v44
  %143 = vmatprep.subr.mxu0 0.0
  %144 = vmatpush1.msra.mxu0 %v45
  %145 = vmatprep.subr.mxu0 0.0
  %146 = vmatpush1.msra.mxu0 %v46
  %147 = vmatprep.subr.mxu0 0.0
  %148 = vmatpush1.msra.mxu0 %v47
  %149 = vmatprep.subr.mxu0 0.0
  %150 = vmatpush1.msra.mxu0 %v48
  %151 = vmatprep.subr.mxu0 0.0
  %152 = vmatpush1.msra.mxu0 %v49
  %153 = vmatprep.mubr.f32.mxu0 %v15
  %154 = vmatmul.mubr.f32.gmra.mrb[0].mxu0 %v14
  %v155 = vpop.f32.mrb[0].mxu0
  %v156 = vadd.f32 %v87, %v155
  %v157 = vpop.f32.mrb[0].mxu0
  %158 = vdwg.mxu0
  %159 = vmatprep.subr.mxu0 0.0
  %160 = vmatpush1.msra.mxu0 %v50
  %161 = vmatprep.subr.mxu0 0.0
  %162 = vmatpush1.msra.mxu0 %v51
  %163 = vmatprep.subr.mxu0 0.0
  %164 = vmatpush1.msra.mxu0 %v52
  %165 = vmatprep.subr.mxu0 0.0
  %166 = vmatpush1.msra.mxu0 %v53
  %167 = vmatprep.subr.mxu0 0.0
  %168 = vmatpush1.msra.mxu0 %v54
  %169 = vmatprep.subr.mxu0 0.0
  %170 = vmatpush1.msra.mxu0 %v55
  %171 = vmatprep.subr.mxu0 0.0
  %172 = vmatpush1.msra.mxu0 %v56
  %173 = vmatprep.subr.mxu0 0.0
  %174 = vmatpush1.msra.mxu0 %v57
  %175 = vmatprep.subr.mxu0 0.0
  %176 = vmatpush1.msra.mxu0 %v58
  %177 = vmatprep.subr.mxu0 0.0
  %178 = vmatpush1.msra.mxu0 %v59
  %179 = vmatprep.subr.mxu0 0.0
  %180 = vmatpush1.msra.mxu0 %v60
  %181 = vmatprep.subr.mxu0 0.0
  %182 = vmatpush1.msra.mxu0 %v61
  %183 = vmatprep.subr.mxu0 0.0
  %184 = vmatpush1.msra.mxu0 %v62
  %185 = vmatprep.subr.mxu0 0.0
  %186 = vmatpush1.msra.mxu0 %v63
  %187 = vmatprep.subr.mxu0 0.0
  %188 = vmatpush1.msra.mxu0 %v64
  %189 = vmatprep.subr.mxu0 0.0
  %190 = vmatpush1.msra.mxu0 %v65
  %191 = vmatprep.subr.mxu0 0.0
  %192 = vmatpush1.msra.mxu0 %v66
  %193 = vmatprep.subr.mxu0 0.0
  %194 = vmatpush1.msra.mxu0 %v67
  %195 = vmatprep.subr.mxu0 0.0
  %196 = vmatpush1.msra.mxu0 %v68
  %197 = vmatprep.subr.mxu0 0.0
  %198 = vmatpush1.msra.mxu0 %v69
  %199 = vmatprep.subr.mxu0 0.0
  %200 = vmatpush1.msra.mxu0 %v70
  %201 = vmatprep.subr.mxu0 0.0
  %202 = vmatpush1.msra.mxu0 %v71
  %203 = vmatprep.subr.mxu0 0.0
  %204 = vmatpush1.msra.mxu0 %v72
  %205 = vmatprep.subr.mxu0 0.0
  %206 = vmatpush1.msra.mxu0 %v73
  %207 = vmatprep.subr.mxu0 0.0
  %208 = vmatpush1.msra.mxu0 %v74
  %209 = vmatprep.subr.mxu0 0.0
  %210 = vmatpush1.msra.mxu0 %v75
  %211 = vmatprep.subr.mxu0 0.0
  %212 = vmatpush1.msra.mxu0 %v76
  %213 = vmatprep.subr.mxu0 0.0
  %214 = vmatpush1.msra.mxu0 %v77
  %215 = vmatprep.subr.mxu0 0.0
  %216 = vmatpush1.msra.mxu0 %v78
  %217 = vmatprep.subr.mxu0 0.0
  %218 = vmatpush1.msra.mxu0 %v79
  %219 = vmatprep.subr.mxu0 0.0
  %220 = vmatpush1.msra.mxu0 %v80
  %221 = vmatprep.subr.mxu0 0.0
  %222 = vmatpush1.msra.mxu0 %v81
  %223 = vmatprep.mubr.f32.mxu0 %v17
  %224 = vmatmul.mubr.f32.gmra.mrb[0].mxu0 %v16
  %v225 = vpop.f32.mrb[0].mxu0
  %v226 = vadd.f32 %v156, %v225
  %v227 = vpop.f32.mrb[0].mxu0
  %228 = vdwg.mxu0
  %229 = vst [vmem:[%s3] sm:$0xff] %v226
  // Predicated region
  $region14: #{rnn_forward.7} parent=0 // pred_check
    _
  $region15: #{rnn_forward.7} parent=0 // pred_check_branch
    %231 = sbr.rel (0) target = $region17
  $region16: #{rnn_forward.7} parent=0 // pred_region
    _
  $region17: #{rnn_forward.7} parent=0 // pred_fallthru
    _
  // Predicated region
  $region18: #{rnn_forward.7} parent=0 // pred_check
    _
  $region19: #{rnn_forward.7} parent=0 // pred_check_branch
    %233 = sbr.rel (0) target = $region21
  $region20: #{rnn_forward.7} parent=0 // pred_region
    _
  $region21: #{rnn_forward.7} parent=0 // pred_fallthru
    _

// kernel: rnn_forward.5
$region0: #{rnn_forward.5}
  #allocation0 [shape = 'u32[]', space=smem, size = 0x4, offset = 0x4, fixed_abs, tag = 'smem constant byte address 0x4 - core index']
  #allocation1 [shape = 'u32[144,128]{1,0:T(1,128)}', space=vmem, size = 0x12000, scoped, tag = 'internal scratch']
  #allocation2 [shape = 'f32[2,8,8,128]{3,2,1,0:T(8,128)}', space=vmem, size = 0x10000, scoped, tag = 'scratch operand']
  #allocation3 [shape = 'f32[8,8,768]{2,1,0:T(8,128)}', space=vmem, size = 0x30000, scoped, tag = 'scratch operand']
  #allocation4 [shape = 'f32[16,8,256]{2,1,0:T(8,128)}', space=vmem, size = 0x20000, scoped, tag = 'scratch operand']
  #allocation5 [shape = 'f32[8,256]{1,0:T(8,128)}', space=vmem, size = 0x2000, scoped, tag = 'scratch operand']
  #allocation6 [shape = 's32[2]{0}', space=sflag, size = 0x8, scoped, tag = 'scratch operand']
  #allocation7 [shape = 's32[2]{0}', space=sflag, size = 0x8, scoped, tag = 'scratch operand']
  #allocation17 [shape = 's32[]', space=sflag, size = 0x4, offset = 0, fixed_abs, tag = 'sflag constant byte address 0x0 - dummy sync flag']
  #allocation18 [shape = 's32[]', space=sflag, size = 0x4, offset = 0, fixed_abs, tag = 'sflag constant byte address 0x0 - dummy sync flag']
  %s0 = inlined_call_operand.vmem [shape: s32[8,1], index: 0, kind: input, shape index: {}]
  %s1 = inlined_call_operand.vmem [shape: f32[8,8,128], index: 1, kind: input, shape index: {}]
  %s2 = inlined_call_operand.hbm [shape: f32[2,128,768], index: 2, kind: input, shape index: {}]
  %s3 = inlined_call_operand.hbm [shape: f32[2,1,768], index: 3, kind: input, shape index: {}]
  %s4 = inlined_call_operand.hbm [shape: f32[2,256,768], index: 4, kind: input, shape index: {}]
  %s5 = inlined_call_operand.hbm [shape: f32[2,1,256], index: 5, kind: input, shape index: {}]
  %s6 = inlined_call_operand.vmem [shape: f32[16,8,256], index: 6, kind: output, shape index: {0}]
  %s7 = inlined_call_operand.hbm [shape: f32[2,8,256], index: 7, kind: output, shape index: {1}]
  %8 = xla_tuple %s6, %s7
  %s9 = sld [smem:[#allocation0]]
  $region144: #{rnn_forward.5} parent=0
    _
  %s11 = ssub.s32 1, %s9
  %s12 = scalar_select 0, %s11, %s9
  $region1: #{rnn_forward.5} parent=0
    #allocation8 [shape = 'u8[786432]{0}', space=vmem, size = 0xc0000, scoped, tag = 'input window, operand 2']
    #allocation9 [shape = 's32[2]{0}', space=sflag, size = 0x8, scoped, tag = 'scoped memory for rnn_forward.5']
    #allocation10 [shape = 's32[2]{0}', space=sflag, size = 0x8, scoped, tag = 'scoped memory for rnn_forward.5']
    #allocation11 [shape = 'u8[6144]{0}', space=vmem, size = 0x1800, scoped, tag = 'input window, operand 3']
    #allocation12 [shape = 's32[2]{0}', space=sflag, size = 0x8, scoped, tag = 'scoped memory for rnn_forward.5']
    #allocation13 [shape = 'u8[1572864]{0}', space=vmem, size = 0x180000, scoped, tag = 'input window, operand 4']
    #allocation14 [shape = 'u8[2048]{0}', space=vmem, size = 0x800, scoped, tag = 'input window, operand 5']
    #allocation15 [shape = 's32[2]{0}', space=sflag, size = 0x8, scoped, tag = 'scoped memory for rnn_forward.5']
    #allocation16 [shape = 'u8[16384]{0}', space=vmem, size = 0x4000, scoped, tag = 'output window, operand 1']
    %13 = vsyncpa [#allocation9], 0
    %s14 = scalar_lea.sflag [#allocation9], 1
    %15 = vsyncpa %s14, 0
    %16 = vsyncpa [#allocation12], 0
    %s17 = scalar_lea.sflag [#allocation12], 1
    %18 = vsyncpa %s17, 0
    %19 = vsyncpa [#allocation15], 0
    %s20 = scalar_lea.sflag [#allocation15], 1
    %21 = vsyncpa %s20, 0
    %22 = vsyncpa [#allocation10], 0
    %s23 = scalar_lea.sflag [#allocation10], 1
    %24 = vsyncpa %s23, 0
    loop: start=0, step=1, limit=4
    $region2: #{rnn_forward.5} parent=1 // loop_pre_header
      _
    $region3: #{rnn_forward.5} parent=1 // loop_header
      %s26 = sphi 0, %s30
      %p27 = scmp.ge.s32.totalorder %s26, 4
      %s34 = sphi 0, %s34
      %s36 = sphi 0, %s34
      %s37 = sphi 0, %s36
      %s51 = sphi 0, %s37
      %s57 = sphi 0, %s59
      %s60 = sphi 0, %s57
      %s61 = sphi 0, %s60
      %s77 = sphi 0, %s61
      %s83 = sphi 0, %s85
      %s86 = sphi 0, %s83
      %s87 = sphi 0, %s86
      %s103 = sphi 0, %s87
      %s109 = sphi 0, %s111
      %s112 = sphi 0, %s109
      %s113 = sphi 0, %s112
      %s129 = sphi 0, %s113
      %s135 = sphi 0, %s137
      %s138 = sphi 0, %s135
      %s139 = sphi 0, %s138
      %s155 = sphi 0, %s139
      %s161 = sphi 0, %s163
      %s164 = sphi 0, %s161
      %s165 = sphi 0, %s164
      %s181 = sphi 0, %s165
    $region4: #{rnn_forward.5} parent=1 // loop_header_branch
      %29 = sbr.rel (%p27) target = $region8
    $region5: #{rnn_forward.5} parent=1 // loop_body
      %s31 = ssub.s32 %s26, 1
      %s32 = ssub.s32 %s26, 2
      %s33 = sadd.s32 %s26, 1
      %s35 = sadd.s32 %s34, 1
      %p38 = scmp.eq.s32.totalorder %s26, 1
      %p39 = scmp.ne.s32.totalorder %s34, %s36
      %p40 = scmp.eq.s32.totalorder %s26, 0
      %p41 = por %p39, %p40
      %p42 = scmp.ne.s32.totalorder %s34, %s36
      %p43 = scmp.eq.s32.totalorder %s31, 1
      %p44 = por %p42, %p43
      %p45 = scmp.ne.s32.totalorder %s36, %s37
      %p46 = scmp.eq.s32.totalorder %s31, 0
      %p47 = por %p45, %p46
      %p48 = scmp.ne.s32.totalorder %s36, %s37
      %p49 = scmp.eq.s32.totalorder %s32, 1
      %p50 = por %p48, %p49
      %p52 = scmp.ne.s32.totalorder %s37, %s51
      %p53 = scmp.eq.s32.totalorder %s32, 0
      %p54 = por %p52, %p53
      %s55 = ssub.s32 %s26, %s33
      %p56 = scmp.eq.s32.totalorder %s55, 0
      %s58 = sadd.s32 %s57, 1
      %s59 = scalar_select %p56, %s57, %s58
      %p62 = pneg %p56
      %p63 = scmp.eq.s32.totalorder %s26, 1
      %p64 = por %p62, %p63
      %p65 = scmp.ne.s32.totalorder %s57, %s60
      %p66 = scmp.eq.s32.totalorder %s26, 0
      %p67 = por %p65, %p66
      %p68 = scmp.ne.s32.totalorder %s57, %s60
      %p69 = scmp.eq.s32.totalorder %s31, 1
      %p70 = por %p68, %p69
      %p71 = scmp.ne.s32.totalorder %s60, %s61
      %p72 = scmp.eq.s32.totalorder %s31, 0
      %p73 = por %p71, %p72
      %p74 = scmp.ne.s32.totalorder %s60, %s61
      %p75 = scmp.eq.s32.totalorder %s32, 1
      %p76 = por %p74, %p75
      %p78 = scmp.ne.s32.totalorder %s61, %s77
      %p79 = scmp.eq.s32.totalorder %s32, 0
      %p80 = por %p78, %p79
      %s81 = ssub.s32 %s26, %s33
      %p82 = scmp.eq.s32.totalorder %s81, 0
      %s84 = sadd.s32 %s83, 1
      %s85 = scalar_select %p82, %s83, %s84
      %p88 = pneg %p82
      %p89 = scmp.eq.s32.totalorder %s26, 1
      %p90 = por %p88, %p89
      %p91 = scmp.ne.s32.totalorder %s83, %s86
      %p92 = scmp.eq.s32.totalorder %s26, 0
      %p93 = por %p91, %p92
      %p94 = scmp.ne.s32.totalorder %s83, %s86
      %p95 = scmp.eq.s32.totalorder %s31, 1
      %p96 = por %p94, %p95
      %p97 = scmp.ne.s32.totalorder %s86, %s87
      %p98 = scmp.eq.s32.totalorder %s31, 0
      %p99 = por %p97, %p98
      %p100 = scmp.ne.s32.totalorder %s86, %s87
      %p101 = scmp.eq.s32.totalorder %s32, 1
      %p102 = por %p100, %p101
      %p104 = scmp.ne.s32.totalorder %s87, %s103
      %p105 = scmp.eq.s32.totalorder %s32, 0
      %p106 = por %p104, %p105
      %s107 = ssub.s32 %s26, %s33
      %p108 = scmp.eq.s32.totalorder %s107, 0
      %s110 = sadd.s32 %s109, 1
      %s111 = scalar_select %p108, %s109, %s110
      %p114 = pneg %p108
      %p115 = scmp.eq.s32.totalorder %s26, 1
      %p116 = por %p114, %p115
      %p117 = scmp.ne.s32.totalorder %s109, %s112
      %p118 = scmp.eq.s32.totalorder %s26, 0
      %p119 = por %p117, %p118
      %p120 = scmp.ne.s32.totalorder %s109, %s112
      %p121 = scmp.eq.s32.totalorder %s31, 1
      %p122 = por %p120, %p121
      %p123 = scmp.ne.s32.totalorder %s112, %s113
      %p124 = scmp.eq.s32.totalorder %s31, 0
      %p125 = por %p123, %p124
      %p126 = scmp.ne.s32.totalorder %s112, %s113
      %p127 = scmp.eq.s32.totalorder %s32, 1
      %p128 = por %p126, %p127
      %p130 = scmp.ne.s32.totalorder %s113, %s129
      %p131 = scmp.eq.s32.totalorder %s32, 0
      %p132 = por %p130, %p131
      %s133 = ssub.s32 %s26, %s33
      %p134 = scmp.eq.s32.totalorder %s133, 0
      %s136 = sadd.s32 %s135, 1
      %s137 = scalar_select %p134, %s135, %s136
      %p140 = pneg %p134
      %p141 = scmp.eq.s32.totalorder %s26, 1
      %p142 = por %p140, %p141
      %p143 = scmp.ne.s32.totalorder %s135, %s138
      %p144 = scmp.eq.s32.totalorder %s26, 0
      %p145 = por %p143, %p144
      %p146 = scmp.ne.s32.totalorder %s135, %s138
      %p147 = scmp.eq.s32.totalorder %s31, 1
      %p148 = por %p146, %p147
      %p149 = scmp.ne.s32.totalorder %s138, %s139
      %p150 = scmp.eq.s32.totalorder %s31, 0
      %p151 = por %p149, %p150
      %p152 = scmp.ne.s32.totalorder %s138, %s139
      %p153 = scmp.eq.s32.totalorder %s32, 1
      %p154 = por %p152, %p153
      %p156 = scmp.ne.s32.totalorder %s139, %s155
      %p157 = scmp.eq.s32.totalorder %s32, 0
      %p158 = por %p156, %p157
      %s159 = ssub.s32 %s26, %s33
      %p160 = scmp.eq.s32.totalorder %s159, 0
      %s162 = sadd.s32 %s161, 1
      %s163 = scalar_select %p160, %s161, %s162
      %p166 = pneg %p160
      %p167 = scmp.eq.s32.totalorder %s26, 1
      %p168 = por %p166, %p167
      %p169 = scmp.ne.s32.totalorder %s161, %s164
      %p170 = scmp.eq.s32.totalorder %s26, 0
      %p171 = por %p169, %p170
      %p172 = scmp.ne.s32.totalorder %s161, %s164
      %p173 = scmp.eq.s32.totalorder %s31, 1
      %p174 = por %p172, %p173
      %p175 = scmp.ne.s32.totalorder %s164, %s165
      %p176 = scmp.eq.s32.totalorder %s31, 0
      %p177 = por %p175, %p176
      %p178 = scmp.ne.s32.totalorder %s164, %s165
      %p179 = scmp.eq.s32.totalorder %s32, 1
      %p180 = por %p178, %p179
      %p182 = scmp.ne.s32.totalorder %s165, %s181
      %p183 = scmp.eq.s32.totalorder %s32, 0
      %p184 = por %p182, %p183
      %p185 = scmp.le.s32.totalorder 1, %s26
      %p186 = scmp.lt.s32.totalorder %s26, 3
      %p187 = pnand %p185, %p186
      %p188 = pneg %p187
      // Predicated region
      $region9: #{rnn_forward.5} parent=5 // pred_check
        _
      $region10: #{rnn_forward.5} parent=5 // pred_check_branch
        %190 = sbr.rel (%p187) target = $region12
      $region11: #{rnn_forward.5} parent=5 // pred_region
        %s191 = ssub.s32 %s26, 1
        // Predicated region
        $region13: #{rnn_forward.5} parent=11 // pred_check
          %p192 = pneg %p47
        $region14: #{rnn_forward.5} parent=11 // pred_check_branch
          %194 = sbr.rel (%p192) target = $region16
        $region15: #{rnn_forward.5} parent=11 // pred_region
          _
        $region16: #{rnn_forward.5} parent=11 // pred_fallthru
          _
      $region12: #{rnn_forward.5} parent=5 // pred_fallthru
        _
      %p195 = scmp.lt.s32.totalorder %s26, 2
      // Predicated region
      $region17: #{rnn_forward.5} parent=5 // pred_check
        %p196 = pneg %p195
      $region18: #{rnn_forward.5} parent=5 // pred_check_branch
        %198 = sbr.rel (%p196) target = $region20
      $region19: #{rnn_forward.5} parent=5 // pred_region
        // Predicated region
        $region21: #{rnn_forward.5} parent=19 // pred_check
          %p199 = pneg %p67
        $region22: #{rnn_forward.5} parent=19 // pred_check_branch
          %201 = sbr.rel (%p199) target = $region24
        $region23: #{rnn_forward.5} parent=19 // pred_region
          %s202 = sand.u32 %s57, 1
          %s203 = scalar_lea.sflag [#allocation9], %s202
          %s204 = sand.u32 %s57, 1
          %s205 = smul.addr %s204, 768
          %s206 = scalar_lea.vmem [#allocation8], %s205
          %s208 = ssub.s32 12288, 12288
          %209 = vsyncadd %s203, %s208
          %s210 = smul.addr %s26, 96
          %s211 = smul.addr %s210, 128
          %s212 = scalar_lea.hbm %s2, %s211
          %s213 = sshll.u32 %s206, 4
          %s214 = int_to_ptr.vmem [resolvable:$true] %s213
          %219 = dma.hbm_to_vmem [thread:$0]  %s212, 12288, %s214, %s203, 768, 768, 48
        $region24: #{rnn_forward.5} parent=19 // pred_fallthru
          _
        // Predicated region
        $region25: #{rnn_forward.5} parent=19 // pred_check
          %p220 = pneg %p93
        $region26: #{rnn_forward.5} parent=19 // pred_check_branch
          %222 = sbr.rel (%p220) target = $region28
        $region27: #{rnn_forward.5} parent=19 // pred_region
          %s223 = sand.u32 %s26, 1
          %s224 = scalar_lea.sflag [#allocation12], %s223
          %s225 = sand.u32 %s83, 1
          %s226 = smul.addr %s225, 6
          %s227 = scalar_lea.vmem [#allocation11], %s226
          %s229 = ssub.s32 96, 96
          %230 = vsyncadd %s224, %s229
          %s231 = smul.addr %s26, 6
          %s232 = smul.addr %s231, 16
          %s233 = scalar_lea.hbm %s3, %s232
          %s235 = sshll.u32 %s227, 4
          %s236 = int_to_ptr.vmem [resolvable:$true] %s235
          %238 = dma.hbm_to_vmem [thread:$0]  %s233, 96, %s236, %s224
        $region28: #{rnn_forward.5} parent=19 // pred_fallthru
          _
        // Predicated region
        $region29: #{rnn_forward.5} parent=19 // pred_check
          %p239 = pneg %p119
        $region30: #{rnn_forward.5} parent=19 // pred_check_branch
          %241 = sbr.rel (%p239) target = $region32
        $region31: #{rnn_forward.5} parent=19 // pred_region
          %s242 = sand.u32 %s26, 1
          %s243 = scalar_lea.sflag [#allocation12], %s242
          %s244 = sand.u32 %s109, 1
          %s245 = smul.addr %s244, 1536
          %s246 = scalar_lea.vmem [#allocation13], %s245
          %s248 = ssub.s32 24576, 24576
          %249 = vsyncadd %s243, %s248
          %s250 = smul.addr %s26, 192
          %s251 = smul.addr %s250, 128
          %s252 = scalar_lea.hbm %s4, %s251
          %s253 = sshll.u32 %s246, 4
          %s254 = int_to_ptr.vmem [resolvable:$true] %s253
          %259 = dma.hbm_to_vmem [thread:$0]  %s252, 24576, %s254, %s243, 768, 768, 48
        $region32: #{rnn_forward.5} parent=19 // pred_fallthru
          _
        // Predicated region
        $region33: #{rnn_forward.5} parent=19 // pred_check
          %p260 = pneg %p145
        $region34: #{rnn_forward.5} parent=19 // pred_check_branch
          %262 = sbr.rel (%p260) target = $region36
        $region35: #{rnn_forward.5} parent=19 // pred_region
          %s263 = sand.u32 %s135, 1
          %s264 = scalar_lea.sflag [#allocation15], %s263
          %s265 = sand.u32 %s135, 1
          %s266 = smul.addr %s265, 2
          %s267 = scalar_lea.vmem [#allocation14], %s266
          %s269 = ssub.s32 32, 32
          %270 = vsyncadd %s264, %s269
          %s271 = smul.addr %s26, 2
          %s272 = smul.addr %s271, 16
          %s273 = scalar_lea.hbm %s5, %s272
          %s275 = sshll.u32 %s267, 4
          %s276 = int_to_ptr.vmem [resolvable:$true] %s275
          %278 = dma.hbm_to_vmem [thread:$0]  %s273, 32, %s276, %s264
        $region36: #{rnn_forward.5} parent=19 // pred_fallthru
          _
      $region20: #{rnn_forward.5} parent=5 // pred_fallthru
        _
      %p279 = scmp.le.s32.totalorder 1, %s26
      %p280 = scmp.lt.s32.totalorder %s26, 3
      %p281 = pnand %p279, %p280
      %p282 = pneg %p281
      // Predicated region
      $region37: #{rnn_forward.5} parent=5 // pred_check
        _
      $region38: #{rnn_forward.5} parent=5 // pred_check_branch
        %284 = sbr.rel (%p281) target = $region40
      $region39: #{rnn_forward.5} parent=5 // pred_region
        %s285 = ssub.s32 %s26, 1
        %s286 = sand.u32 %s60, 1
        %s287 = scalar_lea.sflag [#allocation9], %s286
        %s288 = sand.u32 %s60, 1
        %s289 = smul.addr %s288, 768
        %s290 = scalar_lea.vmem [#allocation8], %s289
        // Predicated region
        $region41: #{rnn_forward.5} parent=39 // pred_check
          %p291 = pneg %p73
        $region42: #{rnn_forward.5} parent=39 // pred_check_branch
          %293 = sbr.rel (%p291) target = $region44
        $region43: #{rnn_forward.5} parent=39 // pred_region
          %294 = dma.done %s287, 12288
        $region44: #{rnn_forward.5} parent=39 // pred_fallthru
          _
        %s295 = sand.u32 %s31, 1
        %s296 = scalar_lea.sflag [#allocation12], %s295
        %s297 = sand.u32 %s86, 1
        %s298 = smul.addr %s297, 6
        %s299 = scalar_lea.vmem [#allocation11], %s298
        // Predicated region
        $region45: #{rnn_forward.5} parent=39 // pred_check
          %p300 = pneg %p99
        $region46: #{rnn_forward.5} parent=39 // pred_check_branch
          %302 = sbr.rel (%p300) target = $region48
        $region47: #{rnn_forward.5} parent=39 // pred_region
          %303 = dma.done %s296, 96
        $region48: #{rnn_forward.5} parent=39 // pred_fallthru
          _
        %s304 = sand.u32 %s31, 1
        %s305 = scalar_lea.sflag [#allocation12], %s304
        %s306 = sand.u32 %s112, 1
        %s307 = smul.addr %s306, 1536
        %s308 = scalar_lea.vmem [#allocation13], %s307
        // Predicated region
        $region49: #{rnn_forward.5} parent=39 // pred_check
          %p309 = pneg %p125
        $region50: #{rnn_forward.5} parent=39 // pred_check_branch
          %311 = sbr.rel (%p309) target = $region52
        $region51: #{rnn_forward.5} parent=39 // pred_region
          %312 = dma.done %s305, 24576
        $region52: #{rnn_forward.5} parent=39 // pred_fallthru
          _
        %s313 = sand.u32 %s138, 1
        %s314 = scalar_lea.sflag [#allocation15], %s313
        %s315 = sand.u32 %s138, 1
        %s316 = smul.addr %s315, 2
        %s317 = scalar_lea.vmem [#allocation14], %s316
        // Predicated region
        $region53: #{rnn_forward.5} parent=39 // pred_check
          %p318 = pneg %p151
        $region54: #{rnn_forward.5} parent=39 // pred_check_branch
          %320 = sbr.rel (%p318) target = $region56
        $region55: #{rnn_forward.5} parent=39 // pred_region
          %321 = dma.done %s314, 32
        $region56: #{rnn_forward.5} parent=39 // pred_fallthru
          _
        %p322 = pneg %p47
        %p323 = pneg %p44
        %s324 = sand.u32 %s60, 1
        %s325 = scalar_lea.sflag [#allocation9], %s324
        %s326 = sand.u32 %s60, 1
        %s327 = smul.addr %s326, 768
        %s328 = scalar_lea.vmem [#allocation8], %s327
        %p329 = pneg %p73
        %p330 = pneg %p70
        %s331 = sand.u32 %s31, 1
        %s332 = scalar_lea.sflag [#allocation12], %s331
        %s333 = sand.u32 %s86, 1
        %s334 = smul.addr %s333, 6
        %s335 = scalar_lea.vmem [#allocation11], %s334
        %p336 = pneg %p99
        %p337 = pneg %p96
        %s338 = sand.u32 %s31, 1
        %s339 = scalar_lea.sflag [#allocation12], %s338
        %s340 = sand.u32 %s112, 1
        %s341 = smul.addr %s340, 1536
        %s342 = scalar_lea.vmem [#allocation13], %s341
        %p343 = pneg %p125
        %p344 = pneg %p122
        %s345 = sand.u32 %s138, 1
        %s346 = scalar_lea.sflag [#allocation15], %s345
        %s347 = sand.u32 %s138, 1
        %s348 = smul.addr %s347, 2
        %s349 = scalar_lea.vmem [#allocation14], %s348
        %p350 = pneg %p151
        %p351 = pneg %p148
        %p352 = pneg %p177
        %p353 = pneg %p174
        %s354 = sand.u32 %s164, 1
        %s355 = scalar_lea.sflag [#allocation10], %s354
        %s356 = sand.u32 %s164, 1
        %s357 = smul.addr %s356, 16
        %s358 = scalar_lea.vmem [#allocation16], %s357
        %v359 = vld [vmem:[%s0] sm:$0xff]
        %v360 = vsub.s32 %v359, 1
        %v361 = vld [vmem:[%s299] sm:$0x3f]
        %v362 = vld [vmem:[%s317] sm:$0x3]
        %v363 = vld [vmem:[%s308] sm:$0xff]
        %v364 = vld [vmem:[%s308 + $0x8] sm:$0xff]
        %v365 = vld [vmem:[%s308 + $0x10] sm:$0xff]
        %v366 = vld [vmem:[%s308 + $0x18] sm:$0xff]
        %v367 = vld [vmem:[%s308 + $0x20] sm:$0xff]
        %v368 = vld [vmem:[%s308 + $0x28] sm:$0xff]
        %v369 = vld [vmem:[%s308 + $0x30] sm:$0xff]
        %v370 = vld [vmem:[%s308 + $0x38] sm:$0xff]
        %v371 = vld [vmem:[%s308 + $0x40] sm:$0xff]
        %v372 = vld [vmem:[%s308 + $0x48] sm:$0xff]
        %v373 = vld [vmem:[%s308 + $0x50] sm:$0xff]
        %v374 = vld [vmem:[%s308 + $0x58] sm:$0xff]
        %v375 = vld [vmem:[%s308 + $0x60] sm:$0xff]
        %v376 = vld [vmem:[%s308 + $0x68] sm:$0xff]
        %v377 = vld [vmem:[%s308 + $0x70] sm:$0xff]
        %v378 = vld [vmem:[%s308 + $0x78] sm:$0xff]
        %v379 = vld [vmem:[%s308 + $0x80] sm:$0xff]
        %v380 = vld [vmem:[%s308 + $0x88] sm:$0xff]
        %v381 = vld [vmem:[%s308 + $0x90] sm:$0xff]
        %v382 = vld [vmem:[%s308 + $0x98] sm:$0xff]
        %v383 = vld [vmem:[%s308 + $0xa0] sm:$0xff]
        %v384 = vld [vmem:[%s308 + $0xa8] sm:$0xff]
        %v385 = vld [vmem:[%s308 + $0xb0] sm:$0xff]
        %v386 = vld [vmem:[%s308 + $0xb8] sm:$0xff]
        %v387 = vld [vmem:[%s308 + $0xc0] sm:$0xff]
        %v388 = vld [vmem:[%s308 + $0xc8] sm:$0xff]
        %v389 = vld [vmem:[%s308 + $0xd0] sm:$0xff]
        %v390 = vld [vmem:[%s308 + $0xd8] sm:$0xff]
        %v391 = vld [vmem:[%s308 + $0xe0] sm:$0xff]
        %v392 = vld [vmem:[%s308 + $0xe8] sm:$0xff]
        %v393 = vld [vmem:[%s308 + $0xf0] sm:$0xff]
        %v394 = vld [vmem:[%s308 + $0xf8] sm:$0xff]
        %v395 = vld [vmem:[%s308 + $0x100] sm:$0xff]
        %v396 = vld [vmem:[%s308 + $0x108] sm:$0xff]
        %v397 = vld [vmem:[%s308 + $0x110] sm:$0xff]
        %v398 = vld [vmem:[%s308 + $0x118] sm:$0xff]
        %v399 = vld [vmem:[%s308 + $0x120] sm:$0xff]
        %v400 = vld [vmem:[%s308 + $0x128] sm:$0xff]
        %v401 = vld [vmem:[%s308 + $0x130] sm:$0xff]
        %v402 = vld [vmem:[%s308 + $0x138] sm:$0xff]
        %v403 = vld [vmem:[%s308 + $0x140] sm:$0xff]
        %v404 = vld [vmem:[%s308 + $0x148] sm:$0xff]
        %v405 = vld [vmem:[%s308 + $0x150] sm:$0xff]
        %v406 = vld [vmem:[%s308 + $0x158] sm:$0xff]
        %v407 = vld [vmem:[%s308 + $0x160] sm:$0xff]
        %v408 = vld [vmem:[%s308 + $0x168] sm:$0xff]
        %v409 = vld [vmem:[%s308 + $0x170] sm:$0xff]
        %v410 = vld [vmem:[%s308 + $0x178] sm:$0xff]
        %v411 = vld [vmem:[%s308 + $0x180] sm:$0xff]
        %v412 = vld [vmem:[%s308 + $0x188] sm:$0xff]
        %v413 = vld [vmem:[%s308 + $0x190] sm:$0xff]
        %v414 = vld [vmem:[%s308 + $0x198] sm:$0xff]
        %v415 = vld [vmem:[%s308 + $0x1a0] sm:$0xff]
        %v416 = vld [vmem:[%s308 + $0x1a8] sm:$0xff]
        %v417 = vld [vmem:[%s308 + $0x1b0] sm:$0xff]
        %v418 = vld [vmem:[%s308 + $0x1b8] sm:$0xff]
        %v419 = vld [vmem:[%s308 + $0x1c0] sm:$0xff]
        %v420 = vld [vmem:[%s308 + $0x1c8] sm:$0xff]
        %v421 = vld [vmem:[%s308 + $0x1d0] sm:$0xff]
        %v422 = vld [vmem:[%s308 + $0x1d8] sm:$0xff]
        %v423 = vld [vmem:[%s308 + $0x1e0] sm:$0xff]
        %v424 = vld [vmem:[%s308 + $0x1e8] sm:$0xff]
        %v425 = vld [vmem:[%s308 + $0x1f0] sm:$0xff]
        %v426 = vld [vmem:[%s308 + $0x1f8] sm:$0xff]
        %v427 = vld [vmem:[%s308 + $0x200] sm:$0xff]
        %v428 = vld [vmem:[%s308 + $0x208] sm:$0xff]
        %v429 = vld [vmem:[%s308 + $0x210] sm:$0xff]
        %v430 = vld [vmem:[%s308 + $0x218] sm:$0xff]
        %v431 = vld [vmem:[%s308 + $0x220] sm:$0xff]
        %v432 = vld [vmem:[%s308 + $0x228] sm:$0xff]
        %v433 = vld [vmem:[%s308 + $0x230] sm:$0xff]
        %v434 = vld [vmem:[%s308 + $0x238] sm:$0xff]
        %v435 = vld [vmem:[%s308 + $0x240] sm:$0xff]
        %v436 = vld [vmem:[%s308 + $0x248] sm:$0xff]
        %v437 = vld [vmem:[%s308 + $0x250] sm:$0xff]
        %v438 = vld [vmem:[%s308 + $0x258] sm:$0xff]
        %v439 = vld [vmem:[%s308 + $0x260] sm:$0xff]
        %v440 = vld [vmem:[%s308 + $0x268] sm:$0xff]
        %v441 = vld [vmem:[%s308 + $0x270] sm:$0xff]
        %v442 = vld [vmem:[%s308 + $0x278] sm:$0xff]
        %v443 = vld [vmem:[%s308 + $0x280] sm:$0xff]
        %v444 = vld [vmem:[%s308 + $0x288] sm:$0xff]
        %v445 = vld [vmem:[%s308 + $0x290] sm:$0xff]
        %v446 = vld [vmem:[%s308 + $0x298] sm:$0xff]
        %v447 = vld [vmem:[%s308 + $0x2a0] sm:$0xff]
        %v448 = vld [vmem:[%s308 + $0x2a8] sm:$0xff]
        %v449 = vld [vmem:[%s308 + $0x2b0] sm:$0xff]
        %v450 = vld [vmem:[%s308 + $0x2b8] sm:$0xff]
        %v451 = vld [vmem:[%s308 + $0x2c0] sm:$0xff]
        %v452 = vld [vmem:[%s308 + $0x2c8] sm:$0xff]
        %v453 = vld [vmem:[%s308 + $0x2d0] sm:$0xff]
        %v454 = vld [vmem:[%s308 + $0x2d8] sm:$0xff]
        %v455 = vld [vmem:[%s308 + $0x2e0] sm:$0xff]
        %v456 = vld [vmem:[%s308 + $0x2e8] sm:$0xff]
        %v457 = vld [vmem:[%s308 + $0x2f0] sm:$0xff]
        %v458 = vld [vmem:[%s308 + $0x2f8] sm:$0xff]
        %v459 = vld [vmem:[%s308 + $0x300] sm:$0xff]
        %v460 = vld [vmem:[%s308 + $0x308] sm:$0xff]
        %v461 = vld [vmem:[%s308 + $0x310] sm:$0xff]
        %v462 = vld [vmem:[%s308 + $0x318] sm:$0xff]
        %v463 = vld [vmem:[%s308 + $0x320] sm:$0xff]
        %v464 = vld [vmem:[%s308 + $0x328] sm:$0xff]
        %v465 = vld [vmem:[%s308 + $0x330] sm:$0xff]
        %v466 = vld [vmem:[%s308 + $0x338] sm:$0xff]
        %v467 = vld [vmem:[%s308 + $0x340] sm:$0xff]
        %v468 = vld [vmem:[%s308 + $0x348] sm:$0xff]
        %v469 = vld [vmem:[%s308 + $0x350] sm:$0xff]
        %v470 = vld [vmem:[%s308 + $0x358] sm:$0xff]
        %v471 = vld [vmem:[%s308 + $0x360] sm:$0xff]
        %v472 = vld [vmem:[%s308 + $0x368] sm:$0xff]
        %v473 = vld [vmem:[%s308 + $0x370] sm:$0xff]
        %v474 = vld [vmem:[%s308 + $0x378] sm:$0xff]
        %v475 = vld [vmem:[%s308 + $0x380] sm:$0xff]
        %v476 = vld [vmem:[%s308 + $0x388] sm:$0xff]
        %v477 = vld [vmem:[%s308 + $0x390] sm:$0xff]
        %v478 = vld [vmem:[%s308 + $0x398] sm:$0xff]
        %v479 = vld [vmem:[%s308 + $0x3a0] sm:$0xff]
        %v480 = vld [vmem:[%s308 + $0x3a8] sm:$0xff]
        %v481 = vld [vmem:[%s308 + $0x3b0] sm:$0xff]
        %v482 = vld [vmem:[%s308 + $0x3b8] sm:$0xff]
        %v483 = vld [vmem:[%s308 + $0x3c0] sm:$0xff]
        %v484 = vld [vmem:[%s308 + $0x3c8] sm:$0xff]
        %v485 = vld [vmem:[%s308 + $0x3d0] sm:$0xff]
        %v486 = vld [vmem:[%s308 + $0x3d8] sm:$0xff]
        %v487 = vld [vmem:[%s308 + $0x3e0] sm:$0xff]
        %v488 = vld [vmem:[%s308 + $0x3e8] sm:$0xff]
        %v489 = vld [vmem:[%s308 + $0x3f0] sm:$0xff]
        %v490 = vld [vmem:[%s308 + $0x3f8] sm:$0xff]
        %v491 = vld [vmem:[%s308 + $0x400] sm:$0xff]
        %v492 = vld [vmem:[%s308 + $0x408] sm:$0xff]
        %v493 = vld [vmem:[%s308 + $0x410] sm:$0xff]
        %v494 = vld [vmem:[%s308 + $0x418] sm:$0xff]
        %v495 = vld [vmem:[%s308 + $0x420] sm:$0xff]
        %v496 = vld [vmem:[%s308 + $0x428] sm:$0xff]
        %v497 = vld [vmem:[%s308 + $0x430] sm:$0xff]
        %v498 = vld [vmem:[%s308 + $0x438] sm:$0xff]
        %v499 = vld [vmem:[%s308 + $0x440] sm:$0xff]
        %v500 = vld [vmem:[%s308 + $0x448] sm:$0xff]
        %v501 = vld [vmem:[%s308 + $0x450] sm:$0xff]
        %v502 = vld [vmem:[%s308 + $0x458] sm:$0xff]
        %v503 = vld [vmem:[%s308 + $0x460] sm:$0xff]
        %v504 = vld [vmem:[%s308 + $0x468] sm:$0xff]
        %v505 = vld [vmem:[%s308 + $0x470] sm:$0xff]
        %v506 = vld [vmem:[%s308 + $0x478] sm:$0xff]
        %v507 = vld [vmem:[%s308 + $0x480] sm:$0xff]
        %v508 = vld [vmem:[%s308 + $0x488] sm:$0xff]
        %v509 = vld [vmem:[%s308 + $0x490] sm:$0xff]
        %v510 = vld [vmem:[%s308 + $0x498] sm:$0xff]
        %v511 = vld [vmem:[%s308 + $0x4a0] sm:$0xff]
        %v512 = vld [vmem:[%s308 + $0x4a8] sm:$0xff]
        %v513 = vld [vmem:[%s308 + $0x4b0] sm:$0xff]
        %v514 = vld [vmem:[%s308 + $0x4b8] sm:$0xff]
        %v515 = vld [vmem:[%s308 + $0x4c0] sm:$0xff]
        %v516 = vld [vmem:[%s308 + $0x4c8] sm:$0xff]
        %v517 = vld [vmem:[%s308 + $0x4d0] sm:$0xff]
        %v518 = vld [vmem:[%s308 + $0x4d8] sm:$0xff]
        %v519 = vld [vmem:[%s308 + $0x4e0] sm:$0xff]
        %v520 = vld [vmem:[%s308 + $0x4e8] sm:$0xff]
        %v521 = vld [vmem:[%s308 + $0x4f0] sm:$0xff]
        %v522 = vld [vmem:[%s308 + $0x4f8] sm:$0xff]
        %v523 = vld [vmem:[%s308 + $0x500] sm:$0xff]
        %v524 = vld [vmem:[%s308 + $0x508] sm:$0xff]
        %v525 = vld [vmem:[%s308 + $0x510] sm:$0xff]
        %v526 = vld [vmem:[%s308 + $0x518] sm:$0xff]
        %v527 = vld [vmem:[%s308 + $0x520] sm:$0xff]
        %v528 = vld [vmem:[%s308 + $0x528] sm:$0xff]
        %v529 = vld [vmem:[%s308 + $0x530] sm:$0xff]
        %v530 = vld [vmem:[%s308 + $0x538] sm:$0xff]
        %v531 = vld [vmem:[%s308 + $0x540] sm:$0xff]
        %v532 = vld [vmem:[%s308 + $0x548] sm:$0xff]
        %v533 = vld [vmem:[%s308 + $0x550] sm:$0xff]
        %v534 = vld [vmem:[%s308 + $0x558] sm:$0xff]
        %v535 = vld [vmem:[%s308 + $0x560] sm:$0xff]
        %v536 = vld [vmem:[%s308 + $0x568] sm:$0xff]
        %v537 = vld [vmem:[%s308 + $0x570] sm:$0xff]
        %v538 = vld [vmem:[%s308 + $0x578] sm:$0xff]
        %v539 = vld [vmem:[%s308 + $0x580] sm:$0xff]
        %v540 = vld [vmem:[%s308 + $0x588] sm:$0xff]
        %v541 = vld [vmem:[%s308 + $0x590] sm:$0xff]
        %v542 = vld [vmem:[%s308 + $0x598] sm:$0xff]
        %v543 = vld [vmem:[%s308 + $0x5a0] sm:$0xff]
        %v544 = vld [vmem:[%s308 + $0x5a8] sm:$0xff]
        %v545 = vld [vmem:[%s308 + $0x5b0] sm:$0xff]
        %v546 = vld [vmem:[%s308 + $0x5b8] sm:$0xff]
        %v547 = vld [vmem:[%s308 + $0x5c0] sm:$0xff]
        %v548 = vld [vmem:[%s308 + $0x5c8] sm:$0xff]
        %v549 = vld [vmem:[%s308 + $0x5d0] sm:$0xff]
        %v550 = vld [vmem:[%s308 + $0x5d8] sm:$0xff]
        %v551 = vld [vmem:[%s308 + $0x5e0] sm:$0xff]
        %v552 = vld [vmem:[%s308 + $0x5e8] sm:$0xff]
        %v553 = vld [vmem:[%s308 + $0x5f0] sm:$0xff]
        %v554 = vld [vmem:[%s308 + $0x5f8] sm:$0xff]
        %555 = vst [vmem:[#allocation5] sm:$0xff] 0.0
        %556 = vst [vmem:[#allocation5 + $0x8] sm:$0xff] 0.0
        %557 = vst [vmem:[%s358] sm:$0xff] 0.0
        %558 = vst [vmem:[%s358 + $0x8] sm:$0xff] 0.0
        %p560 = scmp.lt.u32.totalorder 64, 8
        %p561 = pneg %p560
        // Predicated region
        $region57: #{rnn_forward.5} parent=39 // pred_check
          _
        $region58: #{rnn_forward.5} parent=39 // pred_check_branch
          %563 = sbr.rel (%p560) target = $region60
        $region59: #{rnn_forward.5} parent=39 // pred_region
          %s578 = sand.u32 64, 7
          %p579 = scmp.eq.s32.totalorder %s578, 0
          // Predicated region
          $region72: #{rnn_forward.5} parent=59 // pred_check
            %p580 = pneg %p579
          $region73: #{rnn_forward.5} parent=59 // pred_check_branch
            %582 = sbr.rel (%p580) target = $region75
          $region74: #{rnn_forward.5} parent=59 // pred_region
            loop: start=0, step=1, limit=1
            $region76: #{rnn_forward.5} parent=74 // loop_pre_header
              _
            $region77: #{rnn_forward.5} parent=74 // loop_header
              %s584 = sphi 0, %s588
              %p585 = scmp.ge.s32.totalorder %s584, 1
              %s589 = sphi %s1, %s1
              %s590 = sphi [#allocation2], [#allocation2]
            $region78: #{rnn_forward.5} parent=74 // loop_header_branch
              %587 = sbr.rel (%p585) target = $region82
            $region79: #{rnn_forward.5} parent=74 // loop_body
              %v591 = vld [vmem:[%s589] sm:$0xff]
              %592 = vst [vmem:[%s590] sm:$0xff] %v591
              %v593 = vld [vmem:[%s589 + $0x8] sm:$0xff]
              %594 = vst [vmem:[%s590 + $0x8] sm:$0xff] %v593
              %v595 = vld [vmem:[%s589 + $0x10] sm:$0xff]
              %596 = vst [vmem:[%s590 + $0x10] sm:$0xff] %v595
              %v597 = vld [vmem:[%s589 + $0x18] sm:$0xff]
              %598 = vst [vmem:[%s590 + $0x18] sm:$0xff] %v597
              %v599 = vld [vmem:[%s589 + $0x20] sm:$0xff]
              %600 = vst [vmem:[%s590 + $0x20] sm:$0xff] %v599
              %v601 = vld [vmem:[%s589 + $0x28] sm:$0xff]
              %602 = vst [vmem:[%s590 + $0x28] sm:$0xff] %v601
              %v603 = vld [vmem:[%s589 + $0x30] sm:$0xff]
              %604 = vst [vmem:[%s590 + $0x30] sm:$0xff] %v603
              %v605 = vld [vmem:[%s589 + $0x38] sm:$0xff]
              %606 = vst [vmem:[%s590 + $0x38] sm:$0xff] %v605
            $region80: #{rnn_forward.5} parent=74 // loop_footer
              %s588 = sadd.s32 1, %s584
            $region81: #{rnn_forward.5} parent=74 // loop_footer_branch
              %583 = sbr.rel target = $region77
            $region82: #{rnn_forward.5} parent=74 // loop_exit
              _
          $region75: #{rnn_forward.5} parent=59 // pred_fallthru
            _
          %p607 = pneg %p579
          // Predicated region
          $region83: #{rnn_forward.5} parent=59 // pred_check
            _
          $region84: #{rnn_forward.5} parent=59 // pred_check_branch
            %609 = sbr.rel (%p579) target = $region86
          $region85: #{rnn_forward.5} parent=59 // pred_region
            %s610 = sand.u32 64, 7
          $region86: #{rnn_forward.5} parent=59 // pred_fallthru
            _
        $region60: #{rnn_forward.5} parent=39 // pred_fallthru
          _
        // Predicated region
        $region61: #{rnn_forward.5} parent=39 // pred_check
          %p564 = pneg %p560
        $region62: #{rnn_forward.5} parent=39 // pred_check_branch
          %566 = sbr.rel (%p564) target = $region64
        $region63: #{rnn_forward.5} parent=39 // pred_region
          %s567 = sshllo.u32 0, 64
          loop: start=0, step=1, limit=1
          $region65: #{rnn_forward.5} parent=63 // loop_pre_header
            _
          $region66: #{rnn_forward.5} parent=63 // loop_header
            %s569 = sphi 0, %s573
            %p570 = scmp.ge.s32.totalorder %s569, 1
            %s574 = sphi %s1, %s1
            %s575 = sphi [#allocation2], [#allocation2]
          $region67: #{rnn_forward.5} parent=63 // loop_header_branch
            %572 = sbr.rel (%p570) target = $region71
          $region68: #{rnn_forward.5} parent=63 // loop_body
            %v576 = vld [vmem:[%s574] sm:%s567]
            %577 = vst [vmem:[%s575] sm:%s567] %v576
          $region69: #{rnn_forward.5} parent=63 // loop_footer
            %s573 = sadd.s32 1, %s569
          $region70: #{rnn_forward.5} parent=63 // loop_footer_branch
            %568 = sbr.rel target = $region66
          $region71: #{rnn_forward.5} parent=63 // loop_exit
            _
        $region64: #{rnn_forward.5} parent=39 // pred_fallthru
          _
        // Predicated region
        $region87: #{rnn_forward.5} parent=39 // pred_check
          _
        $region88: #{rnn_forward.5} parent=39 // pred_check_branch
          %613 = sbr.rel (0) target = $region90
        $region89: #{rnn_forward.5} parent=39 // pred_region
          %614 = vsyncadd [#allocation6], 1024
        $region90: #{rnn_forward.5} parent=39 // pred_fallthru
          _
        %s615 = smul.u32 8, 8
        %s616 = smul.u32 %s615, 1
        %s617 = sshll.u32 %s616, 4
        %618 = dma.done [#allocation6], %s617
        %v619 = vld [vmem:[#allocation2] sm:$0xff]
        %v620 = vld [vmem:[#allocation2 + $0x8] sm:$0xff]
        %v621 = vld [vmem:[#allocation2 + $0x10] sm:$0xff]
        %v622 = vld [vmem:[#allocation2 + $0x18] sm:$0xff]
        %v623 = vld [vmem:[#allocation2 + $0x20] sm:$0xff]
        %v624 = vld [vmem:[#allocation2 + $0x28] sm:$0xff]
        %v625 = vld [vmem:[#allocation2 + $0x30] sm:$0xff]
        %v626 = vld [vmem:[#allocation2 + $0x38] sm:$0xff]
        %v627 = vld [vmem:[%s290] sm:$0xff]
        %v628 = vld [vmem:[%s290 + $0x8] sm:$0xff]
        %v629 = vld [vmem:[%s290 + $0x10] sm:$0xff]
        %v630 = vld [vmem:[%s290 + $0x18] sm:$0xff]
        %v631 = vld [vmem:[%s290 + $0x20] sm:$0xff]
        %v632 = vld [vmem:[%s290 + $0x28] sm:$0xff]
        %v633 = vld [vmem:[%s290 + $0x30] sm:$0xff]
        %v634 = vld [vmem:[%s290 + $0x38] sm:$0xff]
        %v635 = vld [vmem:[%s290 + $0x40] sm:$0xff]
        %v636 = vld [vmem:[%s290 + $0x48] sm:$0xff]
        %v637 = vld [vmem:[%s290 + $0x50] sm:$0xff]
        %v638 = vld [vmem:[%s290 + $0x58] sm:$0xff]
        %v639 = vld [vmem:[%s290 + $0x60] sm:$0xff]
        %v640 = vld [vmem:[%s290 + $0x68] sm:$0xff]
        %v641 = vld [vmem:[%s290 + $0x70] sm:$0xff]
        %v642 = vld [vmem:[%s290 + $0x78] sm:$0xff]
        %v643 = vld [vmem:[%s290 + $0x80] sm:$0xff]
        %v644 = vld [vmem:[%s290 + $0x88] sm:$0xff]
        %v645 = vld [vmem:[%s290 + $0x90] sm:$0xff]
        %v646 = vld [vmem:[%s290 + $0x98] sm:$0xff]
        %v647 = vld [vmem:[%s290 + $0xa0] sm:$0xff]
        %v648 = vld [vmem:[%s290 + $0xa8] sm:$0xff]
        %v649 = vld [vmem:[%s290 + $0xb0] sm:$0xff]
        %v650 = vld [vmem:[%s290 + $0xb8] sm:$0xff]
        %v651 = vld [vmem:[%s290 + $0xc0] sm:$0xff]
        %v652 = vld [vmem:[%s290 + $0xc8] sm:$0xff]
        %v653 = vld [vmem:[%s290 + $0xd0] sm:$0xff]
        %v654 = vld [vmem:[%s290 + $0xd8] sm:$0xff]
        %v655 = vld [vmem:[%s290 + $0xe0] sm:$0xff]
        %v656 = vld [vmem:[%s290 + $0xe8] sm:$0xff]
        %v657 = vld [vmem:[%s290 + $0xf0] sm:$0xff]
        %v658 = vld [vmem:[%s290 + $0xf8] sm:$0xff]
        %v659 = vld [vmem:[%s290 + $0x100] sm:$0xff]
        %v660 = vld [vmem:[%s290 + $0x108] sm:$0xff]
        %v661 = vld [vmem:[%s290 + $0x110] sm:$0xff]
        %v662 = vld [vmem:[%s290 + $0x118] sm:$0xff]
        %v663 = vld [vmem:[%s290 + $0x120] sm:$0xff]
        %v664 = vld [vmem:[%s290 + $0x128] sm:$0xff]
        %v665 = vld [vmem:[%s290 + $0x130] sm:$0xff]
        %v666 = vld [vmem:[%s290 + $0x138] sm:$0xff]
        %v667 = vld [vmem:[%s290 + $0x140] sm:$0xff]
        %v668 = vld [vmem:[%s290 + $0x148] sm:$0xff]
        %v669 = vld [vmem:[%s290 + $0x150] sm:$0xff]
        %v670 = vld [vmem:[%s290 + $0x158] sm:$0xff]
        %v671 = vld [vmem:[%s290 + $0x160] sm:$0xff]
        %v672 = vld [vmem:[%s290 + $0x168] sm:$0xff]
        %v673 = vld [vmem:[%s290 + $0x170] sm:$0xff]
        %v674 = vld [vmem:[%s290 + $0x178] sm:$0xff]
        %v675 = vld [vmem:[%s290 + $0x180] sm:$0xff]
        %v676 = vld [vmem:[%s290 + $0x188] sm:$0xff]
        %v677 = vld [vmem:[%s290 + $0x190] sm:$0xff]
        %v678 = vld [vmem:[%s290 + $0x198] sm:$0xff]
        %v679 = vld [vmem:[%s290 + $0x1a0] sm:$0xff]
        %v680 = vld [vmem:[%s290 + $0x1a8] sm:$0xff]
        %v681 = vld [vmem:[%s290 + $0x1b0] sm:$0xff]
        %v682 = vld [vmem:[%s290 + $0x1b8] sm:$0xff]
        %v683 = vld [vmem:[%s290 + $0x1c0] sm:$0xff]
        %v684 = vld [vmem:[%s290 + $0x1c8] sm:$0xff]
        %v685 = vld [vmem:[%s290 + $0x1d0] sm:$0xff]
        %v686 = vld [vmem:[%s290 + $0x1d8] sm:$0xff]
        %v687 = vld [vmem:[%s290 + $0x1e0] sm:$0xff]
        %v688 = vld [vmem:[%s290 + $0x1e8] sm:$0xff]
        %v689 = vld [vmem:[%s290 + $0x1f0] sm:$0xff]
        %v690 = vld [vmem:[%s290 + $0x1f8] sm:$0xff]
        %v691 = vld [vmem:[%s290 + $0x200] sm:$0xff]
        %v692 = vld [vmem:[%s290 + $0x208] sm:$0xff]
        %v693 = vld [vmem:[%s290 + $0x210] sm:$0xff]
        %v694 = vld [vmem:[%s290 + $0x218] sm:$0xff]
        %v695 = vld [vmem:[%s290 + $0x220] sm:$0xff]
        %v696 = vld [vmem:[%s290 + $0x228] sm:$0xff]
        %v697 = vld [vmem:[%s290 + $0x230] sm:$0xff]
        %v698 = vld [vmem:[%s290 + $0x238] sm:$0xff]
        %v699 = vld [vmem:[%s290 + $0x240] sm:$0xff]
        %v700 = vld [vmem:[%s290 + $0x248] sm:$0xff]
        %v701 = vld [vmem:[%s290 + $0x250] sm:$0xff]
        %v702 = vld [vmem:[%s290 + $0x258] sm:$0xff]
        %v703 = vld [vmem:[%s290 + $0x260] sm:$0xff]
        %v704 = vld [vmem:[%s290 + $0x268] sm:$0xff]
        %v705 = vld [vmem:[%s290 + $0x270] sm:$0xff]
        %v706 = vld [vmem:[%s290 + $0x278] sm:$0xff]
        %v707 = vld [vmem:[%s290 + $0x280] sm:$0xff]
        %v708 = vld [vmem:[%s290 + $0x288] sm:$0xff]
        %v709 = vld [vmem:[%s290 + $0x290] sm:$0xff]
        %v710 = vld [vmem:[%s290 + $0x298] sm:$0xff]
        %v711 = vld [vmem:[%s290 + $0x2a0] sm:$0xff]
        %v712 = vld [vmem:[%s290 + $0x2a8] sm:$0xff]
        %v713 = vld [vmem:[%s290 + $0x2b0] sm:$0xff]
        %v714 = vld [vmem:[%s290 + $0x2b8] sm:$0xff]
        %v715 = vld [vmem:[%s290 + $0x2c0] sm:$0xff]
        %v716 = vld [vmem:[%s290 + $0x2c8] sm:$0xff]
        %v717 = vld [vmem:[%s290 + $0x2d0] sm:$0xff]
        %v718 = vld [vmem:[%s290 + $0x2d8] sm:$0xff]
        %v719 = vld [vmem:[%s290 + $0x2e0] sm:$0xff]
        %v720 = vld [vmem:[%s290 + $0x2e8] sm:$0xff]
        %v721 = vld [vmem:[%s290 + $0x2f0] sm:$0xff]
        %v722 = vld [vmem:[%s290 + $0x2f8] sm:$0xff]
        %v724 = vlaneseq
        %v725 = vshrl.u32 %v724, 7
        %v726 = vsub.s32 0, %v725
        %v727 = vrot.slane %v361, %v726
        %v728 = vlaneseq
        %v729 = vshrl.u32 %v728, 7
        %v730 = vsub.s32 1, %v729
        %v731 = vrot.slane %v361, %v730
        %v732 = vlaneseq
        %v733 = vshrl.u32 %v732, 7
        %v734 = vsub.s32 2, %v733
        %v735 = vrot.slane %v361, %v734
        %v736 = vlaneseq
        %v737 = vshrl.u32 %v736, 7
        %v738 = vsub.s32 3, %v737
        %v739 = vrot.slane %v361, %v738
        %v740 = vlaneseq
        %v741 = vshrl.u32 %v740, 7
        %v742 = vsub.s32 4, %v741
        %v743 = vrot.slane %v361, %v742
        %v744 = vlaneseq
        %v745 = vshrl.u32 %v744, 7
        %v746 = vsub.s32 5, %v745
        %v747 = vrot.slane %v361, %v746
        %754 = vmatprep.subr.mxu0 %v628
        %755 = vmatpush1.msra.mxu0 %v627
        %756 = vmatprep.subr.mxu0 %v634
        %757 = vmatpush1.msra.mxu0 %v633
        %758 = vmatprep.subr.mxu0 %v640
        %759 = vmatpush1.msra.mxu0 %v639
        %760 = vmatprep.subr.mxu0 %v646
        %761 = vmatpush1.msra.mxu0 %v645
        %762 = vmatprep.subr.mxu0 %v652
        %763 = vmatpush1.msra.mxu0 %v651
        %764 = vmatprep.subr.mxu0 %v658
        %765 = vmatpush1.msra.mxu0 %v657
        %766 = vmatprep.subr.mxu0 %v664
        %767 = vmatpush1.msra.mxu0 %v663
        %768 = vmatprep.subr.mxu0 %v670
        %769 = vmatpush1.msra.mxu0 %v669
        %770 = vmatprep.subr.mxu0 %v676
        %771 = vmatpush1.msra.mxu0 %v675
        %772 = vmatprep.subr.mxu0 %v682
        %773 = vmatpush1.msra.mxu0 %v681
        %774 = vmatprep.subr.mxu0 %v688
        %775 = vmatpush1.msra.mxu0 %v687
        %776 = vmatprep.subr.mxu0 %v694
        %777 = vmatpush1.msra.mxu0 %v693
        %778 = vmatprep.subr.mxu0 %v700
        %779 = vmatpush1.msra.mxu0 %v699
        %780 = vmatprep.subr.mxu0 %v706
        %781 = vmatpush1.msra.mxu0 %v705
        %782 = vmatprep.subr.mxu0 %v712
        %783 = vmatpush1.msra.mxu0 %v711
        %784 = vmatprep.subr.mxu0 %v718
        %785 = vmatpush1.msra.mxu0 %v717
        %786 = vmatprep.subr.mxu0 0.0
        %787 = vmatpush1.msra.mxu0 0.0
        %788 = vmatprep.subr.mxu0 0.0
        %789 = vmatpush1.msra.mxu0 0.0
        %790 = vmatprep.subr.mxu0 0.0
        %791 = vmatpush1.msra.mxu0 0.0
        %792 = vmatprep.subr.mxu0 0.0
        %793 = vmatpush1.msra.mxu0 0.0
        %794 = vmatprep.subr.mxu0 0.0
        %795 = vmatpush1.msra.mxu0 0.0
        %796 = vmatprep.subr.mxu0 0.0
        %797 = vmatpush1.msra.mxu0 0.0
        %798 = vmatprep.subr.mxu0 0.0
        %799 = vmatpush1.msra.mxu0 0.0
        %800 = vmatprep.subr.mxu0 0.0
        %801 = vmatpush1.msra.mxu0 0.0
        %802 = vmatprep.subr.mxu0 0.0
        %803 = vmatpush1.msra.mxu0 0.0
        %804 = vmatprep.subr.mxu0 0.0
        %805 = vmatpush1.msra.mxu0 0.0
        %806 = vmatprep.subr.mxu0 0.0
        %807 = vmatpush1.msra.mxu0 0.0
        %808 = vmatprep.subr.mxu0 0.0
        %809 = vmatpush1.msra.mxu0 0.0
        %810 = vmatprep.subr.mxu0 0.0
        %811 = vmatpush1.msra.mxu0 0.0
        %812 = vmatprep.subr.mxu0 0.0
        %813 = vmatpush1.msra.mxu0 0.0
        %814 = vmatprep.subr.mxu0 0.0
        %815 = vmatpush1.msra.mxu0 0.0
        %816 = vmatprep.subr.mxu0 0.0
        %817 = vmatpush1.msra.mxu0 0.0
        %818 = vmatprep.mubr.f32.mxu0 0.0
        %819 = vmatmul.mubr.f32.gmra.mrb[0].mxu0 %v619
        %v820 = vpop.f32.mrb[0].mxu0
        %v821 = vadd.f32 %v727, %v820
        %v822 = vpop.f32.mrb[0].mxu0
        %v823 = vadd.f32 %v731, %v822
        %824 = vmatprep.mubr.f32.mxu0 0.0
        %825 = vmatmul.mubr.f32.gmra.mrb[0].mxu0 %v620
        %v826 = vpop.f32.mrb[0].mxu0
        %v827 = vadd.f32 %v727, %v826
        %v828 = vpop.f32.mrb[0].mxu0
        %v829 = vadd.f32 %v731, %v828
        %830 = vmatprep.mubr.f32.mxu0 0.0
        %831 = vmatmul.mubr.f32.gmra.mrb[0].mxu0 %v621
        %v832 = vpop.f32.mrb[0].mxu0
        %v833 = vadd.f32 %v727, %v832
        %v834 = vpop.f32.mrb[0].mxu0
        %v835 = vadd.f32 %v731, %v834
        %836 = vmatprep.mubr.f32.mxu0 0.0
        %837 = vmatmul.mubr.f32.gmra.mrb[0].mxu0 %v622
        %v838 = vpop.f32.mrb[0].mxu0
        %v839 = vadd.f32 %v727, %v838
        %v840 = vpop.f32.mrb[0].mxu0
        %v841 = vadd.f32 %v731, %v840
        %842 = vmatprep.mubr.f32.mxu0 0.0
        %843 = vmatmul.mubr.f32.gmra.mrb[0].mxu0 %v623
        %v844 = vpop.f32.mrb[0].mxu0
        %v845 = vadd.f32 %v727, %v844
        %v846 = vpop.f32.mrb[0].mxu0
        %v847 = vadd.f32 %v731, %v846
        %848 = vmatprep.mubr.f32.mxu0 0.0
        %849 = vmatmul.mubr.f32.gmra.mrb[0].mxu0 %v624
        %v850 = vpop.f32.mrb[0].mxu0
        %v851 = vadd.f32 %v727, %v850
        %v852 = vpop.f32.mrb[0].mxu0
        %v853 = vadd.f32 %v731, %v852
        %854 = vmatprep.mubr.f32.mxu0 0.0
        %855 = vmatmul.mubr.f32.gmra.mrb[0].mxu0 %v625
        %v856 = vpop.f32.mrb[0].mxu0
        %v857 = vadd.f32 %v727, %v856
        %v858 = vpop.f32.mrb[0].mxu0
        %v859 = vadd.f32 %v731, %v858
        %860 = vmatprep.mubr.f32.mxu0 0.0
        %861 = vmatmul.mubr.f32.gmra.mrb[0].mxu0 %v626
        %v862 = vpop.f32.mrb[0].mxu0
        %v863 = vadd.f32 %v727, %v862
        %v864 = vpop.f32.mrb[0].mxu0
        %v865 = vadd.f32 %v731, %v864
        %866 = vdwg.mxu0
        %867 = vmatprep.subr.mxu0 %v630
        %868 = vmatpush1.msra.mxu0 %v629
        %869 = vmatprep.subr.mxu0 %v636
        %870 = vmatpush1.msra.mxu0 %v635
        %871 = vmatprep.subr.mxu0 %v642
        %872 = vmatpush1.msra.mxu0 %v641
        %873 = vmatprep.subr.mxu0 %v648
        %874 = vmatpush1.msra.mxu0 %v647
        %875 = vmatprep.subr.mxu0 %v654
        %876 = vmatpush1.msra.mxu0 %v653
        %877 = vmatprep.subr.mxu0 %v660
        %878 = vmatpush1.msra.mxu0 %v659
        %879 = vmatprep.subr.mxu0 %v666
        %880 = vmatpush1.msra.mxu0 %v665
        %881 = vmatprep.subr.mxu0 %v672
        %882 = vmatpush1.msra.mxu0 %v671
        %883 = vmatprep.subr.mxu0 %v678
        %884 = vmatpush1.msra.mxu0 %v677
        %885 = vmatprep.subr.mxu0 %v684
        %886 = vmatpush1.msra.mxu0 %v683
        %887 = vmatprep.subr.mxu0 %v690
        %888 = vmatpush1.msra.mxu0 %v689
        %889 = vmatprep.subr.mxu0 %v696
        %890 = vmatpush1.msra.mxu0 %v695
        %891 = vmatprep.subr.mxu0 %v702
        %892 = vmatpush1.msra.mxu0 %v701
        %893 = vmatprep.subr.mxu0 %v708
        %894 = vmatpush1.msra.mxu0 %v707
        %895 = vmatprep.subr.mxu0 %v714
        %896 = vmatpush1.msra.mxu0 %v713
        %897 = vmatprep.subr.mxu0 %v720
        %898 = vmatpush1.msra.mxu0 %v719
        %899 = vmatprep.subr.mxu0 0.0
        %900 = vmatpush1.msra.mxu0 0.0
        %901 = vmatprep.subr.mxu0 0.0
        %902 = vmatpush1.msra.mxu0 0.0
        %903 = vmatprep.subr.mxu0 0.0
        %904 = vmatpush1.msra.mxu0 0.0
        %905 = vmatprep.subr.mxu0 0.0
        %906 = vmatpush1.msra.mxu0 0.0
        %907 = vmatprep.subr.mxu0 0.0
        %908 = vmatpush1.msra.mxu0 0.0
        %909 = vmatprep.subr.mxu0 0.0
        %910 = vmatpush1.msra.mxu0 0.0
        %911 = vmatprep.subr.mxu0 0.0
        %912 = vmatpush1.msra.mxu0 0.0
        %913 = vmatprep.subr.mxu0 0.0
        %914 = vmatpush1.msra.mxu0 0.0
        %915 = vmatprep.subr.mxu0 0.0
        %916 = vmatpush1.msra.mxu0 0.0
        %917 = vmatprep.subr.mxu0 0.0
        %918 = vmatpush1.msra.mxu0 0.0
        %919 = vmatprep.subr.mxu0 0.0
        %920 = vmatpush1.msra.mxu0 0.0
        %921 = vmatprep.subr.mxu0 0.0
        %922 = vmatpush1.msra.mxu0 0.0
        %923 = vmatprep.subr.mxu0 0.0
        %924 = vmatpush1.msra.mxu0 0.0
        %925 = vmatprep.subr.mxu0 0.0
        %926 = vmatpush1.msra.mxu0 0.0
        %927 = vmatprep.subr.mxu0 0.0
        %928 = vmatpush1.msra.mxu0 0.0
        %929 = vmatprep.subr.mxu0 0.0
        %930 = vmatpush1.msra.mxu0 0.0
        %931 = vmatprep.mubr.f32.mxu0 0.0
        %932 = vmatmul.mubr.f32.gmra.mrb[0].mxu0 %v619
        %v933 = vpop.f32.mrb[0].mxu0
        %v934 = vadd.f32 %v735, %v933
        %v935 = vpop.f32.mrb[0].mxu0
        %v936 = vadd.f32 %v739, %v935
        %937 = vmatprep.mubr.f32.mxu0 0.0
        %938 = vmatmul.mubr.f32.gmra.mrb[0].mxu0 %v620
        %v939 = vpop.f32.mrb[0].mxu0
        %v940 = vadd.f32 %v735, %v939
        %v941 = vpop.f32.mrb[0].mxu0
        %v942 = vadd.f32 %v739, %v941
        %943 = vmatprep.mubr.f32.mxu0 0.0
        %944 = vmatmul.mubr.f32.gmra.mrb[0].mxu0 %v621
        %v945 = vpop.f32.mrb[0].mxu0
        %v946 = vadd.f32 %v735, %v945
        %v947 = vpop.f32.mrb[0].mxu0
        %v948 = vadd.f32 %v739, %v947
        %949 = vmatprep.mubr.f32.mxu0 0.0
        %950 = vmatmul.mubr.f32.gmra.mrb[0].mxu0 %v622
        %v951 = vpop.f32.mrb[0].mxu0
        %v952 = vadd.f32 %v735, %v951
        %v953 = vpop.f32.mrb[0].mxu0
        %v954 = vadd.f32 %v739, %v953
        %955 = vmatprep.mubr.f32.mxu0 0.0
        %956 = vmatmul.mubr.f32.gmra.mrb[0].mxu0 %v623
        %v957 = vpop.f32.mrb[0].mxu0
        %v958 = vadd.f32 %v735, %v957
        %v959 = vpop.f32.mrb[0].mxu0
        %v960 = vadd.f32 %v739, %v959
        %961 = vmatprep.mubr.f32.mxu0 0.0
        %962 = vmatmul.mubr.f32.gmra.mrb[0].mxu0 %v624
        %v963 = vpop.f32.mrb[0].mxu0
        %v964 = vadd.f32 %v735, %v963
        %v965 = vpop.f32.mrb[0].mxu0
        %v966 = vadd.f32 %v739, %v965
        %967 = vmatprep.mubr.f32.mxu0 0.0
        %968 = vmatmul.mubr.f32.gmra.mrb[0].mxu0 %v625
        %v969 = vpop.f32.mrb[0].mxu0
        %v970 = vadd.f32 %v735, %v969
        %v971 = vpop.f32.mrb[0].mxu0
        %v972 = vadd.f32 %v739, %v971
        %973 = vmatprep.mubr.f32.mxu0 0.0
        %974 = vmatmul.mubr.f32.gmra.mrb[0].mxu0 %v626
        %v975 = vpop.f32.mrb[0].mxu0
        %v976 = vadd.f32 %v735, %v975
        %v977 = vpop.f32.mrb[0].mxu0
        %v978 = vadd.f32 %v739, %v977
        %979 = vdwg.mxu0
        %980 = vmatprep.subr.mxu0 %v632
        %981 = vmatpush1.msra.mxu0 %v631
        %982 = vmatprep.subr.mxu0 %v638
        %983 = vmatpush1.msra.mxu0 %v637
        %984 = vmatprep.subr.mxu0 %v644
        %985 = vmatpush1.msra.mxu0 %v643
        %986 = vmatprep.subr.mxu0 %v650
        %987 = vmatpush1.msra.mxu0 %v649
        %988 = vmatprep.subr.mxu0 %v656
        %989 = vmatpush1.msra.mxu0 %v655
        %990 = vmatprep.subr.mxu0 %v662
        %991 = vmatpush1.msra.mxu0 %v661
        %992 = vmatprep.subr.mxu0 %v668
        %993 = vmatpush1.msra.mxu0 %v667
        %994 = vmatprep.subr.mxu0 %v674
        %995 = vmatpush1.msra.mxu0 %v673
        %996 = vmatprep.subr.mxu0 %v680
        %997 = vmatpush1.msra.mxu0 %v679
        %998 = vmatprep.subr.mxu0 %v686
        %999 = vmatpush1.msra.mxu0 %v685
        %1000 = vmatprep.subr.mxu0 %v692
        %1001 = vmatpush1.msra.mxu0 %v691
        %1002 = vmatprep.subr.mxu0 %v698
        %1003 = vmatpush1.msra.mxu0 %v697
        %1004 = vmatprep.subr.mxu0 %v704
        %1005 = vmatpush1.msra.mxu0 %v703
        %1006 = vmatprep.subr.mxu0 %v710
        %1007 = vmatpush1.msra.mxu0 %v709
        %1008 = vmatprep.subr.mxu0 %v716
        %1009 = vmatpush1.msra.mxu0 %v715
        %1010 = vmatprep.subr.mxu0 %v722
        %1011 = vmatpush1.msra.mxu0 %v721
        %1012 = vmatprep.subr.mxu0 0.0
        %1013 = vmatpush1.msra.mxu0 0.0
        %1014 = vmatprep.subr.mxu0 0.0
        %1015 = vmatpush1.msra.mxu0 0.0
        %1016 = vmatprep.subr.mxu0 0.0
        %1017 = vmatpush1.msra.mxu0 0.0
        %1018 = vmatprep.subr.mxu0 0.0
        %1019 = vmatpush1.msra.mxu0 0.0
        %1020 = vmatprep.subr.mxu0 0.0
        %1021 = vmatpush1.msra.mxu0 0.0
        %1022 = vmatprep.subr.mxu0 0.0
        %1023 = vmatpush1.msra.mxu0 0.0
        %1024 = vmatprep.subr.mxu0 0.0
        %1025 = vmatpush1.msra.mxu0 0.0
        %1026 = vmatprep.subr.mxu0 0.0
        %1027 = vmatpush1.msra.mxu0 0.0
        %1028 = vmatprep.subr.mxu0 0.0
        %1029 = vmatpush1.msra.mxu0 0.0
        %1030 = vmatprep.subr.mxu0 0.0
        %1031 = vmatpush1.msra.mxu0 0.0
        %1032 = vmatprep.subr.mxu0 0.0
        %1033 = vmatpush1.msra.mxu0 0.0
        %1034 = vmatprep.subr.mxu0 0.0
        %1035 = vmatpush1.msra.mxu0 0.0
        %1036 = vmatprep.subr.mxu0 0.0
        %1037 = vmatpush1.msra.mxu0 0.0
        %1038 = vmatprep.subr.mxu0 0.0
        %1039 = vmatpush1.msra.mxu0 0.0
        %1040 = vmatprep.subr.mxu0 0.0
        %1041 = vmatpush1.msra.mxu0 0.0
        %1042 = vmatprep.subr.mxu0 0.0
        %1043 = vmatpush1.msra.mxu0 0.0
        %1044 = vmatprep.mubr.f32.mxu0 0.0
        %1045 = vmatmul.mubr.f32.gmra.mrb[0].mxu0 %v619
        %v1046 = vpop.f32.mrb[0].mxu0
        %v1047 = vadd.f32 %v743, %v1046
        %v1048 = vpop.f32.mrb[0].mxu0
        %v1049 = vadd.f32 %v747, %v1048
        %1050 = vmatprep.mubr.f32.mxu0 0.0
        %1051 = vmatmul.mubr.f32.gmra.mrb[0].mxu0 %v620
        %v1052 = vpop.f32.mrb[0].mxu0
        %v1053 = vadd.f32 %v743, %v1052
        %v1054 = vpop.f32.mrb[0].mxu0
        %v1055 = vadd.f32 %v747, %v1054
        %1056 = vmatprep.mubr.f32.mxu0 0.0
        %1057 = vmatmul.mubr.f32.gmra.mrb[0].mxu0 %v621
        %v1058 = vpop.f32.mrb[0].mxu0
        %v1059 = vadd.f32 %v743, %v1058
        %v1060 = vpop.f32.mrb[0].mxu0
        %v1061 = vadd.f32 %v747, %v1060
        %1062 = vmatprep.mubr.f32.mxu0 0.0
        %1063 = vmatmul.mubr.f32.gmra.mrb[0].mxu0 %v622
        %v1064 = vpop.f32.mrb[0].mxu0
        %v1065 = vadd.f32 %v743, %v1064
        %v1066 = vpop.f32.mrb[0].mxu0
        %v1067 = vadd.f32 %v747, %v1066
        %1068 = vmatprep.mubr.f32.mxu0 0.0
        %1069 = vmatmul.mubr.f32.gmra.mrb[0].mxu0 %v623
        %v1070 = vpop.f32.mrb[0].mxu0
        %v1071 = vadd.f32 %v743, %v1070
        %v1072 = vpop.f32.mrb[0].mxu0
        %v1073 = vadd.f32 %v747, %v1072
        %1074 = vmatprep.mubr.f32.mxu0 0.0
        %1075 = vmatmul.mubr.f32.gmra.mrb[0].mxu0 %v624
        %v1076 = vpop.f32.mrb[0].mxu0
        %v1077 = vadd.f32 %v743, %v1076
        %v1078 = vpop.f32.mrb[0].mxu0
        %v1079 = vadd.f32 %v747, %v1078
        %1080 = vmatprep.mubr.f32.mxu0 0.0
        %1081 = vmatmul.mubr.f32.gmra.mrb[0].mxu0 %v625
        %v1082 = vpop.f32.mrb[0].mxu0
        %v1083 = vadd.f32 %v743, %v1082
        %v1084 = vpop.f32.mrb[0].mxu0
        %v1085 = vadd.f32 %v747, %v1084
        %1086 = vmatprep.mubr.f32.mxu0 0.0
        %1087 = vmatmul.mubr.f32.gmra.mrb[0].mxu0 %v626
        %v1088 = vpop.f32.mrb[0].mxu0
        %v1089 = vadd.f32 %v743, %v1088
        %v1090 = vpop.f32.mrb[0].mxu0
        %v1091 = vadd.f32 %v747, %v1090
        %1092 = vdwg.mxu0
        %1093 = vst [vmem:[#allocation3] sm:$0xff] %v821
        %1094 = vst [vmem:[#allocation3 + $0x8] sm:$0xff] %v823
        %1095 = vst [vmem:[#allocation3 + $0x10] sm:$0xff] %v934
        %1096 = vst [vmem:[#allocation3 + $0x18] sm:$0xff] %v936
        %1097 = vst [vmem:[#allocation3 + $0x20] sm:$0xff] %v1047
        %1098 = vst [vmem:[#allocation3 + $0x28] sm:$0xff] %v1049
        %1099 = vst [vmem:[#allocation3 + $0x30] sm:$0xff] %v827
        %1100 = vst [vmem:[#allocation3 + $0x38] sm:$0xff] %v829
        %1101 = vst [vmem:[#allocation3 + $0x40] sm:$0xff] %v940
        %1102 = vst [vmem:[#allocation3 + $0x48] sm:$0xff] %v942
        %1103 = vst [vmem:[#allocation3 + $0x50] sm:$0xff] %v1053
        %1104 = vst [vmem:[#allocation3 + $0x58] sm:$0xff] %v1055
        %1105 = vst [vmem:[#allocation3 + $0x60] sm:$0xff] %v833
        %1106 = vst [vmem:[#allocation3 + $0x68] sm:$0xff] %v835
        %1107 = vst [vmem:[#allocation3 + $0x70] sm:$0xff] %v946
        %1108 = vst [vmem:[#allocation3 + $0x78] sm:$0xff] %v948
        %1109 = vst [vmem:[#allocation3 + $0x80] sm:$0xff] %v1059
        %1110 = vst [vmem:[#allocation3 + $0x88] sm:$0xff] %v1061
        %1111 = vst [vmem:[#allocation3 + $0x90] sm:$0xff] %v839
        %1112 = vst [vmem:[#allocation3 + $0x98] sm:$0xff] %v841
        %1113 = vst [vmem:[#allocation3 + $0xa0] sm:$0xff] %v952
        %1114 = vst [vmem:[#allocation3 + $0xa8] sm:$0xff] %v954
        %1115 = vst [vmem:[#allocation3 + $0xb0] sm:$0xff] %v1065
        %1116 = vst [vmem:[#allocation3 + $0xb8] sm:$0xff] %v1067
        %1117 = vst [vmem:[#allocation3 + $0xc0] sm:$0xff] %v845
        %1118 = vst [vmem:[#allocation3 + $0xc8] sm:$0xff] %v847
        %1119 = vst [vmem:[#allocation3 + $0xd0] sm:$0xff] %v958
        %1120 = vst [vmem:[#allocation3 + $0xd8] sm:$0xff] %v960
        %1121 = vst [vmem:[#allocation3 + $0xe0] sm:$0xff] %v1071
        %1122 = vst [vmem:[#allocation3 + $0xe8] sm:$0xff] %v1073
        %1123 = vst [vmem:[#allocation3 + $0xf0] sm:$0xff] %v851
        %1124 = vst [vmem:[#allocation3 + $0xf8] sm:$0xff] %v853
        %1125 = vst [vmem:[#allocation3 + $0x100] sm:$0xff] %v964
        %1126 = vst [vmem:[#allocation3 + $0x108] sm:$0xff] %v966
        %1127 = vst [vmem:[#allocation3 + $0x110] sm:$0xff] %v1077
        %1128 = vst [vmem:[#allocation3 + $0x118] sm:$0xff] %v1079
        %1129 = vst [vmem:[#allocation3 + $0x120] sm:$0xff] %v857
        %1130 = vst [vmem:[#allocation3 + $0x128] sm:$0xff] %v859
        %1131 = vst [vmem:[#allocation3 + $0x130] sm:$0xff] %v970
        %1132 = vst [vmem:[#allocation3 + $0x138] sm:$0xff] %v972
        %1133 = vst [vmem:[#allocation3 + $0x140] sm:$0xff] %v1083
        %1134 = vst [vmem:[#allocation3 + $0x148] sm:$0xff] %v1085
        %1135 = vst [vmem:[#allocation3 + $0x150] sm:$0xff] %v863
        %1136 = vst [vmem:[#allocation3 + $0x158] sm:$0xff] %v865
        %1137 = vst [vmem:[#allocation3 + $0x160] sm:$0xff] %v976
        %1138 = vst [vmem:[#allocation3 + $0x168] sm:$0xff] %v978
        %1139 = vst [vmem:[#allocation3 + $0x170] sm:$0xff] %v1089
        %1140 = vst [vmem:[#allocation3 + $0x178] sm:$0xff] %v1091
        loop: start=0, step=1, limit=8
        $region91: #{rnn_forward.5} parent=39 // loop_pre_header
          _
        $region92: #{rnn_forward.5} parent=39 // loop_header
          %s1142 = sphi 0, %s1146
          %p1143 = scmp.ge.s32.totalorder %s1142, 8
        $region93: #{rnn_forward.5} parent=39 // loop_header_branch
          %1145 = sbr.rel (%p1143) target = $region97
        $region94: #{rnn_forward.5} parent=39 // loop_body
          %s1147 = ssub.s32 1, %s31
          %s1148 = smul.u32 %s1147, %s1142
          %s1149 = ssub.s32 7, %s1142
          %s1150 = smul.u32 %s31, %s1149
          %s1151 = sadd.s32 %s1148, %s1150
          %s1152 = smul.u32 %s1151, 6
          %s1153 = smul.addr %s1152, 8
          %s1154 = scalar_lea.vmem [#allocation3], %s1153
          %v1155 = vld [vmem:[%s1154] sm:$0xff]
          %v1156 = vld [vmem:[%s1154 + $0x8] sm:$0xff]
          %v1157 = vld [vmem:[%s1154 + $0x10] sm:$0xff]
          %v1158 = vld [vmem:[%s1154 + $0x18] sm:$0xff]
          %v1159 = vld [vmem:[%s1154 + $0x20] sm:$0xff]
          %v1160 = vld [vmem:[%s1154 + $0x28] sm:$0xff]
          %v1161 = vld [vmem:[#allocation5] sm:$0xff]
          %v1162 = vld [vmem:[#allocation5 + $0x8] sm:$0xff]
          %1163 = vmatprep.subr.mxu0 %v364
          %1164 = vmatpush1.msra.mxu0 %v363
          %1165 = vmatprep.subr.mxu0 %v370
          %1166 = vmatpush1.msra.mxu0 %v369
          %1167 = vmatprep.subr.mxu0 %v376
          %1168 = vmatpush1.msra.mxu0 %v375
          %1169 = vmatprep.subr.mxu0 %v382
          %1170 = vmatpush1.msra.mxu0 %v381
          %1171 = vmatprep.subr.mxu0 %v388
          %1172 = vmatpush1.msra.mxu0 %v387
          %1173 = vmatprep.subr.mxu0 %v394
          %1174 = vmatpush1.msra.mxu0 %v393
          %1175 = vmatprep.subr.mxu0 %v400
          %1176 = vmatpush1.msra.mxu0 %v399
          %1177 = vmatprep.subr.mxu0 %v406
          %1178 = vmatpush1.msra.mxu0 %v405
          %1179 = vmatprep.subr.mxu0 %v412
          %1180 = vmatpush1.msra.mxu0 %v411
          %1181 = vmatprep.subr.mxu0 %v418
          %1182 = vmatpush1.msra.mxu0 %v417
          %1183 = vmatprep.subr.mxu0 %v424
          %1184 = vmatpush1.msra.mxu0 %v423
          %1185 = vmatprep.subr.mxu0 %v430
          %1186 = vmatpush1.msra.mxu0 %v429
          %1187 = vmatprep.subr.mxu0 %v436
          %1188 = vmatpush1.msra.mxu0 %v435
          %1189 = vmatprep.subr.mxu0 %v442
          %1190 = vmatpush1.msra.mxu0 %v441
          %1191 = vmatprep.subr.mxu0 %v448
          %1192 = vmatpush1.msra.mxu0 %v447
          %1193 = vmatprep.subr.mxu0 %v454
          %1194 = vmatpush1.msra.mxu0 %v453
          %1195 = vmatprep.subr.mxu0 %v460
          %1196 = vmatpush1.msra.mxu0 %v459
          %1197 = vmatprep.subr.mxu0 %v466
          %1198 = vmatpush1.msra.mxu0 %v465
          %1199 = vmatprep.subr.mxu0 %v472
          %1200 = vmatpush1.msra.mxu0 %v471
          %1201 = vmatprep.subr.mxu0 %v478
          %1202 = vmatpush1.msra.mxu0 %v477
          %1203 = vmatprep.subr.mxu0 %v484
          %1204 = vmatpush1.msra.mxu0 %v483
          %1205 = vmatprep.subr.mxu0 %v490
          %1206 = vmatpush1.msra.mxu0 %v489
          %1207 = vmatprep.subr.mxu0 %v496
          %1208 = vmatpush1.msra.mxu0 %v495
          %1209 = vmatprep.subr.mxu0 %v502
          %1210 = vmatpush1.msra.mxu0 %v501
          %1211 = vmatprep.subr.mxu0 %v508
          %1212 = vmatpush1.msra.mxu0 %v507
          %1213 = vmatprep.subr.mxu0 %v514
          %1214 = vmatpush1.msra.mxu0 %v513
          %1215 = vmatprep.subr.mxu0 %v520
          %1216 = vmatpush1.msra.mxu0 %v519
          %1217 = vmatprep.subr.mxu0 %v526
          %1218 = vmatpush1.msra.mxu0 %v525
          %1219 = vmatprep.subr.mxu0 %v532
          %1220 = vmatpush1.msra.mxu0 %v531
          %1221 = vmatprep.subr.mxu0 %v538
          %1222 = vmatpush1.msra.mxu0 %v537
          %1223 = vmatprep.subr.mxu0 %v544
          %1224 = vmatpush1.msra.mxu0 %v543
          %1225 = vmatprep.subr.mxu0 %v550
          %1226 = vmatpush1.msra.mxu0 %v549
          %1227 = vmatprep.mubr.f32.mxu0 %v1162
          %1228 = vmatmul.mubr.f32.gmra.mrb[0].mxu0 %v1161
          %v1229 = vpop.f32.mrb[0].mxu0
          %v1230 = vadd.f32 0.0, %v1229
          %v1231 = vpop.f32.mrb[0].mxu0
          %v1232 = vadd.f32 0.0, %v1231
          %1233 = vdwg.mxu0
          %1234 = vmatprep.subr.mxu0 %v366
          %1235 = vmatpush1.msra.mxu0 %v365
          %1236 = vmatprep.subr.mxu0 %v372
          %1237 = vmatpush1.msra.mxu0 %v371
          %1238 = vmatprep.subr.mxu0 %v378
          %1239 = vmatpush1.msra.mxu0 %v377
          %1240 = vmatprep.subr.mxu0 %v384
          %1241 = vmatpush1.msra.mxu0 %v383
          %1242 = vmatprep.subr.mxu0 %v390
          %1243 = vmatpush1.msra.mxu0 %v389
          %1244 = vmatprep.subr.mxu0 %v396
          %1245 = vmatpush1.msra.mxu0 %v395
          %1246 = vmatprep.subr.mxu0 %v402
          %1247 = vmatpush1.msra.mxu0 %v401
          %1248 = vmatprep.subr.mxu0 %v408
          %1249 = vmatpush1.msra.mxu0 %v407
          %1250 = vmatprep.subr.mxu0 %v414
          %1251 = vmatpush1.msra.mxu0 %v413
          %1252 = vmatprep.subr.mxu0 %v420
          %1253 = vmatpush1.msra.mxu0 %v419
          %1254 = vmatprep.subr.mxu0 %v426
          %1255 = vmatpush1.msra.mxu0 %v425
          %1256 = vmatprep.subr.mxu0 %v432
          %1257 = vmatpush1.msra.mxu0 %v431
          %1258 = vmatprep.subr.mxu0 %v438
          %1259 = vmatpush1.msra.mxu0 %v437
          %1260 = vmatprep.subr.mxu0 %v444
          %1261 = vmatpush1.msra.mxu0 %v443
          %1262 = vmatprep.subr.mxu0 %v450
          %1263 = vmatpush1.msra.mxu0 %v449
          %1264 = vmatprep.subr.mxu0 %v456
          %1265 = vmatpush1.msra.mxu0 %v455
          %1266 = vmatprep.subr.mxu0 %v462
          %1267 = vmatpush1.msra.mxu0 %v461
          %1268 = vmatprep.subr.mxu0 %v468
          %1269 = vmatpush1.msra.mxu0 %v467
          %1270 = vmatprep.subr.mxu0 %v474
          %1271 = vmatpush1.msra.mxu0 %v473
          %1272 = vmatprep.subr.mxu0 %v480
          %1273 = vmatpush1.msra.mxu0 %v479
          %1274 = vmatprep.subr.mxu0 %v486
          %1275 = vmatpush1.msra.mxu0 %v485
          %1276 = vmatprep.subr.mxu0 %v492
          %1277 = vmatpush1.msra.mxu0 %v491
          %1278 = vmatprep.subr.mxu0 %v498
          %1279 = vmatpush1.msra.mxu0 %v497
          %1280 = vmatprep.subr.mxu0 %v504
          %1281 = vmatpush1.msra.mxu0 %v503
          %1282 = vmatprep.subr.mxu0 %v510
          %1283 = vmatpush1.msra.mxu0 %v509
          %1284 = vmatprep.subr.mxu0 %v516
          %1285 = vmatpush1.msra.mxu0 %v515
          %1286 = vmatprep.subr.mxu0 %v522
          %1287 = vmatpush1.msra.mxu0 %v521
          %1288 = vmatprep.subr.mxu0 %v528
          %1289 = vmatpush1.msra.mxu0 %v527
          %1290 = vmatprep.subr.mxu0 %v534
          %1291 = vmatpush1.msra.mxu0 %v533
          %1292 = vmatprep.subr.mxu0 %v540
          %1293 = vmatpush1.msra.mxu0 %v539
          %1294 = vmatprep.subr.mxu0 %v546
          %1295 = vmatpush1.msra.mxu0 %v545
          %1296 = vmatprep.subr.mxu0 %v552
          %1297 = vmatpush1.msra.mxu0 %v551
          %1298 = vmatprep.mubr.f32.mxu0 %v1162
          %1299 = vmatmul.mubr.f32.gmra.mrb[0].mxu0 %v1161
          %v1300 = vpop.f32.mrb[0].mxu0
          %v1301 = vadd.f32 0.0, %v1300
          %v1302 = vpop.f32.mrb[0].mxu0
          %v1303 = vadd.f32 0.0, %v1302
          %1304 = vdwg.mxu0
          %1305 = vmatprep.subr.mxu0 %v368
          %1306 = vmatpush1.msra.mxu0 %v367
          %1307 = vmatprep.subr.mxu0 %v374
          %1308 = vmatpush1.msra.mxu0 %v373
          %1309 = vmatprep.subr.mxu0 %v380
          %1310 = vmatpush1.msra.mxu0 %v379
          %1311 = vmatprep.subr.mxu0 %v386
          %1312 = vmatpush1.msra.mxu0 %v385
          %1313 = vmatprep.subr.mxu0 %v392
          %1314 = vmatpush1.msra.mxu0 %v391
          %1315 = vmatprep.subr.mxu0 %v398
          %1316 = vmatpush1.msra.mxu0 %v397
          %1317 = vmatprep.subr.mxu0 %v404
          %1318 = vmatpush1.msra.mxu0 %v403
          %1319 = vmatprep.subr.mxu0 %v410
          %1320 = vmatpush1.msra.mxu0 %v409
          %1321 = vmatprep.subr.mxu0 %v416
          %1322 = vmatpush1.msra.mxu0 %v415
          %1323 = vmatprep.subr.mxu0 %v422
          %1324 = vmatpush1.msra.mxu0 %v421
          %1325 = vmatprep.subr.mxu0 %v428
          %1326 = vmatpush1.msra.mxu0 %v427
          %1327 = vmatprep.subr.mxu0 %v434
          %1328 = vmatpush1.msra.mxu0 %v433
          %1329 = vmatprep.subr.mxu0 %v440
          %1330 = vmatpush1.msra.mxu0 %v439
          %1331 = vmatprep.subr.mxu0 %v446
          %1332 = vmatpush1.msra.mxu0 %v445
          %1333 = vmatprep.subr.mxu0 %v452
          %1334 = vmatpush1.msra.mxu0 %v451
          %1335 = vmatprep.subr.mxu0 %v458
          %1336 = vmatpush1.msra.mxu0 %v457
          %1337 = vmatprep.subr.mxu0 %v464
          %1338 = vmatpush1.msra.mxu0 %v463
          %1339 = vmatprep.subr.mxu0 %v470
          %1340 = vmatpush1.msra.mxu0 %v469
          %1341 = vmatprep.subr.mxu0 %v476
          %1342 = vmatpush1.msra.mxu0 %v475
          %1343 = vmatprep.subr.mxu0 %v482
          %1344 = vmatpush1.msra.mxu0 %v481
          %1345 = vmatprep.subr.mxu0 %v488
          %1346 = vmatpush1.msra.mxu0 %v487
          %1347 = vmatprep.subr.mxu0 %v494
          %1348 = vmatpush1.msra.mxu0 %v493
          %1349 = vmatprep.subr.mxu0 %v500
          %1350 = vmatpush1.msra.mxu0 %v499
          %1351 = vmatprep.subr.mxu0 %v506
          %1352 = vmatpush1.msra.mxu0 %v505
          %1353 = vmatprep.subr.mxu0 %v512
          %1354 = vmatpush1.msra.mxu0 %v511
          %1355 = vmatprep.subr.mxu0 %v518
          %1356 = vmatpush1.msra.mxu0 %v517
          %1357 = vmatprep.subr.mxu0 %v524
          %1358 = vmatpush1.msra.mxu0 %v523
          %1359 = vmatprep.subr.mxu0 %v530
          %1360 = vmatpush1.msra.mxu0 %v529
          %1361 = vmatprep.subr.mxu0 %v536
          %1362 = vmatpush1.msra.mxu0 %v535
          %1363 = vmatprep.subr.mxu0 %v542
          %1364 = vmatpush1.msra.mxu0 %v541
          %1365 = vmatprep.subr.mxu0 %v548
          %1366 = vmatpush1.msra.mxu0 %v547
          %1367 = vmatprep.subr.mxu0 %v554
          %1368 = vmatpush1.msra.mxu0 %v553
          %1369 = vmatprep.mubr.f32.mxu0 %v1162
          %1370 = vmatmul.mubr.f32.gmra.mrb[0].mxu0 %v1161
          %v1371 = vpop.f32.mrb[0].mxu0
          %v1372 = vadd.f32 0.0, %v1371
          %v1373 = vpop.f32.mrb[0].mxu0
          %v1374 = vadd.f32 0.0, %v1373
          %1375 = vdwg.mxu0
          %v1376 = vadd.f32 %v1155, %v1230
          %v1377 = vadd.f32 %v1156, %v1232
          %v1378 = vxor.u32 %v1376, 2147483648
          %v1379 = vxor.u32 %v1377, 2147483648
          %v1380 = vmul.f32 %v1378, 1.442695
          %v1381 = vpow.pop %v1380
          %v1382 = vmul.f32 %v1379, 1.442695
          %v1383 = vpow.pop %v1382
          %v1384 = vadd.f32 %v1381, 1.0
          %v1385 = vadd.f32 %v1383, 1.0
          %v1386 = vrcp.pop %v1384
          %v1387 = vmul.f32 1.0, %v1386
          %v1388 = vrcp.pop %v1385
          %v1389 = vmul.f32 1.0, %v1388
          %v1390 = vadd.f32 %v1157, %v1301
          %v1391 = vadd.f32 %v1158, %v1303
          %v1392 = vxor.u32 %v1390, 2147483648
          %v1393 = vxor.u32 %v1391, 2147483648
          %v1394 = vmul.f32 %v1392, 1.442695
          %v1395 = vpow.pop %v1394
          %v1396 = vmul.f32 %v1393, 1.442695
          %v1397 = vpow.pop %v1396
          %v1398 = vadd.f32 %v1395, 1.0
          %v1399 = vadd.f32 %v1397, 1.0
          %v1400 = vrcp.pop %v1398
          %v1401 = vmul.f32 1.0, %v1400
          %v1402 = vrcp.pop %v1399
          %v1403 = vmul.f32 1.0, %v1402
          %v1405 = vlaneseq
          %v1406 = vshrl.u32 %v1405, 7
          %v1407 = vsub.s32 0, %v1406
          %v1408 = vrot.slane %v362, %v1407
          %v1409 = vlaneseq
          %v1410 = vshrl.u32 %v1409, 7
          %v1411 = vsub.s32 1, %v1410
          %v1412 = vrot.slane %v362, %v1411
          %v1415 = vadd.f32 %v1372, %v1408
          %v1416 = vadd.f32 %v1374, %v1412
          %v1417 = vmul.f32 %v1387, %v1415
          %v1418 = vmul.f32 %v1389, %v1416
          %v1419 = vadd.f32 %v1159, %v1417
          %v1420 = vadd.f32 %v1160, %v1418
          %v1421 = vtanh.pop %v1419
          %v1422 = vtanh.pop %v1420
          %v1423 = vsub.f32 1.0, %v1401
          %v1424 = vsub.f32 1.0, %v1403
          %v1425 = vmul.f32 %v1423, %v1421
          %v1426 = vmul.f32 %v1424, %v1422
          %v1427 = vmul.f32 %v1401, %v1161
          %v1428 = vmul.f32 %v1403, %v1162
          %v1429 = vadd.f32 %v1425, %v1427
          %v1430 = vadd.f32 %v1426, %v1428
          %v1431 = vstv %s1151
          %vm1432 = vcmp.lt.s32.totalorder %v1431, %v359
          %v1433 = vsel %vm1432, 1, 0
          %1434 = vset.pattern.permute.xlu0 0
          %1435 = vperm.xlu0 %1434, %v1433
          %v1436 = vpop.permute.xlu0 %1435
          %vm1437 = vcmp.eq.s32.totalorder %v1436, 1
          %v1438 = vsel %vm1437, %v1429, %v1161
          %v1439 = vsel %vm1437, %v1430, %v1162
          %1440 = vst [vmem:[#allocation5] sm:$0xff] %v1438
          %1441 = vst [vmem:[#allocation5 + $0x8] sm:$0xff] %v1439
          %v1442 = vsel %vm1437, %v1429, 0.0
          %v1443 = vsel %vm1437, %v1430, 0.0
          %s1444 = smul.u32 %s1151, 2
          %s1445 = smul.addr %s1444, 8
          %s1446 = scalar_lea.vmem [#allocation4], %s1445
          %1447 = vst [vmem:[%s1446] sm:$0xff] %v1442
          %1448 = vst [vmem:[%s1446 + $0x8] sm:$0xff] %v1443
          %vm1449 = vcmp.eq.s32.totalorder %v1431, %v360
          %v1450 = vld [vmem:[%s358] sm:$0xff]
          %v1451 = vld [vmem:[%s358 + $0x8] sm:$0xff]
          %v1452 = vsel %vm1449, 1, 0
          %1453 = vset.pattern.permute.xlu0 0
          %1454 = vperm.xlu0 %1453, %v1452
          %v1455 = vpop.permute.xlu0 %1454
          %vm1456 = vcmp.eq.s32.totalorder %v1455, 1
          %v1457 = vsel %vm1456, %v1438, %v1450
          %v1458 = vsel %vm1456, %v1439, %v1451
          %1459 = vst [vmem:[%s358] sm:$0xff] %v1457
          %1460 = vst [vmem:[%s358 + $0x8] sm:$0xff] %v1458
        $region95: #{rnn_forward.5} parent=39 // loop_footer
          %s1146 = sadd.s32 1, %s1142
        $region96: #{rnn_forward.5} parent=39 // loop_footer_branch
          %1141 = sbr.rel target = $region92
        $region97: #{rnn_forward.5} parent=39 // loop_exit
          _
        %s1461 = smul.u32 %s31, 8
        %s1462 = smul.u32 %s1461, 2
        %s1463 = smul.addr %s1462, 8
        %s1464 = scalar_lea.vmem %s6, %s1463
        %p1466 = scmp.lt.u32.totalorder 128, 8
        %p1467 = pneg %p1466
        // Predicated region
        $region98: #{rnn_forward.5} parent=39 // pred_check
          _
        $region99: #{rnn_forward.5} parent=39 // pred_check_branch
          %1469 = sbr.rel (%p1466) target = $region101
        $region100: #{rnn_forward.5} parent=39 // pred_region
          %s1484 = sand.u32 128, 7
          %p1485 = scmp.eq.s32.totalorder %s1484, 0
          // Predicated region
          $region113: #{rnn_forward.5} parent=100 // pred_check
            %p1486 = pneg %p1485
          $region114: #{rnn_forward.5} parent=100 // pred_check_branch
            %1488 = sbr.rel (%p1486) target = $region116
          $region115: #{rnn_forward.5} parent=100 // pred_region
            loop: start=0, step=1, limit=1
            $region117: #{rnn_forward.5} parent=115 // loop_pre_header
              _
            $region118: #{rnn_forward.5} parent=115 // loop_header
              %s1490 = sphi 0, %s1494
              %p1491 = scmp.ge.s32.totalorder %s1490, 1
              %s1495 = sphi [#allocation4], [#allocation4]
              %s1496 = sphi %s1464, %s1464
            $region119: #{rnn_forward.5} parent=115 // loop_header_branch
              %1493 = sbr.rel (%p1491) target = $region123
            $region120: #{rnn_forward.5} parent=115 // loop_body
              %v1497 = vld [vmem:[%s1495] sm:$0xff]
              %1498 = vst [vmem:[%s1496] sm:$0xff] %v1497
              %v1499 = vld [vmem:[%s1495 + $0x8] sm:$0xff]
              %1500 = vst [vmem:[%s1496 + $0x8] sm:$0xff] %v1499
              %v1501 = vld [vmem:[%s1495 + $0x10] sm:$0xff]
              %1502 = vst [vmem:[%s1496 + $0x10] sm:$0xff] %v1501
              %v1503 = vld [vmem:[%s1495 + $0x18] sm:$0xff]
              %1504 = vst [vmem:[%s1496 + $0x18] sm:$0xff] %v1503
              %v1505 = vld [vmem:[%s1495 + $0x20] sm:$0xff]
              %1506 = vst [vmem:[%s1496 + $0x20] sm:$0xff] %v1505
              %v1507 = vld [vmem:[%s1495 + $0x28] sm:$0xff]
              %1508 = vst [vmem:[%s1496 + $0x28] sm:$0xff] %v1507
              %v1509 = vld [vmem:[%s1495 + $0x30] sm:$0xff]
              %1510 = vst [vmem:[%s1496 + $0x30] sm:$0xff] %v1509
              %v1511 = vld [vmem:[%s1495 + $0x38] sm:$0xff]
              %1512 = vst [vmem:[%s1496 + $0x38] sm:$0xff] %v1511
              %v1513 = vld [vmem:[%s1495 + $0x40] sm:$0xff]
              %1514 = vst [vmem:[%s1496 + $0x40] sm:$0xff] %v1513
              %v1515 = vld [vmem:[%s1495 + $0x48] sm:$0xff]
              %1516 = vst [vmem:[%s1496 + $0x48] sm:$0xff] %v1515
              %v1517 = vld [vmem:[%s1495 + $0x50] sm:$0xff]
              %1518 = vst [vmem:[%s1496 + $0x50] sm:$0xff] %v1517
              %v1519 = vld [vmem:[%s1495 + $0x58] sm:$0xff]
              %1520 = vst [vmem:[%s1496 + $0x58] sm:$0xff] %v1519
              %v1521 = vld [vmem:[%s1495 + $0x60] sm:$0xff]
              %1522 = vst [vmem:[%s1496 + $0x60] sm:$0xff] %v1521
              %v1523 = vld [vmem:[%s1495 + $0x68] sm:$0xff]
              %1524 = vst [vmem:[%s1496 + $0x68] sm:$0xff] %v1523
              %v1525 = vld [vmem:[%s1495 + $0x70] sm:$0xff]
              %1526 = vst [vmem:[%s1496 + $0x70] sm:$0xff] %v1525
              %v1527 = vld [vmem:[%s1495 + $0x78] sm:$0xff]
              %1528 = vst [vmem:[%s1496 + $0x78] sm:$0xff] %v1527
            $region121: #{rnn_forward.5} parent=115 // loop_footer
              %s1494 = sadd.s32 1, %s1490
            $region122: #{rnn_forward.5} parent=115 // loop_footer_branch
              %1489 = sbr.rel target = $region118
            $region123: #{rnn_forward.5} parent=115 // loop_exit
              _
          $region116: #{rnn_forward.5} parent=100 // pred_fallthru
            _
          %p1529 = pneg %p1485
          // Predicated region
          $region124: #{rnn_forward.5} parent=100 // pred_check
            _
          $region125: #{rnn_forward.5} parent=100 // pred_check_branch
            %1531 = sbr.rel (%p1485) target = $region127
          $region126: #{rnn_forward.5} parent=100 // pred_region
            %s1532 = sand.u32 128, 7
          $region127: #{rnn_forward.5} parent=100 // pred_fallthru
            _
        $region101: #{rnn_forward.5} parent=39 // pred_fallthru
          _
        // Predicated region
        $region102: #{rnn_forward.5} parent=39 // pred_check
          %p1470 = pneg %p1466
        $region103: #{rnn_forward.5} parent=39 // pred_check_branch
          %1472 = sbr.rel (%p1470) target = $region105
        $region104: #{rnn_forward.5} parent=39 // pred_region
          %s1473 = sshllo.u32 0, 128
          loop: start=0, step=1, limit=1
          $region106: #{rnn_forward.5} parent=104 // loop_pre_header
            _
          $region107: #{rnn_forward.5} parent=104 // loop_header
            %s1475 = sphi 0, %s1479
            %p1476 = scmp.ge.s32.totalorder %s1475, 1
            %s1480 = sphi [#allocation4], [#allocation4]
            %s1481 = sphi %s1464, %s1464
          $region108: #{rnn_forward.5} parent=104 // loop_header_branch
            %1478 = sbr.rel (%p1476) target = $region112
          $region109: #{rnn_forward.5} parent=104 // loop_body
            %v1482 = vld [vmem:[%s1480] sm:%s1473]
            %1483 = vst [vmem:[%s1481] sm:%s1473] %v1482
          $region110: #{rnn_forward.5} parent=104 // loop_footer
            %s1479 = sadd.s32 1, %s1475
          $region111: #{rnn_forward.5} parent=104 // loop_footer_branch
            %1474 = sbr.rel target = $region107
          $region112: #{rnn_forward.5} parent=104 // loop_exit
            _
        $region105: #{rnn_forward.5} parent=39 // pred_fallthru
          _
        // Predicated region
        $region128: #{rnn_forward.5} parent=39 // pred_check
          _
        $region129: #{rnn_forward.5} parent=39 // pred_check_branch
          %1535 = sbr.rel (0) target = $region131
        $region130: #{rnn_forward.5} parent=39 // pred_region
          %1536 = vsyncadd [#allocation7], 2048
        $region131: #{rnn_forward.5} parent=39 // pred_fallthru
          _
        %s1537 = smul.u32 %s616, 2
        %s1538 = sshll.u32 %s1537, 4
        %1539 = dma.done [#allocation7], %s1538
        %s1540 = sand.u32 %s164, 1
        %s1541 = scalar_lea.sflag [#allocation10], %s1540
        %s1542 = sand.u32 %s164, 1
        %s1543 = smul.addr %s1542, 16
        %s1544 = scalar_lea.vmem [#allocation16], %s1543
        // Predicated region
        $region132: #{rnn_forward.5} parent=39 // pred_check
          %p1545 = pneg %p174
        $region133: #{rnn_forward.5} parent=39 // pred_check_branch
          %1547 = sbr.rel (%p1545) target = $region135
        $region134: #{rnn_forward.5} parent=39 // pred_region
          %s1549 = ssub.s32 256, 256
          %1550 = vsyncadd %s1541, %s1549
          %s1551 = smul.addr %s31, 2
          %s1552 = smul.addr %s1551, 128
          %s1553 = scalar_lea.hbm %s7, %s1552
          %s1555 = sshll.u32 %s1544, 4
          %s1556 = int_to_ptr.vmem [resolvable:$true] %s1555
          %1558 = dma.vmem_to_hbm [thread:$0]  %s1556, 256, %s1553, %s1541
        $region135: #{rnn_forward.5} parent=39 // pred_fallthru
          _
      $region40: #{rnn_forward.5} parent=5 // pred_fallthru
        _
      %p1559 = scmp.le.s32.totalorder 2, %s26
      // Predicated region
      $region136: #{rnn_forward.5} parent=5 // pred_check
        %p1560 = pneg %p1559
      $region137: #{rnn_forward.5} parent=5 // pred_check_branch
        %1562 = sbr.rel (%p1560) target = $region139
      $region138: #{rnn_forward.5} parent=5 // pred_region
        %s1563 = ssub.s32 %s26, 2
        // Predicated region
        $region140: #{rnn_forward.5} parent=138 // pred_check
          %p1564 = pneg %p180
        $region141: #{rnn_forward.5} parent=138 // pred_check_branch
          %1566 = sbr.rel (%p1564) target = $region143
        $region142: #{rnn_forward.5} parent=138 // pred_region
          %s1567 = sand.u32 %s165, 1
          %s1568 = scalar_lea.sflag [#allocation10], %s1567
          %s1569 = sand.u32 %s165, 1
          %s1570 = smul.addr %s1569, 16
          %s1571 = scalar_lea.vmem [#allocation16], %s1570
          %1572 = dma.done %s1568, 256
        $region143: #{rnn_forward.5} parent=138 // pred_fallthru
          _
      $region139: #{rnn_forward.5} parent=5 // pred_fallthru
        _
    $region6: #{rnn_forward.5} parent=1 // loop_footer
      %s30 = sadd.s32 1, %s26
    $region7: #{rnn_forward.5} parent=1 // loop_footer_branch
      %25 = sbr.rel target = $region3
    $region8: #{rnn_forward.5} parent=1 // loop_exit
      _
    %1573 = vsyncpa [#allocation9], 1
    %s1574 = scalar_lea.sflag [#allocation9], 1
    %1575 = vsyncpa %s1574, 1
    %1576 = vsyncpa [#allocation12], 1
    %s1577 = scalar_lea.sflag [#allocation12], 1
    %1578 = vsyncpa %s1577, 1
    %1579 = vsyncpa [#allocation15], 1
    %s1580 = scalar_lea.sflag [#allocation15], 1
    %1581 = vsyncpa %s1580, 1
    %1582 = vsyncpa [#allocation10], 1
    %s1583 = scalar_lea.sflag [#allocation10], 1
    %1584 = vsyncpa %s1583, 1
  %1585 = vsyncmov [#allocation6]
  %s1586 = vpop.sfrf %1585
  %p1587 = scmp.eq.s32.totalorder %s1586, 0
  %p1588 = pneg %p1587
  %1590 = shalt.err (%p1588)
  %s1591 = scalar_lea.sflag [#allocation6], 1
  %1592 = vsyncmov %s1591
  %s1593 = vpop.sfrf %1592
  %p1594 = scmp.eq.s32.totalorder %s1593, 0
  %p1595 = pneg %p1594
  %1597 = shalt.err (%p1595)
  %1598 = vsyncmov [#allocation7]
  %s1599 = vpop.sfrf %1598
  %p1600 = scmp.eq.s32.totalorder %s1599, 0
  %p1601 = pneg %p1600
  %1603 = shalt.err (%p1601)
  %s1604 = scalar_lea.sflag [#allocation7], 1
  %1605 = vsyncmov %s1604
  %s1606 = vpop.sfrf %1605
  %p1607 = scmp.eq.s32.totalorder %s1606, 0
  %p1608 = pneg %p1607
  %1610 = shalt.err (%p1608)

// kernel: rnn_forward.6
$region0: #{rnn_forward.6}
  #allocation0 [shape = 'u32[]', space=smem, size = 0x4, offset = 0x4, fixed_abs, tag = 'smem constant byte address 0x4 - core index']
  #allocation1 [shape = 'u32[144,128]{1,0:T(1,128)}', space=vmem, size = 0x12000, scoped, tag = 'internal scratch']
  #allocation2 [shape = 'f32[4,8,8,256]{3,2,1,0:T(8,128)}', space=vmem, size = 0x40000, scoped, tag = 'scratch operand']
  #allocation3 [shape = 'f32[8,8,768]{2,1,0:T(8,128)}', space=vmem, size = 0x30000, scoped, tag = 'scratch operand']
  #allocation4 [shape = 'f32[16,8,256]{2,1,0:T(8,128)}', space=vmem, size = 0x20000, scoped, tag = 'scratch operand']
  #allocation5 [shape = 'f32[8,256]{1,0:T(8,128)}', space=vmem, size = 0x2000, scoped, tag = 'scratch operand']
  #allocation6 [shape = 's32[4]{0}', space=sflag, size = 0x10, scoped, tag = 'scratch operand']
  #allocation7 [shape = 's32[2]{0}', space=sflag, size = 0x8, scoped, tag = 'scratch operand']
  #allocation10 [shape = 's32[]', space=sflag, size = 0x4, offset = 0, fixed_abs, tag = 'sflag constant byte address 0x0 - dummy sync flag']
  #allocation11 [shape = 's32[]', space=sflag, size = 0x4, offset = 0, fixed_abs, tag = 'sflag constant byte address 0x0 - dummy sync flag']
  #allocation12 [shape = 's32[]', space=sflag, size = 0x4, offset = 0, fixed_abs, tag = 'sflag constant byte address 0x0 - dummy sync flag']
  #allocation13 [shape = 's32[]', space=sflag, size = 0x4, offset = 0, fixed_abs, tag = 'sflag constant byte address 0x0 - dummy sync flag']
  #allocation14 [shape = 'u32[]', space=smem, size = 0x4, offset = 0x44, fixed_abs, tag = 'smem constant byte address 0x44 - assertion arg 0']
  #allocation15 [shape = 'u32[]', space=smem, size = 0x4, offset = 0x48, fixed_abs, tag = 'smem constant byte address 0x48 - assertion arg 1']
  %s0 = inlined_call_operand.vmem [shape: s32[8,1], index: 0, kind: input, shape index: {}]
  %s1 = inlined_call_operand.vmem [shape: f32[16,8,256], index: 1, kind: input, shape index: {}]
  %s2 = inlined_call_operand.hbm [shape: f32[2,512,768], index: 2, kind: input, shape index: {}]
  %s3 = inlined_call_operand.vmem [shape: f32[2,1,768], index: 3, kind: input, shape index: {}]
  %s4 = inlined_call_operand.vmem [shape: f32[2,256,768], index: 4, kind: input, shape index: {}]
  %s5 = inlined_call_operand.vmem [shape: f32[2,1,256], index: 5, kind: input, shape index: {}]
  %s6 = inlined_call_operand.hbm [shape: f32[16,8,256], index: 6, kind: output, shape index: {0}]
  %s7 = inlined_call_operand.vmem [shape: f32[2,8,256], index: 7, kind: output, shape index: {1}]
  %8 = xla_tuple %s6, %s7
  %s9 = sld [smem:[#allocation0]]
  $region136: #{rnn_forward.6} parent=0
    _
  %s11 = ssub.s32 1, %s9
  %s12 = scalar_select 0, %s11, %s9
  $region1: #{rnn_forward.6} parent=0
    #allocation8 [shape = 'u8[3145728]{0}', space=vmem, size = 0x300000, scoped, tag = 'input window, operand 2']
    #allocation9 [shape = 's32[2]{0}', space=sflag, size = 0x8, scoped, tag = 'scoped memory for rnn_forward.6']
    %13 = vsyncpa [#allocation9], 0
    %s14 = scalar_lea.sflag [#allocation9], 1
    %15 = vsyncpa %s14, 0
    loop: start=0, step=1, limit=4
    $region2: #{rnn_forward.6} parent=1 // loop_pre_header
      _
    $region3: #{rnn_forward.6} parent=1 // loop_header
      %s17 = sphi 0, %s21
      %p18 = scmp.ge.s32.totalorder %s17, 4
      %s25 = sphi 0, %s25
      %s27 = sphi 0, %s25
      %s28 = sphi 0, %s27
      %s42 = sphi 0, %s28
      %s48 = sphi 0, %s50
      %s51 = sphi 0, %s48
      %s52 = sphi 0, %s51
      %s68 = sphi 0, %s52
      %s74 = sphi 0, %s76
      %s77 = sphi 0, %s74
      %s78 = sphi 0, %s77
      %s94 = sphi 0, %s78
      %s100 = sphi 0, %s102
      %s103 = sphi 0, %s100
      %s104 = sphi 0, %s103
      %s120 = sphi 0, %s104
      %s126 = sphi 0, %s128
      %s129 = sphi 0, %s126
      %s130 = sphi 0, %s129
      %s146 = sphi 0, %s130
      %s152 = sphi 0, %s154
      %s155 = sphi 0, %s152
      %s156 = sphi 0, %s155
      %s172 = sphi 0, %s156
    $region4: #{rnn_forward.6} parent=1 // loop_header_branch
      %20 = sbr.rel (%p18) target = $region8
    $region5: #{rnn_forward.6} parent=1 // loop_body
      %s22 = ssub.s32 %s17, 1
      %s23 = ssub.s32 %s17, 2
      %s24 = sadd.s32 %s17, 1
      %s26 = sadd.s32 %s25, 1
      %p29 = scmp.eq.s32.totalorder %s17, 1
      %p30 = scmp.ne.s32.totalorder %s25, %s27
      %p31 = scmp.eq.s32.totalorder %s17, 0
      %p32 = por %p30, %p31
      %p33 = scmp.ne.s32.totalorder %s25, %s27
      %p34 = scmp.eq.s32.totalorder %s22, 1
      %p35 = por %p33, %p34
      %p36 = scmp.ne.s32.totalorder %s27, %s28
      %p37 = scmp.eq.s32.totalorder %s22, 0
      %p38 = por %p36, %p37
      %p39 = scmp.ne.s32.totalorder %s27, %s28
      %p40 = scmp.eq.s32.totalorder %s23, 1
      %p41 = por %p39, %p40
      %p43 = scmp.ne.s32.totalorder %s28, %s42
      %p44 = scmp.eq.s32.totalorder %s23, 0
      %p45 = por %p43, %p44
      %s46 = ssub.s32 %s17, %s24
      %p47 = scmp.eq.s32.totalorder %s46, 0
      %s49 = sadd.s32 %s48, 1
      %s50 = scalar_select %p47, %s48, %s49
      %p53 = pneg %p47
      %p54 = scmp.eq.s32.totalorder %s17, 1
      %p55 = por %p53, %p54
      %p56 = scmp.ne.s32.totalorder %s48, %s51
      %p57 = scmp.eq.s32.totalorder %s17, 0
      %p58 = por %p56, %p57
      %p59 = scmp.ne.s32.totalorder %s48, %s51
      %p60 = scmp.eq.s32.totalorder %s22, 1
      %p61 = por %p59, %p60
      %p62 = scmp.ne.s32.totalorder %s51, %s52
      %p63 = scmp.eq.s32.totalorder %s22, 0
      %p64 = por %p62, %p63
      %p65 = scmp.ne.s32.totalorder %s51, %s52
      %p66 = scmp.eq.s32.totalorder %s23, 1
      %p67 = por %p65, %p66
      %p69 = scmp.ne.s32.totalorder %s52, %s68
      %p70 = scmp.eq.s32.totalorder %s23, 0
      %p71 = por %p69, %p70
      %s72 = ssub.s32 %s17, %s24
      %p73 = scmp.eq.s32.totalorder %s72, 0
      %s75 = sadd.s32 %s74, 1
      %s76 = scalar_select %p73, %s74, %s75
      %p79 = pneg %p73
      %p80 = scmp.eq.s32.totalorder %s17, 1
      %p81 = por %p79, %p80
      %p82 = scmp.ne.s32.totalorder %s74, %s77
      %p83 = scmp.eq.s32.totalorder %s17, 0
      %p84 = por %p82, %p83
      %p85 = scmp.ne.s32.totalorder %s74, %s77
      %p86 = scmp.eq.s32.totalorder %s22, 1
      %p87 = por %p85, %p86
      %p88 = scmp.ne.s32.totalorder %s77, %s78
      %p89 = scmp.eq.s32.totalorder %s22, 0
      %p90 = por %p88, %p89
      %p91 = scmp.ne.s32.totalorder %s77, %s78
      %p92 = scmp.eq.s32.totalorder %s23, 1
      %p93 = por %p91, %p92
      %p95 = scmp.ne.s32.totalorder %s78, %s94
      %p96 = scmp.eq.s32.totalorder %s23, 0
      %p97 = por %p95, %p96
      %s98 = ssub.s32 %s17, %s24
      %p99 = scmp.eq.s32.totalorder %s98, 0
      %s101 = sadd.s32 %s100, 1
      %s102 = scalar_select %p99, %s100, %s101
      %p105 = pneg %p99
      %p106 = scmp.eq.s32.totalorder %s17, 1
      %p107 = por %p105, %p106
      %p108 = scmp.ne.s32.totalorder %s100, %s103
      %p109 = scmp.eq.s32.totalorder %s17, 0
      %p110 = por %p108, %p109
      %p111 = scmp.ne.s32.totalorder %s100, %s103
      %p112 = scmp.eq.s32.totalorder %s22, 1
      %p113 = por %p111, %p112
      %p114 = scmp.ne.s32.totalorder %s103, %s104
      %p115 = scmp.eq.s32.totalorder %s22, 0
      %p116 = por %p114, %p115
      %p117 = scmp.ne.s32.totalorder %s103, %s104
      %p118 = scmp.eq.s32.totalorder %s23, 1
      %p119 = por %p117, %p118
      %p121 = scmp.ne.s32.totalorder %s104, %s120
      %p122 = scmp.eq.s32.totalorder %s23, 0
      %p123 = por %p121, %p122
      %s124 = ssub.s32 %s17, %s24
      %p125 = scmp.eq.s32.totalorder %s124, 0
      %s127 = sadd.s32 %s126, 1
      %s128 = scalar_select %p125, %s126, %s127
      %p131 = pneg %p125
      %p132 = scmp.eq.s32.totalorder %s17, 1
      %p133 = por %p131, %p132
      %p134 = scmp.ne.s32.totalorder %s126, %s129
      %p135 = scmp.eq.s32.totalorder %s17, 0
      %p136 = por %p134, %p135
      %p137 = scmp.ne.s32.totalorder %s126, %s129
      %p138 = scmp.eq.s32.totalorder %s22, 1
      %p139 = por %p137, %p138
      %p140 = scmp.ne.s32.totalorder %s129, %s130
      %p141 = scmp.eq.s32.totalorder %s22, 0
      %p142 = por %p140, %p141
      %p143 = scmp.ne.s32.totalorder %s129, %s130
      %p144 = scmp.eq.s32.totalorder %s23, 1
      %p145 = por %p143, %p144
      %p147 = scmp.ne.s32.totalorder %s130, %s146
      %p148 = scmp.eq.s32.totalorder %s23, 0
      %p149 = por %p147, %p148
      %s150 = ssub.s32 %s17, %s24
      %p151 = scmp.eq.s32.totalorder %s150, 0
      %s153 = sadd.s32 %s152, 1
      %s154 = scalar_select %p151, %s152, %s153
      %p157 = pneg %p151
      %p158 = scmp.eq.s32.totalorder %s17, 1
      %p159 = por %p157, %p158
      %p160 = scmp.ne.s32.totalorder %s152, %s155
      %p161 = scmp.eq.s32.totalorder %s17, 0
      %p162 = por %p160, %p161
      %p163 = scmp.ne.s32.totalorder %s152, %s155
      %p164 = scmp.eq.s32.totalorder %s22, 1
      %p165 = por %p163, %p164
      %p166 = scmp.ne.s32.totalorder %s155, %s156
      %p167 = scmp.eq.s32.totalorder %s22, 0
      %p168 = por %p166, %p167
      %p169 = scmp.ne.s32.totalorder %s155, %s156
      %p170 = scmp.eq.s32.totalorder %s23, 1
      %p171 = por %p169, %p170
      %p173 = scmp.ne.s32.totalorder %s156, %s172
      %p174 = scmp.eq.s32.totalorder %s23, 0
      %p175 = por %p173, %p174
      %p176 = scmp.le.s32.totalorder 1, %s17
      %p177 = scmp.lt.s32.totalorder %s17, 3
      %p178 = pnand %p176, %p177
      %p179 = pneg %p178
      // Predicated region
      $region9: #{rnn_forward.6} parent=5 // pred_check
        _
      $region10: #{rnn_forward.6} parent=5 // pred_check_branch
        %181 = sbr.rel (%p178) target = $region12
      $region11: #{rnn_forward.6} parent=5 // pred_region
        %s182 = ssub.s32 %s17, 1
        // Predicated region
        $region13: #{rnn_forward.6} parent=11 // pred_check
          %p183 = pneg %p38
        $region14: #{rnn_forward.6} parent=11 // pred_check_branch
          %185 = sbr.rel (%p183) target = $region16
        $region15: #{rnn_forward.6} parent=11 // pred_region
          _
        $region16: #{rnn_forward.6} parent=11 // pred_fallthru
          _
      $region12: #{rnn_forward.6} parent=5 // pred_fallthru
        _
      %p186 = scmp.lt.s32.totalorder %s17, 2
      // Predicated region
      $region17: #{rnn_forward.6} parent=5 // pred_check
        %p187 = pneg %p186
      $region18: #{rnn_forward.6} parent=5 // pred_check_branch
        %189 = sbr.rel (%p187) target = $region20
      $region19: #{rnn_forward.6} parent=5 // pred_region
        // Predicated region
        $region21: #{rnn_forward.6} parent=19 // pred_check
          %p190 = pneg %p58
        $region22: #{rnn_forward.6} parent=19 // pred_check_branch
          %192 = sbr.rel (%p190) target = $region24
        $region23: #{rnn_forward.6} parent=19 // pred_region
          %s193 = sand.u32 %s48, 1
          %s194 = scalar_lea.sflag [#allocation9], %s193
          %s195 = sand.u32 %s48, 1
          %s196 = smul.addr %s195, 3072
          %s197 = scalar_lea.vmem [#allocation8], %s196
          %s199 = ssub.s32 49152, 49152
          %200 = vsyncadd %s194, %s199
          %s201 = smul.addr %s17, 384
          %s202 = smul.addr %s201, 128
          %s203 = scalar_lea.hbm %s2, %s202
          %s204 = sshll.u32 %s197, 4
          %s205 = int_to_ptr.vmem [resolvable:$true] %s204
          %210 = dma.hbm_to_vmem [thread:$0]  %s203, 49152, %s205, %s194, 768, 768, 48
        $region24: #{rnn_forward.6} parent=19 // pred_fallthru
          _
        // Predicated region
        $region25: #{rnn_forward.6} parent=19 // pred_check
          %p211 = pneg %p84
        $region26: #{rnn_forward.6} parent=19 // pred_check_branch
          %213 = sbr.rel (%p211) target = $region28
        $region27: #{rnn_forward.6} parent=19 // pred_region
          %p214 = scmp.lt.s32.totalorder %s17, 1
          %s215 = scalar_select %p214, %s17, 1
          %s216 = smul.addr %s215, 6
          %s217 = scalar_lea.vmem %s3, %s216
        $region28: #{rnn_forward.6} parent=19 // pred_fallthru
          _
        // Predicated region
        $region29: #{rnn_forward.6} parent=19 // pred_check
          %p218 = pneg %p110
        $region30: #{rnn_forward.6} parent=19 // pred_check_branch
          %220 = sbr.rel (%p218) target = $region32
        $region31: #{rnn_forward.6} parent=19 // pred_region
          %p221 = scmp.lt.s32.totalorder %s17, 1
          %s222 = scalar_select %p221, %s17, 1
          %s223 = smul.addr %s222, 192
          %s224 = smul.addr %s223, 8
          %s225 = scalar_lea.vmem %s4, %s224
        $region32: #{rnn_forward.6} parent=19 // pred_fallthru
          _
        // Predicated region
        $region33: #{rnn_forward.6} parent=19 // pred_check
          %p226 = pneg %p136
        $region34: #{rnn_forward.6} parent=19 // pred_check_branch
          %228 = sbr.rel (%p226) target = $region36
        $region35: #{rnn_forward.6} parent=19 // pred_region
          %p229 = scmp.lt.s32.totalorder %s17, 1
          %s230 = scalar_select %p229, %s17, 1
          %s231 = smul.addr %s230, 2
          %s232 = scalar_lea.vmem %s5, %s231
        $region36: #{rnn_forward.6} parent=19 // pred_fallthru
          _
      $region20: #{rnn_forward.6} parent=5 // pred_fallthru
        _
      %p233 = scmp.le.s32.totalorder 1, %s17
      %p234 = scmp.lt.s32.totalorder %s17, 3
      %p235 = pnand %p233, %p234
      %p236 = pneg %p235
      // Predicated region
      $region37: #{rnn_forward.6} parent=5 // pred_check
        _
      $region38: #{rnn_forward.6} parent=5 // pred_check_branch
        %238 = sbr.rel (%p235) target = $region40
      $region39: #{rnn_forward.6} parent=5 // pred_region
        %s239 = ssub.s32 %s17, 1
        %s240 = sand.u32 %s51, 1
        %s241 = scalar_lea.sflag [#allocation9], %s240
        %s242 = sand.u32 %s51, 1
        %s243 = smul.addr %s242, 3072
        %s244 = scalar_lea.vmem [#allocation8], %s243
        // Predicated region
        $region41: #{rnn_forward.6} parent=39 // pred_check
          %p245 = pneg %p64
        $region42: #{rnn_forward.6} parent=39 // pred_check_branch
          %247 = sbr.rel (%p245) target = $region44
        $region43: #{rnn_forward.6} parent=39 // pred_region
          %248 = dma.done %s241, 49152
        $region44: #{rnn_forward.6} parent=39 // pred_fallthru
          _
        %p249 = pneg %p38
        %p250 = pneg %p35
        %s251 = sand.u32 %s51, 1
        %s252 = scalar_lea.sflag [#allocation9], %s251
        %s253 = sand.u32 %s51, 1
        %s254 = smul.addr %s253, 3072
        %s255 = scalar_lea.vmem [#allocation8], %s254
        %p256 = pneg %p64
        %p257 = pneg %p61
        %p258 = scmp.lt.s32.totalorder %s22, 1
        %s259 = scalar_select %p258, %s22, 1
        %s260 = smul.addr %s259, 6
        %s261 = scalar_lea.vmem %s3, %s260
        %p262 = pneg %p90
        %p263 = pneg %p87
        %p264 = scmp.lt.s32.totalorder %s22, 1
        %s265 = scalar_select %p264, %s22, 1
        %s266 = smul.addr %s265, 192
        %s267 = smul.addr %s266, 8
        %s268 = scalar_lea.vmem %s4, %s267
        %p269 = pneg %p116
        %p270 = pneg %p113
        %p271 = scmp.lt.s32.totalorder %s22, 1
        %s272 = scalar_select %p271, %s22, 1
        %s273 = smul.addr %s272, 2
        %s274 = scalar_lea.vmem %s5, %s273
        %p275 = pneg %p142
        %p276 = pneg %p139
        %p277 = pneg %p168
        %p278 = pneg %p165
        %p279 = scmp.lt.s32.totalorder %s22, 1
        %s280 = scalar_select %p279, %s22, 1
        %s281 = smul.addr %s280, 2
        %s282 = smul.addr %s281, 8
        %s283 = scalar_lea.vmem %s7, %s282
        %p284 = scmp.lt.s32.totalorder %s22, 1
        %s285 = scalar_select %p284, %s22, 1
        %s286 = smul.addr %s285, 6
        %s287 = scalar_lea.vmem %s3, %s286
        %p288 = scmp.lt.s32.totalorder %s22, 1
        %s289 = scalar_select %p288, %s22, 1
        %s290 = smul.addr %s289, 192
        %s291 = smul.addr %s290, 8
        %s292 = scalar_lea.vmem %s4, %s291
        %p293 = scmp.lt.s32.totalorder %s22, 1
        %s294 = scalar_select %p293, %s22, 1
        %s295 = smul.addr %s294, 2
        %s296 = scalar_lea.vmem %s5, %s295
        %p297 = scmp.lt.s32.totalorder %s22, 1
        %s298 = scalar_select %p297, %s22, 1
        %s299 = smul.addr %s298, 2
        %s300 = smul.addr %s299, 8
        %s301 = scalar_lea.vmem %s7, %s300
        %v302 = vld [vmem:[%s0] sm:$0xff]
        %v303 = vsub.s32 %v302, 1
        %v304 = vld [vmem:[%s287] sm:$0x3f]
        %v305 = vld [vmem:[%s296] sm:$0x3]
        %v306 = vld [vmem:[%s292] sm:$0xff]
        %v307 = vld [vmem:[%s292 + $0x8] sm:$0xff]
        %v308 = vld [vmem:[%s292 + $0x10] sm:$0xff]
        %v309 = vld [vmem:[%s292 + $0x18] sm:$0xff]
        %v310 = vld [vmem:[%s292 + $0x20] sm:$0xff]
        %v311 = vld [vmem:[%s292 + $0x28] sm:$0xff]
        %v312 = vld [vmem:[%s292 + $0x30] sm:$0xff]
        %v313 = vld [vmem:[%s292 + $0x38] sm:$0xff]
        %v314 = vld [vmem:[%s292 + $0x40] sm:$0xff]
        %v315 = vld [vmem:[%s292 + $0x48] sm:$0xff]
        %v316 = vld [vmem:[%s292 + $0x50] sm:$0xff]
        %v317 = vld [vmem:[%s292 + $0x58] sm:$0xff]
        %v318 = vld [vmem:[%s292 + $0x60] sm:$0xff]
        %v319 = vld [vmem:[%s292 + $0x68] sm:$0xff]
        %v320 = vld [vmem:[%s292 + $0x70] sm:$0xff]
        %v321 = vld [vmem:[%s292 + $0x78] sm:$0xff]
        %v322 = vld [vmem:[%s292 + $0x80] sm:$0xff]
        %v323 = vld [vmem:[%s292 + $0x88] sm:$0xff]
        %v324 = vld [vmem:[%s292 + $0x90] sm:$0xff]
        %v325 = vld [vmem:[%s292 + $0x98] sm:$0xff]
        %v326 = vld [vmem:[%s292 + $0xa0] sm:$0xff]
        %v327 = vld [vmem:[%s292 + $0xa8] sm:$0xff]
        %v328 = vld [vmem:[%s292 + $0xb0] sm:$0xff]
        %v329 = vld [vmem:[%s292 + $0xb8] sm:$0xff]
        %v330 = vld [vmem:[%s292 + $0xc0] sm:$0xff]
        %v331 = vld [vmem:[%s292 + $0xc8] sm:$0xff]
        %v332 = vld [vmem:[%s292 + $0xd0] sm:$0xff]
        %v333 = vld [vmem:[%s292 + $0xd8] sm:$0xff]
        %v334 = vld [vmem:[%s292 + $0xe0] sm:$0xff]
        %v335 = vld [vmem:[%s292 + $0xe8] sm:$0xff]
        %v336 = vld [vmem:[%s292 + $0xf0] sm:$0xff]
        %v337 = vld [vmem:[%s292 + $0xf8] sm:$0xff]
        %v338 = vld [vmem:[%s292 + $0x100] sm:$0xff]
        %v339 = vld [vmem:[%s292 + $0x108] sm:$0xff]
        %v340 = vld [vmem:[%s292 + $0x110] sm:$0xff]
        %v341 = vld [vmem:[%s292 + $0x118] sm:$0xff]
        %v342 = vld [vmem:[%s292 + $0x120] sm:$0xff]
        %v343 = vld [vmem:[%s292 + $0x128] sm:$0xff]
        %v344 = vld [vmem:[%s292 + $0x130] sm:$0xff]
        %v345 = vld [vmem:[%s292 + $0x138] sm:$0xff]
        %v346 = vld [vmem:[%s292 + $0x140] sm:$0xff]
        %v347 = vld [vmem:[%s292 + $0x148] sm:$0xff]
        %v348 = vld [vmem:[%s292 + $0x150] sm:$0xff]
        %v349 = vld [vmem:[%s292 + $0x158] sm:$0xff]
        %v350 = vld [vmem:[%s292 + $0x160] sm:$0xff]
        %v351 = vld [vmem:[%s292 + $0x168] sm:$0xff]
        %v352 = vld [vmem:[%s292 + $0x170] sm:$0xff]
        %v353 = vld [vmem:[%s292 + $0x178] sm:$0xff]
        %v354 = vld [vmem:[%s292 + $0x180] sm:$0xff]
        %v355 = vld [vmem:[%s292 + $0x188] sm:$0xff]
        %v356 = vld [vmem:[%s292 + $0x190] sm:$0xff]
        %v357 = vld [vmem:[%s292 + $0x198] sm:$0xff]
        %v358 = vld [vmem:[%s292 + $0x1a0] sm:$0xff]
        %v359 = vld [vmem:[%s292 + $0x1a8] sm:$0xff]
        %v360 = vld [vmem:[%s292 + $0x1b0] sm:$0xff]
        %v361 = vld [vmem:[%s292 + $0x1b8] sm:$0xff]
        %v362 = vld [vmem:[%s292 + $0x1c0] sm:$0xff]
        %v363 = vld [vmem:[%s292 + $0x1c8] sm:$0xff]
        %v364 = vld [vmem:[%s292 + $0x1d0] sm:$0xff]
        %v365 = vld [vmem:[%s292 + $0x1d8] sm:$0xff]
        %v366 = vld [vmem:[%s292 + $0x1e0] sm:$0xff]
        %v367 = vld [vmem:[%s292 + $0x1e8] sm:$0xff]
        %v368 = vld [vmem:[%s292 + $0x1f0] sm:$0xff]
        %v369 = vld [vmem:[%s292 + $0x1f8] sm:$0xff]
        %v370 = vld [vmem:[%s292 + $0x200] sm:$0xff]
        %v371 = vld [vmem:[%s292 + $0x208] sm:$0xff]
        %v372 = vld [vmem:[%s292 + $0x210] sm:$0xff]
        %v373 = vld [vmem:[%s292 + $0x218] sm:$0xff]
        %v374 = vld [vmem:[%s292 + $0x220] sm:$0xff]
        %v375 = vld [vmem:[%s292 + $0x228] sm:$0xff]
        %v376 = vld [vmem:[%s292 + $0x230] sm:$0xff]
        %v377 = vld [vmem:[%s292 + $0x238] sm:$0xff]
        %v378 = vld [vmem:[%s292 + $0x240] sm:$0xff]
        %v379 = vld [vmem:[%s292 + $0x248] sm:$0xff]
        %v380 = vld [vmem:[%s292 + $0x250] sm:$0xff]
        %v381 = vld [vmem:[%s292 + $0x258] sm:$0xff]
        %v382 = vld [vmem:[%s292 + $0x260] sm:$0xff]
        %v383 = vld [vmem:[%s292 + $0x268] sm:$0xff]
        %v384 = vld [vmem:[%s292 + $0x270] sm:$0xff]
        %v385 = vld [vmem:[%s292 + $0x278] sm:$0xff]
        %v386 = vld [vmem:[%s292 + $0x280] sm:$0xff]
        %v387 = vld [vmem:[%s292 + $0x288] sm:$0xff]
        %v388 = vld [vmem:[%s292 + $0x290] sm:$0xff]
        %v389 = vld [vmem:[%s292 + $0x298] sm:$0xff]
        %v390 = vld [vmem:[%s292 + $0x2a0] sm:$0xff]
        %v391 = vld [vmem:[%s292 + $0x2a8] sm:$0xff]
        %v392 = vld [vmem:[%s292 + $0x2b0] sm:$0xff]
        %v393 = vld [vmem:[%s292 + $0x2b8] sm:$0xff]
        %v394 = vld [vmem:[%s292 + $0x2c0] sm:$0xff]
        %v395 = vld [vmem:[%s292 + $0x2c8] sm:$0xff]
        %v396 = vld [vmem:[%s292 + $0x2d0] sm:$0xff]
        %v397 = vld [vmem:[%s292 + $0x2d8] sm:$0xff]
        %v398 = vld [vmem:[%s292 + $0x2e0] sm:$0xff]
        %v399 = vld [vmem:[%s292 + $0x2e8] sm:$0xff]
        %v400 = vld [vmem:[%s292 + $0x2f0] sm:$0xff]
        %v401 = vld [vmem:[%s292 + $0x2f8] sm:$0xff]
        %v402 = vld [vmem:[%s292 + $0x300] sm:$0xff]
        %v403 = vld [vmem:[%s292 + $0x308] sm:$0xff]
        %v404 = vld [vmem:[%s292 + $0x310] sm:$0xff]
        %v405 = vld [vmem:[%s292 + $0x318] sm:$0xff]
        %v406 = vld [vmem:[%s292 + $0x320] sm:$0xff]
        %v407 = vld [vmem:[%s292 + $0x328] sm:$0xff]
        %v408 = vld [vmem:[%s292 + $0x330] sm:$0xff]
        %v409 = vld [vmem:[%s292 + $0x338] sm:$0xff]
        %v410 = vld [vmem:[%s292 + $0x340] sm:$0xff]
        %v411 = vld [vmem:[%s292 + $0x348] sm:$0xff]
        %v412 = vld [vmem:[%s292 + $0x350] sm:$0xff]
        %v413 = vld [vmem:[%s292 + $0x358] sm:$0xff]
        %v414 = vld [vmem:[%s292 + $0x360] sm:$0xff]
        %v415 = vld [vmem:[%s292 + $0x368] sm:$0xff]
        %v416 = vld [vmem:[%s292 + $0x370] sm:$0xff]
        %v417 = vld [vmem:[%s292 + $0x378] sm:$0xff]
        %v418 = vld [vmem:[%s292 + $0x380] sm:$0xff]
        %v419 = vld [vmem:[%s292 + $0x388] sm:$0xff]
        %v420 = vld [vmem:[%s292 + $0x390] sm:$0xff]
        %v421 = vld [vmem:[%s292 + $0x398] sm:$0xff]
        %v422 = vld [vmem:[%s292 + $0x3a0] sm:$0xff]
        %v423 = vld [vmem:[%s292 + $0x3a8] sm:$0xff]
        %v424 = vld [vmem:[%s292 + $0x3b0] sm:$0xff]
        %v425 = vld [vmem:[%s292 + $0x3b8] sm:$0xff]
        %v426 = vld [vmem:[%s292 + $0x3c0] sm:$0xff]
        %v427 = vld [vmem:[%s292 + $0x3c8] sm:$0xff]
        %v428 = vld [vmem:[%s292 + $0x3d0] sm:$0xff]
        %v429 = vld [vmem:[%s292 + $0x3d8] sm:$0xff]
        %v430 = vld [vmem:[%s292 + $0x3e0] sm:$0xff]
        %v431 = vld [vmem:[%s292 + $0x3e8] sm:$0xff]
        %v432 = vld [vmem:[%s292 + $0x3f0] sm:$0xff]
        %v433 = vld [vmem:[%s292 + $0x3f8] sm:$0xff]
        %v434 = vld [vmem:[%s292 + $0x400] sm:$0xff]
        %v435 = vld [vmem:[%s292 + $0x408] sm:$0xff]
        %v436 = vld [vmem:[%s292 + $0x410] sm:$0xff]
        %v437 = vld [vmem:[%s292 + $0x418] sm:$0xff]
        %v438 = vld [vmem:[%s292 + $0x420] sm:$0xff]
        %v439 = vld [vmem:[%s292 + $0x428] sm:$0xff]
        %v440 = vld [vmem:[%s292 + $0x430] sm:$0xff]
        %v441 = vld [vmem:[%s292 + $0x438] sm:$0xff]
        %v442 = vld [vmem:[%s292 + $0x440] sm:$0xff]
        %v443 = vld [vmem:[%s292 + $0x448] sm:$0xff]
        %v444 = vld [vmem:[%s292 + $0x450] sm:$0xff]
        %v445 = vld [vmem:[%s292 + $0x458] sm:$0xff]
        %v446 = vld [vmem:[%s292 + $0x460] sm:$0xff]
        %v447 = vld [vmem:[%s292 + $0x468] sm:$0xff]
        %v448 = vld [vmem:[%s292 + $0x470] sm:$0xff]
        %v449 = vld [vmem:[%s292 + $0x478] sm:$0xff]
        %v450 = vld [vmem:[%s292 + $0x480] sm:$0xff]
        %v451 = vld [vmem:[%s292 + $0x488] sm:$0xff]
        %v452 = vld [vmem:[%s292 + $0x490] sm:$0xff]
        %v453 = vld [vmem:[%s292 + $0x498] sm:$0xff]
        %v454 = vld [vmem:[%s292 + $0x4a0] sm:$0xff]
        %v455 = vld [vmem:[%s292 + $0x4a8] sm:$0xff]
        %v456 = vld [vmem:[%s292 + $0x4b0] sm:$0xff]
        %v457 = vld [vmem:[%s292 + $0x4b8] sm:$0xff]
        %v458 = vld [vmem:[%s292 + $0x4c0] sm:$0xff]
        %v459 = vld [vmem:[%s292 + $0x4c8] sm:$0xff]
        %v460 = vld [vmem:[%s292 + $0x4d0] sm:$0xff]
        %v461 = vld [vmem:[%s292 + $0x4d8] sm:$0xff]
        %v462 = vld [vmem:[%s292 + $0x4e0] sm:$0xff]
        %v463 = vld [vmem:[%s292 + $0x4e8] sm:$0xff]
        %v464 = vld [vmem:[%s292 + $0x4f0] sm:$0xff]
        %v465 = vld [vmem:[%s292 + $0x4f8] sm:$0xff]
        %v466 = vld [vmem:[%s292 + $0x500] sm:$0xff]
        %v467 = vld [vmem:[%s292 + $0x508] sm:$0xff]
        %v468 = vld [vmem:[%s292 + $0x510] sm:$0xff]
        %v469 = vld [vmem:[%s292 + $0x518] sm:$0xff]
        %v470 = vld [vmem:[%s292 + $0x520] sm:$0xff]
        %v471 = vld [vmem:[%s292 + $0x528] sm:$0xff]
        %v472 = vld [vmem:[%s292 + $0x530] sm:$0xff]
        %v473 = vld [vmem:[%s292 + $0x538] sm:$0xff]
        %v474 = vld [vmem:[%s292 + $0x540] sm:$0xff]
        %v475 = vld [vmem:[%s292 + $0x548] sm:$0xff]
        %v476 = vld [vmem:[%s292 + $0x550] sm:$0xff]
        %v477 = vld [vmem:[%s292 + $0x558] sm:$0xff]
        %v478 = vld [vmem:[%s292 + $0x560] sm:$0xff]
        %v479 = vld [vmem:[%s292 + $0x568] sm:$0xff]
        %v480 = vld [vmem:[%s292 + $0x570] sm:$0xff]
        %v481 = vld [vmem:[%s292 + $0x578] sm:$0xff]
        %v482 = vld [vmem:[%s292 + $0x580] sm:$0xff]
        %v483 = vld [vmem:[%s292 + $0x588] sm:$0xff]
        %v484 = vld [vmem:[%s292 + $0x590] sm:$0xff]
        %v485 = vld [vmem:[%s292 + $0x598] sm:$0xff]
        %v486 = vld [vmem:[%s292 + $0x5a0] sm:$0xff]
        %v487 = vld [vmem:[%s292 + $0x5a8] sm:$0xff]
        %v488 = vld [vmem:[%s292 + $0x5b0] sm:$0xff]
        %v489 = vld [vmem:[%s292 + $0x5b8] sm:$0xff]
        %v490 = vld [vmem:[%s292 + $0x5c0] sm:$0xff]
        %v491 = vld [vmem:[%s292 + $0x5c8] sm:$0xff]
        %v492 = vld [vmem:[%s292 + $0x5d0] sm:$0xff]
        %v493 = vld [vmem:[%s292 + $0x5d8] sm:$0xff]
        %v494 = vld [vmem:[%s292 + $0x5e0] sm:$0xff]
        %v495 = vld [vmem:[%s292 + $0x5e8] sm:$0xff]
        %v496 = vld [vmem:[%s292 + $0x5f0] sm:$0xff]
        %v497 = vld [vmem:[%s292 + $0x5f8] sm:$0xff]
        %498 = vst [vmem:[#allocation5] sm:$0xff] 0.0
        %499 = vst [vmem:[#allocation5 + $0x8] sm:$0xff] 0.0
        %500 = vst [vmem:[%s301] sm:$0xff] 0.0
        %501 = vst [vmem:[%s301 + $0x8] sm:$0xff] 0.0
        %p503 = scmp.lt.u32.totalorder 128, 8
        %p504 = pneg %p503
        // Predicated region
        $region45: #{rnn_forward.6} parent=39 // pred_check
          _
        $region46: #{rnn_forward.6} parent=39 // pred_check_branch
          %506 = sbr.rel (%p503) target = $region48
        $region47: #{rnn_forward.6} parent=39 // pred_region
          %s521 = sand.u32 128, 7
          %p522 = scmp.eq.s32.totalorder %s521, 0
          // Predicated region
          $region60: #{rnn_forward.6} parent=47 // pred_check
            %p523 = pneg %p522
          $region61: #{rnn_forward.6} parent=47 // pred_check_branch
            %525 = sbr.rel (%p523) target = $region63
          $region62: #{rnn_forward.6} parent=47 // pred_region
            loop: start=0, step=1, limit=1
            $region64: #{rnn_forward.6} parent=62 // loop_pre_header
              _
            $region65: #{rnn_forward.6} parent=62 // loop_header
              %s527 = sphi 0, %s531
              %p528 = scmp.ge.s32.totalorder %s527, 1
              %s532 = sphi %s1, %s1
              %s533 = sphi [#allocation2], [#allocation2]
            $region66: #{rnn_forward.6} parent=62 // loop_header_branch
              %530 = sbr.rel (%p528) target = $region70
            $region67: #{rnn_forward.6} parent=62 // loop_body
              %v534 = vld [vmem:[%s532] sm:$0xff]
              %535 = vst [vmem:[%s533] sm:$0xff] %v534
              %v536 = vld [vmem:[%s532 + $0x8] sm:$0xff]
              %537 = vst [vmem:[%s533 + $0x8] sm:$0xff] %v536
              %v538 = vld [vmem:[%s532 + $0x10] sm:$0xff]
              %539 = vst [vmem:[%s533 + $0x10] sm:$0xff] %v538
              %v540 = vld [vmem:[%s532 + $0x18] sm:$0xff]
              %541 = vst [vmem:[%s533 + $0x18] sm:$0xff] %v540
              %v542 = vld [vmem:[%s532 + $0x20] sm:$0xff]
              %543 = vst [vmem:[%s533 + $0x20] sm:$0xff] %v542
              %v544 = vld [vmem:[%s532 + $0x28] sm:$0xff]
              %545 = vst [vmem:[%s533 + $0x28] sm:$0xff] %v544
              %v546 = vld [vmem:[%s532 + $0x30] sm:$0xff]
              %547 = vst [vmem:[%s533 + $0x30] sm:$0xff] %v546
              %v548 = vld [vmem:[%s532 + $0x38] sm:$0xff]
              %549 = vst [vmem:[%s533 + $0x38] sm:$0xff] %v548
              %v550 = vld [vmem:[%s532 + $0x40] sm:$0xff]
              %551 = vst [vmem:[%s533 + $0x40] sm:$0xff] %v550
              %v552 = vld [vmem:[%s532 + $0x48] sm:$0xff]
              %553 = vst [vmem:[%s533 + $0x48] sm:$0xff] %v552
              %v554 = vld [vmem:[%s532 + $0x50] sm:$0xff]
              %555 = vst [vmem:[%s533 + $0x50] sm:$0xff] %v554
              %v556 = vld [vmem:[%s532 + $0x58] sm:$0xff]
              %557 = vst [vmem:[%s533 + $0x58] sm:$0xff] %v556
              %v558 = vld [vmem:[%s532 + $0x60] sm:$0xff]
              %559 = vst [vmem:[%s533 + $0x60] sm:$0xff] %v558
              %v560 = vld [vmem:[%s532 + $0x68] sm:$0xff]
              %561 = vst [vmem:[%s533 + $0x68] sm:$0xff] %v560
              %v562 = vld [vmem:[%s532 + $0x70] sm:$0xff]
              %563 = vst [vmem:[%s533 + $0x70] sm:$0xff] %v562
              %v564 = vld [vmem:[%s532 + $0x78] sm:$0xff]
              %565 = vst [vmem:[%s533 + $0x78] sm:$0xff] %v564
            $region68: #{rnn_forward.6} parent=62 // loop_footer
              %s531 = sadd.s32 1, %s527
            $region69: #{rnn_forward.6} parent=62 // loop_footer_branch
              %526 = sbr.rel target = $region65
            $region70: #{rnn_forward.6} parent=62 // loop_exit
              _
          $region63: #{rnn_forward.6} parent=47 // pred_fallthru
            _
          %p566 = pneg %p522
          // Predicated region
          $region71: #{rnn_forward.6} parent=47 // pred_check
            _
          $region72: #{rnn_forward.6} parent=47 // pred_check_branch
            %568 = sbr.rel (%p522) target = $region74
          $region73: #{rnn_forward.6} parent=47 // pred_region
            %s569 = sand.u32 128, 7
          $region74: #{rnn_forward.6} parent=47 // pred_fallthru
            _
        $region48: #{rnn_forward.6} parent=39 // pred_fallthru
          _
        // Predicated region
        $region49: #{rnn_forward.6} parent=39 // pred_check
          %p507 = pneg %p503
        $region50: #{rnn_forward.6} parent=39 // pred_check_branch
          %509 = sbr.rel (%p507) target = $region52
        $region51: #{rnn_forward.6} parent=39 // pred_region
          %s510 = sshllo.u32 0, 128
          loop: start=0, step=1, limit=1
          $region53: #{rnn_forward.6} parent=51 // loop_pre_header
            _
          $region54: #{rnn_forward.6} parent=51 // loop_header
            %s512 = sphi 0, %s516
            %p513 = scmp.ge.s32.totalorder %s512, 1
            %s517 = sphi %s1, %s1
            %s518 = sphi [#allocation2], [#allocation2]
          $region55: #{rnn_forward.6} parent=51 // loop_header_branch
            %515 = sbr.rel (%p513) target = $region59
          $region56: #{rnn_forward.6} parent=51 // loop_body
            %v519 = vld [vmem:[%s517] sm:%s510]
            %520 = vst [vmem:[%s518] sm:%s510] %v519
          $region57: #{rnn_forward.6} parent=51 // loop_footer
            %s516 = sadd.s32 1, %s512
          $region58: #{rnn_forward.6} parent=51 // loop_footer_branch
            %511 = sbr.rel target = $region54
          $region59: #{rnn_forward.6} parent=51 // loop_exit
            _
        $region52: #{rnn_forward.6} parent=39 // pred_fallthru
          _
        // Predicated region
        $region75: #{rnn_forward.6} parent=39 // pred_check
          _
        $region76: #{rnn_forward.6} parent=39 // pred_check_branch
          %572 = sbr.rel (0) target = $region78
        $region77: #{rnn_forward.6} parent=39 // pred_region
          %573 = vsyncadd [#allocation6], 2048
        $region78: #{rnn_forward.6} parent=39 // pred_fallthru
          _
        %s574 = scalar_lea.vmem %s1, 128
        %s575 = scalar_lea.vmem [#allocation2], 128
        %s576 = scalar_lea.sflag [#allocation6], 1
        %p578 = scmp.lt.u32.totalorder 128, 8
        %p579 = pneg %p578
        // Predicated region
        $region79: #{rnn_forward.6} parent=39 // pred_check
          _
        $region80: #{rnn_forward.6} parent=39 // pred_check_branch
          %581 = sbr.rel (%p578) target = $region82
        $region81: #{rnn_forward.6} parent=39 // pred_region
          %s596 = sand.u32 128, 7
          %p597 = scmp.eq.s32.totalorder %s596, 0
          // Predicated region
          $region94: #{rnn_forward.6} parent=81 // pred_check
            %p598 = pneg %p597
          $region95: #{rnn_forward.6} parent=81 // pred_check_branch
            %600 = sbr.rel (%p598) target = $region97
          $region96: #{rnn_forward.6} parent=81 // pred_region
            loop: start=0, step=1, limit=1
            $region98: #{rnn_forward.6} parent=96 // loop_pre_header
              _
            $region99: #{rnn_forward.6} parent=96 // loop_header
              %s602 = sphi 0, %s606
              %p603 = scmp.ge.s32.totalorder %s602, 1
              %s607 = sphi %s574, %s574
              %s608 = sphi %s575, %s575
            $region100: #{rnn_forward.6} parent=96 // loop_header_branch
              %605 = sbr.rel (%p603) target = $region104
            $region101: #{rnn_forward.6} parent=96 // loop_body
              %v609 = vld [vmem:[%s607] sm:$0xff]
              %610 = vst [vmem:[%s608] sm:$0xff] %v609
              %v611 = vld [vmem:[%s607 + $0x8] sm:$0xff]
              %612 = vst [vmem:[%s608 + $0x8] sm:$0xff] %v611
              %v613 = vld [vmem:[%s607 + $0x10] sm:$0xff]
              %614 = vst [vmem:[%s608 + $0x10] sm:$0xff] %v613
              %v615 = vld [vmem:[%s607 + $0x18] sm:$0xff]
              %616 = vst [vmem:[%s608 + $0x18] sm:$0xff] %v615
              %v617 = vld [vmem:[%s607 + $0x20] sm:$0xff]
              %618 = vst [vmem:[%s608 + $0x20] sm:$0xff] %v617
              %v619 = vld [vmem:[%s607 + $0x28] sm:$0xff]
              %620 = vst [vmem:[%s608 + $0x28] sm:$0xff] %v619
              %v621 = vld [vmem:[%s607 + $0x30] sm:$0xff]
              %622 = vst [vmem:[%s608 + $0x30] sm:$0xff] %v621
              %v623 = vld [vmem:[%s607 + $0x38] sm:$0xff]
              %624 = vst [vmem:[%s608 + $0x38] sm:$0xff] %v623
              %v625 = vld [vmem:[%s607 + $0x40] sm:$0xff]
              %626 = vst [vmem:[%s608 + $0x40] sm:$0xff] %v625
              %v627 = vld [vmem:[%s607 + $0x48] sm:$0xff]
              %628 = vst [vmem:[%s608 + $0x48] sm:$0xff] %v627
              %v629 = vld [vmem:[%s607 + $0x50] sm:$0xff]
              %630 = vst [vmem:[%s608 + $0x50] sm:$0xff] %v629
              %v631 = vld [vmem:[%s607 + $0x58] sm:$0xff]
              %632 = vst [vmem:[%s608 + $0x58] sm:$0xff] %v631
              %v633 = vld [vmem:[%s607 + $0x60] sm:$0xff]
              %634 = vst [vmem:[%s608 + $0x60] sm:$0xff] %v633
              %v635 = vld [vmem:[%s607 + $0x68] sm:$0xff]
              %636 = vst [vmem:[%s608 + $0x68] sm:$0xff] %v635
              %v637 = vld [vmem:[%s607 + $0x70] sm:$0xff]
              %638 = vst [vmem:[%s608 + $0x70] sm:$0xff] %v637
              %v639 = vld [vmem:[%s607 + $0x78] sm:$0xff]
              %640 = vst [vmem:[%s608 + $0x78] sm:$0xff] %v639
            $region102: #{rnn_forward.6} parent=96 // loop_footer
              %s606 = sadd.s32 1, %s602
            $region103: #{rnn_forward.6} parent=96 // loop_footer_branch
              %601 = sbr.rel target = $region99
            $region104: #{rnn_forward.6} parent=96 // loop_exit
              _
          $region97: #{rnn_forward.6} parent=81 // pred_fallthru
            _
          %p641 = pneg %p597
          // Predicated region
          $region105: #{rnn_forward.6} parent=81 // pred_check
            _
          $region106: #{rnn_forward.6} parent=81 // pred_check_branch
            %643 = sbr.rel (%p597) target = $region108
          $region107: #{rnn_forward.6} parent=81 // pred_region
            %s644 = sand.u32 128, 7
          $region108: #{rnn_forward.6} parent=81 // pred_fallthru
            _
        $region82: #{rnn_forward.6} parent=39 // pred_fallthru
          _
        // Predicated region
        $region83: #{rnn_forward.6} parent=39 // pred_check
          %p582 = pneg %p578
        $region84: #{rnn_forward.6} parent=39 // pred_check_branch
          %584 = sbr.rel (%p582) target = $region86
        $region85: #{rnn_forward.6} parent=39 // pred_region
          %s585 = sshllo.u32 0, 128
          loop: start=0, step=1, limit=1
          $region87: #{rnn_forward.6} parent=85 // loop_pre_header
            _
          $region88: #{rnn_forward.6} parent=85 // loop_header
            %s587 = sphi 0, %s591
            %p588 = scmp.ge.s32.totalorder %s587, 1
            %s592 = sphi %s574, %s574
            %s593 = sphi %s575, %s575
          $region89: #{rnn_forward.6} parent=85 // loop_header_branch
            %590 = sbr.rel (%p588) target = $region93
          $region90: #{rnn_forward.6} parent=85 // loop_body
            %v594 = vld [vmem:[%s592] sm:%s585]
            %595 = vst [vmem:[%s593] sm:%s585] %v594
          $region91: #{rnn_forward.6} parent=85 // loop_footer
            %s591 = sadd.s32 1, %s587
          $region92: #{rnn_forward.6} parent=85 // loop_footer_branch
            %586 = sbr.rel target = $region88
          $region93: #{rnn_forward.6} parent=85 // loop_exit
            _
        $region86: #{rnn_forward.6} parent=39 // pred_fallthru
          _
        // Predicated region
        $region109: #{rnn_forward.6} parent=39 // pred_check
          _
        $region110: #{rnn_forward.6} parent=39 // pred_check_branch
          %647 = sbr.rel (0) target = $region112
        $region111: #{rnn_forward.6} parent=39 // pred_region
          %648 = vsyncadd %s576, 2048
        $region112: #{rnn_forward.6} parent=39 // pred_fallthru
          _
        %s649 = smul.u32 8, 8
        %s650 = smul.u32 %s649, 1
        %s651 = smul.u32 %s650, 2
        %s652 = sshll.u32 %s651, 4
        %653 = dma.done [#allocation6], %s652
        %s654 = sshll.u32 %s651, 4
        %655 = dma.done %s576, %s654
        %v656 = vld [vmem:[#allocation2] sm:$0xff]
        %v657 = vld [vmem:[#allocation2 + $0x8] sm:$0xff]
        %v658 = vld [vmem:[#allocation2 + $0x10] sm:$0xff]
        %v659 = vld [vmem:[#allocation2 + $0x18] sm:$0xff]
        %v660 = vld [vmem:[#allocation2 + $0x20] sm:$0xff]
        %v661 = vld [vmem:[#allocation2 + $0x28] sm:$0xff]
        %v662 = vld [vmem:[#allocation2 + $0x30] sm:$0xff]
        %v663 = vld [vmem:[#allocation2 + $0x38] sm:$0xff]
        %v664 = vld [vmem:[#allocation2 + $0x40] sm:$0xff]
        %v665 = vld [vmem:[#allocation2 + $0x48] sm:$0xff]
        %v666 = vld [vmem:[#allocation2 + $0x50] sm:$0xff]
        %v667 = vld [vmem:[#allocation2 + $0x58] sm:$0xff]
        %v668 = vld [vmem:[#allocation2 + $0x60] sm:$0xff]
        %v669 = vld [vmem:[#allocation2 + $0x68] sm:$0xff]
        %v670 = vld [vmem:[#allocation2 + $0x70] sm:$0xff]
        %v671 = vld [vmem:[#allocation2 + $0x78] sm:$0xff]
        %v672 = vld [vmem:[%s244] sm:$0xff]
        %v673 = vld [vmem:[%s244 + $0x8] sm:$0xff]
        %v674 = vld [vmem:[%s244 + $0x10] sm:$0xff]
        %v675 = vld [vmem:[%s244 + $0x18] sm:$0xff]
        %v676 = vld [vmem:[%s244 + $0x20] sm:$0xff]
        %v677 = vld [vmem:[%s244 + $0x28] sm:$0xff]
        %v678 = vld [vmem:[%s244 + $0x30] sm:$0xff]
        %v679 = vld [vmem:[%s244 + $0x38] sm:$0xff]
        %v680 = vld [vmem:[%s244 + $0x40] sm:$0xff]
        %v681 = vld [vmem:[%s244 + $0x48] sm:$0xff]
        %v682 = vld [vmem:[%s244 + $0x50] sm:$0xff]
        %v683 = vld [vmem:[%s244 + $0x58] sm:$0xff]
        %v684 = vld [vmem:[%s244 + $0x60] sm:$0xff]
        %v685 = vld [vmem:[%s244 + $0x68] sm:$0xff]
        %v686 = vld [vmem:[%s244 + $0x70] sm:$0xff]
        %v687 = vld [vmem:[%s244 + $0x78] sm:$0xff]
        %v688 = vld [vmem:[%s244 + $0x80] sm:$0xff]
        %v689 = vld [vmem:[%s244 + $0x88] sm:$0xff]
        %v690 = vld [vmem:[%s244 + $0x90] sm:$0xff]
        %v691 = vld [vmem:[%s244 + $0x98] sm:$0xff]
        %v692 = vld [vmem:[%s244 + $0xa0] sm:$0xff]
        %v693 = vld [vmem:[%s244 + $0xa8] sm:$0xff]
        %v694 = vld [vmem:[%s244 + $0xb0] sm:$0xff]
        %v695 = vld [vmem:[%s244 + $0xb8] sm:$0xff]
        %v696 = vld [vmem:[%s244 + $0xc0] sm:$0xff]
        %v697 = vld [vmem:[%s244 + $0xc8] sm:$0xff]
        %v698 = vld [vmem:[%s244 + $0xd0] sm:$0xff]
        %v699 = vld [vmem:[%s244 + $0xd8] sm:$0xff]
        %v700 = vld [vmem:[%s244 + $0xe0] sm:$0xff]
        %v701 = vld [vmem:[%s244 + $0xe8] sm:$0xff]
        %v702 = vld [vmem:[%s244 + $0xf0] sm:$0xff]
        %v703 = vld [vmem:[%s244 + $0xf8] sm:$0xff]
        %v704 = vld [vmem:[%s244 + $0x100] sm:$0xff]
        %v705 = vld [vmem:[%s244 + $0x108] sm:$0xff]
        %v706 = vld [vmem:[%s244 + $0x110] sm:$0xff]
        %v707 = vld [vmem:[%s244 + $0x118] sm:$0xff]
        %v708 = vld [vmem:[%s244 + $0x120] sm:$0xff]
        %v709 = vld [vmem:[%s244 + $0x128] sm:$0xff]
        %v710 = vld [vmem:[%s244 + $0x130] sm:$0xff]
        %v711 = vld [vmem:[%s244 + $0x138] sm:$0xff]
        %v712 = vld [vmem:[%s244 + $0x140] sm:$0xff]
        %v713 = vld [vmem:[%s244 + $0x148] sm:$0xff]
        %v714 = vld [vmem:[%s244 + $0x150] sm:$0xff]
        %v715 = vld [vmem:[%s244 + $0x158] sm:$0xff]
        %v716 = vld [vmem:[%s244 + $0x160] sm:$0xff]
        %v717 = vld [vmem:[%s244 + $0x168] sm:$0xff]
        %v718 = vld [vmem:[%s244 + $0x170] sm:$0xff]
        %v719 = vld [vmem:[%s244 + $0x178] sm:$0xff]
        %v720 = vld [vmem:[%s244 + $0x180] sm:$0xff]
        %v721 = vld [vmem:[%s244 + $0x188] sm:$0xff]
        %v722 = vld [vmem:[%s244 + $0x190] sm:$0xff]
        %v723 = vld [vmem:[%s244 + $0x198] sm:$0xff]
        %v724 = vld [vmem:[%s244 + $0x1a0] sm:$0xff]
        %v725 = vld [vmem:[%s244 + $0x1a8] sm:$0xff]
        %v726 = vld [vmem:[%s244 + $0x1b0] sm:$0xff]
        %v727 = vld [vmem:[%s244 + $0x1b8] sm:$0xff]
        %v728 = vld [vmem:[%s244 + $0x1c0] sm:$0xff]
        %v729 = vld [vmem:[%s244 + $0x1c8] sm:$0xff]
        %v730 = vld [vmem:[%s244 + $0x1d0] sm:$0xff]
        %v731 = vld [vmem:[%s244 + $0x1d8] sm:$0xff]
        %v732 = vld [vmem:[%s244 + $0x1e0] sm:$0xff]
        %v733 = vld [vmem:[%s244 + $0x1e8] sm:$0xff]
        %v734 = vld [vmem:[%s244 + $0x1f0] sm:$0xff]
        %v735 = vld [vmem:[%s244 + $0x1f8] sm:$0xff]
        %v736 = vld [vmem:[%s244 + $0x200] sm:$0xff]
        %v737 = vld [vmem:[%s244 + $0x208] sm:$0xff]
        %v738 = vld [vmem:[%s244 + $0x210] sm:$0xff]
        %v739 = vld [vmem:[%s244 + $0x218] sm:$0xff]
        %v740 = vld [vmem:[%s244 + $0x220] sm:$0xff]
        %v741 = vld [vmem:[%s244 + $0x228] sm:$0xff]
        %v742 = vld [vmem:[%s244 + $0x230] sm:$0xff]
        %v743 = vld [vmem:[%s244 + $0x238] sm:$0xff]
        %v744 = vld [vmem:[%s244 + $0x240] sm:$0xff]
        %v745 = vld [vmem:[%s244 + $0x248] sm:$0xff]
        %v746 = vld [vmem:[%s244 + $0x250] sm:$0xff]
        %v747 = vld [vmem:[%s244 + $0x258] sm:$0xff]
        %v748 = vld [vmem:[%s244 + $0x260] sm:$0xff]
        %v749 = vld [vmem:[%s244 + $0x268] sm:$0xff]
        %v750 = vld [vmem:[%s244 + $0x270] sm:$0xff]
        %v751 = vld [vmem:[%s244 + $0x278] sm:$0xff]
        %v752 = vld [vmem:[%s244 + $0x280] sm:$0xff]
        %v753 = vld [vmem:[%s244 + $0x288] sm:$0xff]
        %v754 = vld [vmem:[%s244 + $0x290] sm:$0xff]
        %v755 = vld [vmem:[%s244 + $0x298] sm:$0xff]
        %v756 = vld [vmem:[%s244 + $0x2a0] sm:$0xff]
        %v757 = vld [vmem:[%s244 + $0x2a8] sm:$0xff]
        %v758 = vld [vmem:[%s244 + $0x2b0] sm:$0xff]
        %v759 = vld [vmem:[%s244 + $0x2b8] sm:$0xff]
        %v760 = vld [vmem:[%s244 + $0x2c0] sm:$0xff]
        %v761 = vld [vmem:[%s244 + $0x2c8] sm:$0xff]
        %v762 = vld [vmem:[%s244 + $0x2d0] sm:$0xff]
        %v763 = vld [vmem:[%s244 + $0x2d8] sm:$0xff]
        %v764 = vld [vmem:[%s244 + $0x2e0] sm:$0xff]
        %v765 = vld [vmem:[%s244 + $0x2e8] sm:$0xff]
        %v766 = vld [vmem:[%s244 + $0x2f0] sm:$0xff]
        %v767 = vld [vmem:[%s244 + $0x2f8] sm:$0xff]
        %v768 = vld [vmem:[%s244 + $0x300] sm:$0xff]
        %v769 = vld [vmem:[%s244 + $0x308] sm:$0xff]
        %v770 = vld [vmem:[%s244 + $0x310] sm:$0xff]
        %v771 = vld [vmem:[%s244 + $0x318] sm:$0xff]
        %v772 = vld [vmem:[%s244 + $0x320] sm:$0xff]
        %v773 = vld [vmem:[%s244 + $0x328] sm:$0xff]
        %v774 = vld [vmem:[%s244 + $0x330] sm:$0xff]
        %v775 = vld [vmem:[%s244 + $0x338] sm:$0xff]
        %v776 = vld [vmem:[%s244 + $0x340] sm:$0xff]
        %v777 = vld [vmem:[%s244 + $0x348] sm:$0xff]
        %v778 = vld [vmem:[%s244 + $0x350] sm:$0xff]
        %v779 = vld [vmem:[%s244 + $0x358] sm:$0xff]
        %v780 = vld [vmem:[%s244 + $0x360] sm:$0xff]
        %v781 = vld [vmem:[%s244 + $0x368] sm:$0xff]
        %v782 = vld [vmem:[%s244 + $0x370] sm:$0xff]
        %v783 = vld [vmem:[%s244 + $0x378] sm:$0xff]
        %v784 = vld [vmem:[%s244 + $0x380] sm:$0xff]
        %v785 = vld [vmem:[%s244 + $0x388] sm:$0xff]
        %v786 = vld [vmem:[%s244 + $0x390] sm:$0xff]
        %v787 = vld [vmem:[%s244 + $0x398] sm:$0xff]
        %v788 = vld [vmem:[%s244 + $0x3a0] sm:$0xff]
        %v789 = vld [vmem:[%s244 + $0x3a8] sm:$0xff]
        %v790 = vld [vmem:[%s244 + $0x3b0] sm:$0xff]
        %v791 = vld [vmem:[%s244 + $0x3b8] sm:$0xff]
        %v792 = vld [vmem:[%s244 + $0x3c0] sm:$0xff]
        %v793 = vld [vmem:[%s244 + $0x3c8] sm:$0xff]
        %v794 = vld [vmem:[%s244 + $0x3d0] sm:$0xff]
        %v795 = vld [vmem:[%s244 + $0x3d8] sm:$0xff]
        %v796 = vld [vmem:[%s244 + $0x3e0] sm:$0xff]
        %v797 = vld [vmem:[%s244 + $0x3e8] sm:$0xff]
        %v798 = vld [vmem:[%s244 + $0x3f0] sm:$0xff]
        %v799 = vld [vmem:[%s244 + $0x3f8] sm:$0xff]
        %v800 = vld [vmem:[%s244 + $0x400] sm:$0xff]
        %v801 = vld [vmem:[%s244 + $0x408] sm:$0xff]
        %v802 = vld [vmem:[%s244 + $0x410] sm:$0xff]
        %v803 = vld [vmem:[%s244 + $0x418] sm:$0xff]
        %v804 = vld [vmem:[%s244 + $0x420] sm:$0xff]
        %v805 = vld [vmem:[%s244 + $0x428] sm:$0xff]
        %v806 = vld [vmem:[%s244 + $0x430] sm:$0xff]
        %v807 = vld [vmem:[%s244 + $0x438] sm:$0xff]
        %v808 = vld [vmem:[%s244 + $0x440] sm:$0xff]
        %v809 = vld [vmem:[%s244 + $0x448] sm:$0xff]
        %v810 = vld [vmem:[%s244 + $0x450] sm:$0xff]
        %v811 = vld [vmem:[%s244 + $0x458] sm:$0xff]
        %v812 = vld [vmem:[%s244 + $0x460] sm:$0xff]
        %v813 = vld [vmem:[%s244 + $0x468] sm:$0xff]
        %v814 = vld [vmem:[%s244 + $0x470] sm:$0xff]
        %v815 = vld [vmem:[%s244 + $0x478] sm:$0xff]
        %v816 = vld [vmem:[%s244 + $0x480] sm:$0xff]
        %v817 = vld [vmem:[%s244 + $0x488] sm:$0xff]
        %v818 = vld [vmem:[%s244 + $0x490] sm:$0xff]
        %v819 = vld [vmem:[%s244 + $0x498] sm:$0xff]
        %v820 = vld [vmem:[%s244 + $0x4a0] sm:$0xff]
        %v821 = vld [vmem:[%s244 + $0x4a8] sm:$0xff]
        %v822 = vld [vmem:[%s244 + $0x4b0] sm:$0xff]
        %v823 = vld [vmem:[%s244 + $0x4b8] sm:$0xff]
        %v824 = vld [vmem:[%s244 + $0x4c0] sm:$0xff]
        %v825 = vld [vmem:[%s244 + $0x4c8] sm:$0xff]
        %v826 = vld [vmem:[%s244 + $0x4d0] sm:$0xff]
        %v827 = vld [vmem:[%s244 + $0x4d8] sm:$0xff]
        %v828 = vld [vmem:[%s244 + $0x4e0] sm:$0xff]
        %v829 = vld [vmem:[%s244 + $0x4e8] sm:$0xff]
        %v830 = vld [vmem:[%s244 + $0x4f0] sm:$0xff]
        %v831 = vld [vmem:[%s244 + $0x4f8] sm:$0xff]
        %v832 = vld [vmem:[%s244 + $0x500] sm:$0xff]
        %v833 = vld [vmem:[%s244 + $0x508] sm:$0xff]
        %v834 = vld [vmem:[%s244 + $0x510] sm:$0xff]
        %v835 = vld [vmem:[%s244 + $0x518] sm:$0xff]
        %v836 = vld [vmem:[%s244 + $0x520] sm:$0xff]
        %v837 = vld [vmem:[%s244 + $0x528] sm:$0xff]
        %v838 = vld [vmem:[%s244 + $0x530] sm:$0xff]
        %v839 = vld [vmem:[%s244 + $0x538] sm:$0xff]
        %v840 = vld [vmem:[%s244 + $0x540] sm:$0xff]
        %v841 = vld [vmem:[%s244 + $0x548] sm:$0xff]
        %v842 = vld [vmem:[%s244 + $0x550] sm:$0xff]
        %v843 = vld [vmem:[%s244 + $0x558] sm:$0xff]
        %v844 = vld [vmem:[%s244 + $0x560] sm:$0xff]
        %v845 = vld [vmem:[%s244 + $0x568] sm:$0xff]
        %v846 = vld [vmem:[%s244 + $0x570] sm:$0xff]
        %v847 = vld [vmem:[%s244 + $0x578] sm:$0xff]
        %v848 = vld [vmem:[%s244 + $0x580] sm:$0xff]
        %v849 = vld [vmem:[%s244 + $0x588] sm:$0xff]
        %v850 = vld [vmem:[%s244 + $0x590] sm:$0xff]
        %v851 = vld [vmem:[%s244 + $0x598] sm:$0xff]
        %v852 = vld [vmem:[%s244 + $0x5a0] sm:$0xff]
        %v853 = vld [vmem:[%s244 + $0x5a8] sm:$0xff]
        %v854 = vld [vmem:[%s244 + $0x5b0] sm:$0xff]
        %v855 = vld [vmem:[%s244 + $0x5b8] sm:$0xff]
        %v856 = vld [vmem:[%s244 + $0x5c0] sm:$0xff]
        %v857 = vld [vmem:[%s244 + $0x5c8] sm:$0xff]
        %v858 = vld [vmem:[%s244 + $0x5d0] sm:$0xff]
        %v859 = vld [vmem:[%s244 + $0x5d8] sm:$0xff]
        %v860 = vld [vmem:[%s244 + $0x5e0] sm:$0xff]
        %v861 = vld [vmem:[%s244 + $0x5e8] sm:$0xff]
        %v862 = vld [vmem:[%s244 + $0x5f0] sm:$0xff]
        %v863 = vld [vmem:[%s244 + $0x5f8] sm:$0xff]
        %v864 = vld [vmem:[%s575] sm:$0xff]
        %v865 = vld [vmem:[%s575 + $0x8] sm:$0xff]
        %v866 = vld [vmem:[%s575 + $0x10] sm:$0xff]
        %v867 = vld [vmem:[%s575 + $0x18] sm:$0xff]
        %v868 = vld [vmem:[%s575 + $0x20] sm:$0xff]
        %v869 = vld [vmem:[%s575 + $0x28] sm:$0xff]
        %v870 = vld [vmem:[%s575 + $0x30] sm:$0xff]
        %v871 = vld [vmem:[%s575 + $0x38] sm:$0xff]
        %v872 = vld [vmem:[%s575 + $0x40] sm:$0xff]
        %v873 = vld [vmem:[%s575 + $0x48] sm:$0xff]
        %v874 = vld [vmem:[%s575 + $0x50] sm:$0xff]
        %v875 = vld [vmem:[%s575 + $0x58] sm:$0xff]
        %v876 = vld [vmem:[%s575 + $0x60] sm:$0xff]
        %v877 = vld [vmem:[%s575 + $0x68] sm:$0xff]
        %v878 = vld [vmem:[%s575 + $0x70] sm:$0xff]
        %v879 = vld [vmem:[%s575 + $0x78] sm:$0xff]
        %v880 = vld [vmem:[%s244 + $0x600] sm:$0xff]
        %v881 = vld [vmem:[%s244 + $0x608] sm:$0xff]
        %v882 = vld [vmem:[%s244 + $0x610] sm:$0xff]
        %v883 = vld [vmem:[%s244 + $0x618] sm:$0xff]
        %v884 = vld [vmem:[%s244 + $0x620] sm:$0xff]
        %v885 = vld [vmem:[%s244 + $0x628] sm:$0xff]
        %v886 = vld [vmem:[%s244 + $0x630] sm:$0xff]
        %v887 = vld [vmem:[%s244 + $0x638] sm:$0xff]
        %v888 = vld [vmem:[%s244 + $0x640] sm:$0xff]
        %v889 = vld [vmem:[%s244 + $0x648] sm:$0xff]
        %v890 = vld [vmem:[%s244 + $0x650] sm:$0xff]
        %v891 = vld [vmem:[%s244 + $0x658] sm:$0xff]
        %v892 = vld [vmem:[%s244 + $0x660] sm:$0xff]
        %v893 = vld [vmem:[%s244 + $0x668] sm:$0xff]
        %v894 = vld [vmem:[%s244 + $0x670] sm:$0xff]
        %v895 = vld [vmem:[%s244 + $0x678] sm:$0xff]
        %v896 = vld [vmem:[%s244 + $0x680] sm:$0xff]
        %v897 = vld [vmem:[%s244 + $0x688] sm:$0xff]
        %v898 = vld [vmem:[%s244 + $0x690] sm:$0xff]
        %v899 = vld [vmem:[%s244 + $0x698] sm:$0xff]
        %v900 = vld [vmem:[%s244 + $0x6a0] sm:$0xff]
        %v901 = vld [vmem:[%s244 + $0x6a8] sm:$0xff]
        %v902 = vld [vmem:[%s244 + $0x6b0] sm:$0xff]
        %v903 = vld [vmem:[%s244 + $0x6b8] sm:$0xff]
        %v904 = vld [vmem:[%s244 + $0x6c0] sm:$0xff]
        %v905 = vld [vmem:[%s244 + $0x6c8] sm:$0xff]
        %v906 = vld [vmem:[%s244 + $0x6d0] sm:$0xff]
        %v907 = vld [vmem:[%s244 + $0x6d8] sm:$0xff]
        %v908 = vld [vmem:[%s244 + $0x6e0] sm:$0xff]
        %v909 = vld [vmem:[%s244 + $0x6e8] sm:$0xff]
        %v910 = vld [vmem:[%s244 + $0x6f0] sm:$0xff]
        %v911 = vld [vmem:[%s244 + $0x6f8] sm:$0xff]
        %v912 = vld [vmem:[%s244 + $0x700] sm:$0xff]
        %v913 = vld [vmem:[%s244 + $0x708] sm:$0xff]
        %v914 = vld [vmem:[%s244 + $0x710] sm:$0xff]
        %v915 = vld [vmem:[%s244 + $0x718] sm:$0xff]
        %v916 = vld [vmem:[%s244 + $0x720] sm:$0xff]
        %v917 = vld [vmem:[%s244 + $0x728] sm:$0xff]
        %v918 = vld [vmem:[%s244 + $0x730] sm:$0xff]
        %v919 = vld [vmem:[%s244 + $0x738] sm:$0xff]
        %v920 = vld [vmem:[%s244 + $0x740] sm:$0xff]
        %v921 = vld [vmem:[%s244 + $0x748] sm:$0xff]
        %v922 = vld [vmem:[%s244 + $0x750] sm:$0xff]
        %v923 = vld [vmem:[%s244 + $0x758] sm:$0xff]
        %v924 = vld [vmem:[%s244 + $0x760] sm:$0xff]
        %v925 = vld [vmem:[%s244 + $0x768] sm:$0xff]
        %v926 = vld [vmem:[%s244 + $0x770] sm:$0xff]
        %v927 = vld [vmem:[%s244 + $0x778] sm:$0xff]
        %v928 = vld [vmem:[%s244 + $0x780] sm:$0xff]
        %v929 = vld [vmem:[%s244 + $0x788] sm:$0xff]
        %v930 = vld [vmem:[%s244 + $0x790] sm:$0xff]
        %v931 = vld [vmem:[%s244 + $0x798] sm:$0xff]
        %v932 = vld [vmem:[%s244 + $0x7a0] sm:$0xff]
        %v933 = vld [vmem:[%s244 + $0x7a8] sm:$0xff]
        %v934 = vld [vmem:[%s244 + $0x7b0] sm:$0xff]
        %v935 = vld [vmem:[%s244 + $0x7b8] sm:$0xff]
        %v936 = vld [vmem:[%s244 + $0x7c0] sm:$0xff]
        %v937 = vld [vmem:[%s244 + $0x7c8] sm:$0xff]
        %v938 = vld [vmem:[%s244 + $0x7d0] sm:$0xff]
        %v939 = vld [vmem:[%s244 + $0x7d8] sm:$0xff]
        %v940 = vld [vmem:[%s244 + $0x7e0] sm:$0xff]
        %v941 = vld [vmem:[%s244 + $0x7e8] sm:$0xff]
        %v942 = vld [vmem:[%s244 + $0x7f0] sm:$0xff]
        %v943 = vld [vmem:[%s244 + $0x7f8] sm:$0xff]
        %v944 = vld [vmem:[%s244 + $0x800] sm:$0xff]
        %v945 = vld [vmem:[%s244 + $0x808] sm:$0xff]
        %v946 = vld [vmem:[%s244 + $0x810] sm:$0xff]
        %v947 = vld [vmem:[%s244 + $0x818] sm:$0xff]
        %v948 = vld [vmem:[%s244 + $0x820] sm:$0xff]
        %v949 = vld [vmem:[%s244 + $0x828] sm:$0xff]
        %v950 = vld [vmem:[%s244 + $0x830] sm:$0xff]
        %v951 = vld [vmem:[%s244 + $0x838] sm:$0xff]
        %v952 = vld [vmem:[%s244 + $0x840] sm:$0xff]
        %v953 = vld [vmem:[%s244 + $0x848] sm:$0xff]
        %v954 = vld [vmem:[%s244 + $0x850] sm:$0xff]
        %v955 = vld [vmem:[%s244 + $0x858] sm:$0xff]
        %v956 = vld [vmem:[%s244 + $0x860] sm:$0xff]
        %v957 = vld [vmem:[%s244 + $0x868] sm:$0xff]
        %v958 = vld [vmem:[%s244 + $0x870] sm:$0xff]
        %v959 = vld [vmem:[%s244 + $0x878] sm:$0xff]
        %v960 = vld [vmem:[%s244 + $0x880] sm:$0xff]
        %v961 = vld [vmem:[%s244 + $0x888] sm:$0xff]
        %v962 = vld [vmem:[%s244 + $0x890] sm:$0xff]
        %v963 = vld [vmem:[%s244 + $0x898] sm:$0xff]
        %v964 = vld [vmem:[%s244 + $0x8a0] sm:$0xff]
        %v965 = vld [vmem:[%s244 + $0x8a8] sm:$0xff]
        %v966 = vld [vmem:[%s244 + $0x8b0] sm:$0xff]
        %v967 = vld [vmem:[%s244 + $0x8b8] sm:$0xff]
        %v968 = vld [vmem:[%s244 + $0x8c0] sm:$0xff]
        %v969 = vld [vmem:[%s244 + $0x8c8] sm:$0xff]
        %v970 = vld [vmem:[%s244 + $0x8d0] sm:$0xff]
        %v971 = vld [vmem:[%s244 + $0x8d8] sm:$0xff]
        %v972 = vld [vmem:[%s244 + $0x8e0] sm:$0xff]
        %v973 = vld [vmem:[%s244 + $0x8e8] sm:$0xff]
        %v974 = vld [vmem:[%s244 + $0x8f0] sm:$0xff]
        %v975 = vld [vmem:[%s244 + $0x8f8] sm:$0xff]
        %v976 = vld [vmem:[%s244 + $0x900] sm:$0xff]
        %v977 = vld [vmem:[%s244 + $0x908] sm:$0xff]
        %v978 = vld [vmem:[%s244 + $0x910] sm:$0xff]
        %v979 = vld [vmem:[%s244 + $0x918] sm:$0xff]
        %v980 = vld [vmem:[%s244 + $0x920] sm:$0xff]
        %v981 = vld [vmem:[%s244 + $0x928] sm:$0xff]
        %v982 = vld [vmem:[%s244 + $0x930] sm:$0xff]
        %v983 = vld [vmem:[%s244 + $0x938] sm:$0xff]
        %v984 = vld [vmem:[%s244 + $0x940] sm:$0xff]
        %v985 = vld [vmem:[%s244 + $0x948] sm:$0xff]
        %v986 = vld [vmem:[%s244 + $0x950] sm:$0xff]
        %v987 = vld [vmem:[%s244 + $0x958] sm:$0xff]
        %v988 = vld [vmem:[%s244 + $0x960] sm:$0xff]
        %v989 = vld [vmem:[%s244 + $0x968] sm:$0xff]
        %v990 = vld [vmem:[%s244 + $0x970] sm:$0xff]
        %v991 = vld [vmem:[%s244 + $0x978] sm:$0xff]
        %v992 = vld [vmem:[%s244 + $0x980] sm:$0xff]
        %v993 = vld [vmem:[%s244 + $0x988] sm:$0xff]
        %v994 = vld [vmem:[%s244 + $0x990] sm:$0xff]
        %v995 = vld [vmem:[%s244 + $0x998] sm:$0xff]
        %v996 = vld [vmem:[%s244 + $0x9a0] sm:$0xff]
        %v997 = vld [vmem:[%s244 + $0x9a8] sm:$0xff]
        %v998 = vld [vmem:[%s244 + $0x9b0] sm:$0xff]
        %v999 = vld [vmem:[%s244 + $0x9b8] sm:$0xff]
        %v1000 = vld [vmem:[%s244 + $0x9c0] sm:$0xff]
        %v1001 = vld [vmem:[%s244 + $0x9c8] sm:$0xff]
        %v1002 = vld [vmem:[%s244 + $0x9d0] sm:$0xff]
        %v1003 = vld [vmem:[%s244 + $0x9d8] sm:$0xff]
        %v1004 = vld [vmem:[%s244 + $0x9e0] sm:$0xff]
        %v1005 = vld [vmem:[%s244 + $0x9e8] sm:$0xff]
        %v1006 = vld [vmem:[%s244 + $0x9f0] sm:$0xff]
        %v1007 = vld [vmem:[%s244 + $0x9f8] sm:$0xff]
        %v1008 = vld [vmem:[%s244 + $0xa00] sm:$0xff]
        %v1009 = vld [vmem:[%s244 + $0xa08] sm:$0xff]
        %v1010 = vld [vmem:[%s244 + $0xa10] sm:$0xff]
        %v1011 = vld [vmem:[%s244 + $0xa18] sm:$0xff]
        %v1012 = vld [vmem:[%s244 + $0xa20] sm:$0xff]
        %v1013 = vld [vmem:[%s244 + $0xa28] sm:$0xff]
        %v1014 = vld [vmem:[%s244 + $0xa30] sm:$0xff]
        %v1015 = vld [vmem:[%s244 + $0xa38] sm:$0xff]
        %v1016 = vld [vmem:[%s244 + $0xa40] sm:$0xff]
        %v1017 = vld [vmem:[%s244 + $0xa48] sm:$0xff]
        %v1018 = vld [vmem:[%s244 + $0xa50] sm:$0xff]
        %v1019 = vld [vmem:[%s244 + $0xa58] sm:$0xff]
        %v1020 = vld [vmem:[%s244 + $0xa60] sm:$0xff]
        %v1021 = vld [vmem:[%s244 + $0xa68] sm:$0xff]
        %v1022 = vld [vmem:[%s244 + $0xa70] sm:$0xff]
        %v1023 = vld [vmem:[%s244 + $0xa78] sm:$0xff]
        %v1024 = vld [vmem:[%s244 + $0xa80] sm:$0xff]
        %v1025 = vld [vmem:[%s244 + $0xa88] sm:$0xff]
        %v1026 = vld [vmem:[%s244 + $0xa90] sm:$0xff]
        %v1027 = vld [vmem:[%s244 + $0xa98] sm:$0xff]
        %v1028 = vld [vmem:[%s244 + $0xaa0] sm:$0xff]
        %v1029 = vld [vmem:[%s244 + $0xaa8] sm:$0xff]
        %v1030 = vld [vmem:[%s244 + $0xab0] sm:$0xff]
        %v1031 = vld [vmem:[%s244 + $0xab8] sm:$0xff]
        %v1032 = vld [vmem:[%s244 + $0xac0] sm:$0xff]
        %v1033 = vld [vmem:[%s244 + $0xac8] sm:$0xff]
        %v1034 = vld [vmem:[%s244 + $0xad0] sm:$0xff]
        %v1035 = vld [vmem:[%s244 + $0xad8] sm:$0xff]
        %v1036 = vld [vmem:[%s244 + $0xae0] sm:$0xff]
        %v1037 = vld [vmem:[%s244 + $0xae8] sm:$0xff]
        %v1038 = vld [vmem:[%s244 + $0xaf0] sm:$0xff]
        %v1039 = vld [vmem:[%s244 + $0xaf8] sm:$0xff]
        %v1040 = vld [vmem:[%s244 + $0xb00] sm:$0xff]
        %v1041 = vld [vmem:[%s244 + $0xb08] sm:$0xff]
        %v1042 = vld [vmem:[%s244 + $0xb10] sm:$0xff]
        %v1043 = vld [vmem:[%s244 + $0xb18] sm:$0xff]
        %v1044 = vld [vmem:[%s244 + $0xb20] sm:$0xff]
        %v1045 = vld [vmem:[%s244 + $0xb28] sm:$0xff]
        %v1046 = vld [vmem:[%s244 + $0xb30] sm:$0xff]
        %v1047 = vld [vmem:[%s244 + $0xb38] sm:$0xff]
        %v1048 = vld [vmem:[%s244 + $0xb40] sm:$0xff]
        %v1049 = vld [vmem:[%s244 + $0xb48] sm:$0xff]
        %v1050 = vld [vmem:[%s244 + $0xb50] sm:$0xff]
        %v1051 = vld [vmem:[%s244 + $0xb58] sm:$0xff]
        %v1052 = vld [vmem:[%s244 + $0xb60] sm:$0xff]
        %v1053 = vld [vmem:[%s244 + $0xb68] sm:$0xff]
        %v1054 = vld [vmem:[%s244 + $0xb70] sm:$0xff]
        %v1055 = vld [vmem:[%s244 + $0xb78] sm:$0xff]
        %v1056 = vld [vmem:[%s244 + $0xb80] sm:$0xff]
        %v1057 = vld [vmem:[%s244 + $0xb88] sm:$0xff]
        %v1058 = vld [vmem:[%s244 + $0xb90] sm:$0xff]
        %v1059 = vld [vmem:[%s244 + $0xb98] sm:$0xff]
        %v1060 = vld [vmem:[%s244 + $0xba0] sm:$0xff]
        %v1061 = vld [vmem:[%s244 + $0xba8] sm:$0xff]
        %v1062 = vld [vmem:[%s244 + $0xbb0] sm:$0xff]
        %v1063 = vld [vmem:[%s244 + $0xbb8] sm:$0xff]
        %v1064 = vld [vmem:[%s244 + $0xbc0] sm:$0xff]
        %v1065 = vld [vmem:[%s244 + $0xbc8] sm:$0xff]
        %v1066 = vld [vmem:[%s244 + $0xbd0] sm:$0xff]
        %v1067 = vld [vmem:[%s244 + $0xbd8] sm:$0xff]
        %v1068 = vld [vmem:[%s244 + $0xbe0] sm:$0xff]
        %v1069 = vld [vmem:[%s244 + $0xbe8] sm:$0xff]
        %v1070 = vld [vmem:[%s244 + $0xbf0] sm:$0xff]
        %v1071 = vld [vmem:[%s244 + $0xbf8] sm:$0xff]
        %1072 = vmatprep.subr.mxu0 %v881
        %1073 = vmatpush1.msra.mxu0 %v880
        %1074 = vmatprep.subr.mxu0 %v887
        %1075 = vmatpush1.msra.mxu0 %v886
        %1076 = vmatprep.subr.mxu0 %v893
        %1077 = vmatpush1.msra.mxu0 %v892
        %1078 = vmatprep.subr.mxu0 %v899
        %1079 = vmatpush1.msra.mxu0 %v898
        %1080 = vmatprep.subr.mxu0 %v905
        %1081 = vmatpush1.msra.mxu0 %v904
        %1082 = vmatprep.subr.mxu0 %v911
        %1083 = vmatpush1.msra.mxu0 %v910
        %1084 = vmatprep.subr.mxu0 %v917
        %1085 = vmatpush1.msra.mxu0 %v916
        %1086 = vmatprep.subr.mxu0 %v923
        %1087 = vmatpush1.msra.mxu0 %v922
        %1088 = vmatprep.subr.mxu0 %v929
        %1089 = vmatpush1.msra.mxu0 %v928
        %1090 = vmatprep.subr.mxu0 %v935
        %1091 = vmatpush1.msra.mxu0 %v934
        %1092 = vmatprep.subr.mxu0 %v941
        %1093 = vmatpush1.msra.mxu0 %v940
        %1094 = vmatprep.subr.mxu0 %v947
        %1095 = vmatpush1.msra.mxu0 %v946
        %1096 = vmatprep.subr.mxu0 %v953
        %1097 = vmatpush1.msra.mxu0 %v952
        %1098 = vmatprep.subr.mxu0 %v959
        %1099 = vmatpush1.msra.mxu0 %v958
        %1100 = vmatprep.subr.mxu0 %v965
        %1101 = vmatpush1.msra.mxu0 %v964
        %1102 = vmatprep.subr.mxu0 %v971
        %1103 = vmatpush1.msra.mxu0 %v970
        %1104 = vmatprep.subr.mxu0 %v977
        %1105 = vmatpush1.msra.mxu0 %v976
        %1106 = vmatprep.subr.mxu0 %v983
        %1107 = vmatpush1.msra.mxu0 %v982
        %1108 = vmatprep.subr.mxu0 %v989
        %1109 = vmatpush1.msra.mxu0 %v988
        %1110 = vmatprep.subr.mxu0 %v995
        %1111 = vmatpush1.msra.mxu0 %v994
        %1112 = vmatprep.subr.mxu0 %v1001
        %1113 = vmatpush1.msra.mxu0 %v1000
        %1114 = vmatprep.subr.mxu0 %v1007
        %1115 = vmatpush1.msra.mxu0 %v1006
        %1116 = vmatprep.subr.mxu0 %v1013
        %1117 = vmatpush1.msra.mxu0 %v1012
        %1118 = vmatprep.subr.mxu0 %v1019
        %1119 = vmatpush1.msra.mxu0 %v1018
        %1120 = vmatprep.subr.mxu0 %v1025
        %1121 = vmatpush1.msra.mxu0 %v1024
        %1122 = vmatprep.subr.mxu0 %v1031
        %1123 = vmatpush1.msra.mxu0 %v1030
        %1124 = vmatprep.subr.mxu0 %v1037
        %1125 = vmatpush1.msra.mxu0 %v1036
        %1126 = vmatprep.subr.mxu0 %v1043
        %1127 = vmatpush1.msra.mxu0 %v1042
        %1128 = vmatprep.subr.mxu0 %v1049
        %1129 = vmatpush1.msra.mxu0 %v1048
        %1130 = vmatprep.subr.mxu0 %v1055
        %1131 = vmatpush1.msra.mxu0 %v1054
        %1132 = vmatprep.subr.mxu0 %v1061
        %1133 = vmatpush1.msra.mxu0 %v1060
        %1134 = vmatprep.subr.mxu0 %v1067
        %1135 = vmatpush1.msra.mxu0 %v1066
        %1136 = vmatprep.mubr.f32.mxu0 %v865
        %1137 = vmatmul.mubr.f32.gmra.mrb[0].mxu0 %v864
        %v1138 = vpop.f32.mrb[0].mxu0
        %v1139 = vadd.f32 0.0, %v1138
        %v1140 = vpop.f32.mrb[0].mxu0
        %v1141 = vadd.f32 0.0, %v1140
        %1142 = vmatprep.mubr.f32.mxu0 %v867
        %1143 = vmatmul.mubr.f32.gmra.mrb[0].mxu0 %v866
        %v1144 = vpop.f32.mrb[0].mxu0
        %v1145 = vadd.f32 0.0, %v1144
        %v1146 = vpop.f32.mrb[0].mxu0
        %v1147 = vadd.f32 0.0, %v1146
        %1148 = vmatprep.mubr.f32.mxu0 %v869
        %1149 = vmatmul.mubr.f32.gmra.mrb[0].mxu0 %v868
        %v1150 = vpop.f32.mrb[0].mxu0
        %v1151 = vadd.f32 0.0, %v1150
        %v1152 = vpop.f32.mrb[0].mxu0
        %v1153 = vadd.f32 0.0, %v1152
        %1154 = vmatprep.mubr.f32.mxu0 %v871
        %1155 = vmatmul.mubr.f32.gmra.mrb[0].mxu0 %v870
        %v1156 = vpop.f32.mrb[0].mxu0
        %v1157 = vadd.f32 0.0, %v1156
        %v1158 = vpop.f32.mrb[0].mxu0
        %v1159 = vadd.f32 0.0, %v1158
        %1160 = vmatprep.mubr.f32.mxu0 %v873
        %1161 = vmatmul.mubr.f32.gmra.mrb[0].mxu0 %v872
        %v1162 = vpop.f32.mrb[0].mxu0
        %v1163 = vadd.f32 0.0, %v1162
        %v1164 = vpop.f32.mrb[0].mxu0
        %v1165 = vadd.f32 0.0, %v1164
        %1166 = vmatprep.mubr.f32.mxu0 %v875
        %1167 = vmatmul.mubr.f32.gmra.mrb[0].mxu0 %v874
        %v1168 = vpop.f32.mrb[0].mxu0
        %v1169 = vadd.f32 0.0, %v1168
        %v1170 = vpop.f32.mrb[0].mxu0
        %v1171 = vadd.f32 0.0, %v1170
        %1172 = vmatprep.mubr.f32.mxu0 %v877
        %1173 = vmatmul.mubr.f32.gmra.mrb[0].mxu0 %v876
        %v1174 = vpop.f32.mrb[0].mxu0
        %v1175 = vadd.f32 0.0, %v1174
        %v1176 = vpop.f32.mrb[0].mxu0
        %v1177 = vadd.f32 0.0, %v1176
        %1178 = vmatprep.mubr.f32.mxu0 %v879
        %1179 = vmatmul.mubr.f32.gmra.mrb[0].mxu0 %v878
        %v1180 = vpop.f32.mrb[0].mxu0
        %v1181 = vadd.f32 0.0, %v1180
        %v1182 = vpop.f32.mrb[0].mxu0
        %v1183 = vadd.f32 0.0, %v1182
        %1184 = vdwg.mxu0
        %1185 = vmatprep.subr.mxu0 %v883
        %1186 = vmatpush1.msra.mxu0 %v882
        %1187 = vmatprep.subr.mxu0 %v889
        %1188 = vmatpush1.msra.mxu0 %v888
        %1189 = vmatprep.subr.mxu0 %v895
        %1190 = vmatpush1.msra.mxu0 %v894
        %1191 = vmatprep.subr.mxu0 %v901
        %1192 = vmatpush1.msra.mxu0 %v900
        %1193 = vmatprep.subr.mxu0 %v907
        %1194 = vmatpush1.msra.mxu0 %v906
        %1195 = vmatprep.subr.mxu0 %v913
        %1196 = vmatpush1.msra.mxu0 %v912
        %1197 = vmatprep.subr.mxu0 %v919
        %1198 = vmatpush1.msra.mxu0 %v918
        %1199 = vmatprep.subr.mxu0 %v925
        %1200 = vmatpush1.msra.mxu0 %v924
        %1201 = vmatprep.subr.mxu0 %v931
        %1202 = vmatpush1.msra.mxu0 %v930
        %1203 = vmatprep.subr.mxu0 %v937
        %1204 = vmatpush1.msra.mxu0 %v936
        %1205 = vmatprep.subr.mxu0 %v943
        %1206 = vmatpush1.msra.mxu0 %v942
        %1207 = vmatprep.subr.mxu0 %v949
        %1208 = vmatpush1.msra.mxu0 %v948
        %1209 = vmatprep.subr.mxu0 %v955
        %1210 = vmatpush1.msra.mxu0 %v954
        %1211 = vmatprep.subr.mxu0 %v961
        %1212 = vmatpush1.msra.mxu0 %v960
        %1213 = vmatprep.subr.mxu0 %v967
        %1214 = vmatpush1.msra.mxu0 %v966
        %1215 = vmatprep.subr.mxu0 %v973
        %1216 = vmatpush1.msra.mxu0 %v972
        %1217 = vmatprep.subr.mxu0 %v979
        %1218 = vmatpush1.msra.mxu0 %v978
        %1219 = vmatprep.subr.mxu0 %v985
        %1220 = vmatpush1.msra.mxu0 %v984
        %1221 = vmatprep.subr.mxu0 %v991
        %1222 = vmatpush1.msra.mxu0 %v990
        %1223 = vmatprep.subr.mxu0 %v997
        %1224 = vmatpush1.msra.mxu0 %v996
        %1225 = vmatprep.subr.mxu0 %v1003
        %1226 = vmatpush1.msra.mxu0 %v1002
        %1227 = vmatprep.subr.mxu0 %v1009
        %1228 = vmatpush1.msra.mxu0 %v1008
        %1229 = vmatprep.subr.mxu0 %v1015
        %1230 = vmatpush1.msra.mxu0 %v1014
        %1231 = vmatprep.subr.mxu0 %v1021
        %1232 = vmatpush1.msra.mxu0 %v1020
        %1233 = vmatprep.subr.mxu0 %v1027
        %1234 = vmatpush1.msra.mxu0 %v1026
        %1235 = vmatprep.subr.mxu0 %v1033
        %1236 = vmatpush1.msra.mxu0 %v1032
        %1237 = vmatprep.subr.mxu0 %v1039
        %1238 = vmatpush1.msra.mxu0 %v1038
        %1239 = vmatprep.subr.mxu0 %v1045
        %1240 = vmatpush1.msra.mxu0 %v1044
        %1241 = vmatprep.subr.mxu0 %v1051
        %1242 = vmatpush1.msra.mxu0 %v1050
        %1243 = vmatprep.subr.mxu0 %v1057
        %1244 = vmatpush1.msra.mxu0 %v1056
        %1245 = vmatprep.subr.mxu0 %v1063
        %1246 = vmatpush1.msra.mxu0 %v1062
        %1247 = vmatprep.subr.mxu0 %v1069
        %1248 = vmatpush1.msra.mxu0 %v1068
        %1249 = vmatprep.mubr.f32.mxu0 %v865
        %1250 = vmatmul.mubr.f32.gmra.mrb[0].mxu0 %v864
        %v1251 = vpop.f32.mrb[0].mxu0
        %v1252 = vadd.f32 0.0, %v1251
        %v1253 = vpop.f32.mrb[0].mxu0
        %v1254 = vadd.f32 0.0, %v1253
        %1255 = vmatprep.mubr.f32.mxu0 %v867
        %1256 = vmatmul.mubr.f32.gmra.mrb[0].mxu0 %v866
        %v1257 = vpop.f32.mrb[0].mxu0
        %v1258 = vadd.f32 0.0, %v1257
        %v1259 = vpop.f32.mrb[0].mxu0
        %v1260 = vadd.f32 0.0, %v1259
        %1261 = vmatprep.mubr.f32.mxu0 %v869
        %1262 = vmatmul.mubr.f32.gmra.mrb[0].mxu0 %v868
        %v1263 = vpop.f32.mrb[0].mxu0
        %v1264 = vadd.f32 0.0, %v1263
        %v1265 = vpop.f32.mrb[0].mxu0
        %v1266 = vadd.f32 0.0, %v1265
        %1267 = vmatprep.mubr.f32.mxu0 %v871
        %1268 = vmatmul.mubr.f32.gmra.mrb[0].mxu0 %v870
        %v1269 = vpop.f32.mrb[0].mxu0
        %v1270 = vadd.f32 0.0, %v1269
        %v1271 = vpop.f32.mrb[0].mxu0
        %v1272 = vadd.f32 0.0, %v1271
        %1273 = vmatprep.mubr.f32.mxu0 %v873
        %1274 = vmatmul.mubr.f32.gmra.mrb[0].mxu0 %v872
        %v1275 = vpop.f32.mrb[0].mxu0
        %v1276 = vadd.f32 0.0, %v1275
        %v1277 = vpop.f32.mrb[0].mxu0
        %v1278 = vadd.f32 0.0, %v1277
        %1279 = vmatprep.mubr.f32.mxu0 %v875
        %1280 = vmatmul.mubr.f32.gmra.mrb[0].mxu0 %v874
        %v1281 = vpop.f32.mrb[0].mxu0
        %v1282 = vadd.f32 0.0, %v1281
        %v1283 = vpop.f32.mrb[0].mxu0
        %v1284 = vadd.f32 0.0, %v1283
        %1285 = vmatprep.mubr.f32.mxu0 %v877
        %1286 = vmatmul.mubr.f32.gmra.mrb[0].mxu0 %v876
        %v1287 = vpop.f32.mrb[0].mxu0
        %v1288 = vadd.f32 0.0, %v1287
        %v1289 = vpop.f32.mrb[0].mxu0
        %v1290 = vadd.f32 0.0, %v1289
        %1291 = vmatprep.mubr.f32.mxu0 %v879
        %1292 = vmatmul.mubr.f32.gmra.mrb[0].mxu0 %v878
        %v1293 = vpop.f32.mrb[0].mxu0
        %v1294 = vadd.f32 0.0, %v1293
        %v1295 = vpop.f32.mrb[0].mxu0
        %v1296 = vadd.f32 0.0, %v1295
        %1297 = vdwg.mxu0
        %1298 = vmatprep.subr.mxu0 %v885
        %1299 = vmatpush1.msra.mxu0 %v884
        %1300 = vmatprep.subr.mxu0 %v891
        %1301 = vmatpush1.msra.mxu0 %v890
        %1302 = vmatprep.subr.mxu0 %v897
        %1303 = vmatpush1.msra.mxu0 %v896
        %1304 = vmatprep.subr.mxu0 %v903
        %1305 = vmatpush1.msra.mxu0 %v902
        %1306 = vmatprep.subr.mxu0 %v909
        %1307 = vmatpush1.msra.mxu0 %v908
        %1308 = vmatprep.subr.mxu0 %v915
        %1309 = vmatpush1.msra.mxu0 %v914
        %1310 = vmatprep.subr.mxu0 %v921
        %1311 = vmatpush1.msra.mxu0 %v920
        %1312 = vmatprep.subr.mxu0 %v927
        %1313 = vmatpush1.msra.mxu0 %v926
        %1314 = vmatprep.subr.mxu0 %v933
        %1315 = vmatpush1.msra.mxu0 %v932
        %1316 = vmatprep.subr.mxu0 %v939
        %1317 = vmatpush1.msra.mxu0 %v938
        %1318 = vmatprep.subr.mxu0 %v945
        %1319 = vmatpush1.msra.mxu0 %v944
        %1320 = vmatprep.subr.mxu0 %v951
        %1321 = vmatpush1.msra.mxu0 %v950
        %1322 = vmatprep.subr.mxu0 %v957
        %1323 = vmatpush1.msra.mxu0 %v956
        %1324 = vmatprep.subr.mxu0 %v963
        %1325 = vmatpush1.msra.mxu0 %v962
        %1326 = vmatprep.subr.mxu0 %v969
        %1327 = vmatpush1.msra.mxu0 %v968
        %1328 = vmatprep.subr.mxu0 %v975
        %1329 = vmatpush1.msra.mxu0 %v974
        %1330 = vmatprep.subr.mxu0 %v981
        %1331 = vmatpush1.msra.mxu0 %v980
        %1332 = vmatprep.subr.mxu0 %v987
        %1333 = vmatpush1.msra.mxu0 %v986
        %1334 = vmatprep.subr.mxu0 %v993
        %1335 = vmatpush1.msra.mxu0 %v992
        %1336 = vmatprep.subr.mxu0 %v999
        %1337 = vmatpush1.msra.mxu0 %v998
        %1338 = vmatprep.subr.mxu0 %v1005
        %1339 = vmatpush1.msra.mxu0 %v1004
        %1340 = vmatprep.subr.mxu0 %v1011
        %1341 = vmatpush1.msra.mxu0 %v1010
        %1342 = vmatprep.subr.mxu0 %v1017
        %1343 = vmatpush1.msra.mxu0 %v1016
        %1344 = vmatprep.subr.mxu0 %v1023
        %1345 = vmatpush1.msra.mxu0 %v1022
        %1346 = vmatprep.subr.mxu0 %v1029
        %1347 = vmatpush1.msra.mxu0 %v1028
        %1348 = vmatprep.subr.mxu0 %v1035
        %1349 = vmatpush1.msra.mxu0 %v1034
        %1350 = vmatprep.subr.mxu0 %v1041
        %1351 = vmatpush1.msra.mxu0 %v1040
        %1352 = vmatprep.subr.mxu0 %v1047
        %1353 = vmatpush1.msra.mxu0 %v1046
        %1354 = vmatprep.subr.mxu0 %v1053
        %1355 = vmatpush1.msra.mxu0 %v1052
        %1356 = vmatprep.subr.mxu0 %v1059
        %1357 = vmatpush1.msra.mxu0 %v1058
        %1358 = vmatprep.subr.mxu0 %v1065
        %1359 = vmatpush1.msra.mxu0 %v1064
        %1360 = vmatprep.subr.mxu0 %v1071
        %1361 = vmatpush1.msra.mxu0 %v1070
        %1362 = vmatprep.mubr.f32.mxu0 %v865
        %1363 = vmatmul.mubr.f32.gmra.mrb[0].mxu0 %v864
        %v1364 = vpop.f32.mrb[0].mxu0
        %v1365 = vadd.f32 0.0, %v1364
        %v1366 = vpop.f32.mrb[0].mxu0
        %v1367 = vadd.f32 0.0, %v1366
        %1368 = vmatprep.mubr.f32.mxu0 %v867
        %1369 = vmatmul.mubr.f32.gmra.mrb[0].mxu0 %v866
        %v1370 = vpop.f32.mrb[0].mxu0
        %v1371 = vadd.f32 0.0, %v1370
        %v1372 = vpop.f32.mrb[0].mxu0
        %v1373 = vadd.f32 0.0, %v1372
        %1374 = vmatprep.mubr.f32.mxu0 %v869
        %1375 = vmatmul.mubr.f32.gmra.mrb[0].mxu0 %v868
        %v1376 = vpop.f32.mrb[0].mxu0
        %v1377 = vadd.f32 0.0, %v1376
        %v1378 = vpop.f32.mrb[0].mxu0
        %v1379 = vadd.f32 0.0, %v1378
        %1380 = vmatprep.mubr.f32.mxu0 %v871
        %1381 = vmatmul.mubr.f32.gmra.mrb[0].mxu0 %v870
        %v1382 = vpop.f32.mrb[0].mxu0
        %v1383 = vadd.f32 0.0, %v1382
        %v1384 = vpop.f32.mrb[0].mxu0
        %v1385 = vadd.f32 0.0, %v1384
        %1386 = vmatprep.mubr.f32.mxu0 %v873
        %1387 = vmatmul.mubr.f32.gmra.mrb[0].mxu0 %v872
        %v1388 = vpop.f32.mrb[0].mxu0
        %v1389 = vadd.f32 0.0, %v1388
        %v1390 = vpop.f32.mrb[0].mxu0
        %v1391 = vadd.f32 0.0, %v1390
        %1392 = vmatprep.mubr.f32.mxu0 %v875
        %1393 = vmatmul.mubr.f32.gmra.mrb[0].mxu0 %v874
        %v1394 = vpop.f32.mrb[0].mxu0
        %v1395 = vadd.f32 0.0, %v1394
        %v1396 = vpop.f32.mrb[0].mxu0
        %v1397 = vadd.f32 0.0, %v1396
        %1398 = vmatprep.mubr.f32.mxu0 %v877
        %1399 = vmatmul.mubr.f32.gmra.mrb[0].mxu0 %v876
        %v1400 = vpop.f32.mrb[0].mxu0
        %v1401 = vadd.f32 0.0, %v1400
        %v1402 = vpop.f32.mrb[0].mxu0
        %v1403 = vadd.f32 0.0, %v1402
        %1404 = vmatprep.mubr.f32.mxu0 %v879
        %1405 = vmatmul.mubr.f32.gmra.mrb[0].mxu0 %v878
        %v1406 = vpop.f32.mrb[0].mxu0
        %v1407 = vadd.f32 0.0, %v1406
        %v1408 = vpop.f32.mrb[0].mxu0
        %v1409 = vadd.f32 0.0, %v1408
        %1410 = vdwg.mxu0
        %1411 = vmatprep.subr.mxu0 %v673
        %1412 = vmatpush1.msra.mxu0 %v672
        %1413 = vmatprep.subr.mxu0 %v679
        %1414 = vmatpush1.msra.mxu0 %v678
        %1415 = vmatprep.subr.mxu0 %v685
        %1416 = vmatpush1.msra.mxu0 %v684
        %1417 = vmatprep.subr.mxu0 %v691
        %1418 = vmatpush1.msra.mxu0 %v690
        %1419 = vmatprep.subr.mxu0 %v697
        %1420 = vmatpush1.msra.mxu0 %v696
        %1421 = vmatprep.subr.mxu0 %v703
        %1422 = vmatpush1.msra.mxu0 %v702
        %1423 = vmatprep.subr.mxu0 %v709
        %1424 = vmatpush1.msra.mxu0 %v708
        %1425 = vmatprep.subr.mxu0 %v715
        %1426 = vmatpush1.msra.mxu0 %v714
        %1427 = vmatprep.subr.mxu0 %v721
        %1428 = vmatpush1.msra.mxu0 %v720
        %1429 = vmatprep.subr.mxu0 %v727
        %1430 = vmatpush1.msra.mxu0 %v726
        %1431 = vmatprep.subr.mxu0 %v733
        %1432 = vmatpush1.msra.mxu0 %v732
        %1433 = vmatprep.subr.mxu0 %v739
        %1434 = vmatpush1.msra.mxu0 %v738
        %1435 = vmatprep.subr.mxu0 %v745
        %1436 = vmatpush1.msra.mxu0 %v744
        %1437 = vmatprep.subr.mxu0 %v751
        %1438 = vmatpush1.msra.mxu0 %v750
        %1439 = vmatprep.subr.mxu0 %v757
        %1440 = vmatpush1.msra.mxu0 %v756
        %1441 = vmatprep.subr.mxu0 %v763
        %1442 = vmatpush1.msra.mxu0 %v762
        %1443 = vmatprep.subr.mxu0 %v769
        %1444 = vmatpush1.msra.mxu0 %v768
        %1445 = vmatprep.subr.mxu0 %v775
        %1446 = vmatpush1.msra.mxu0 %v774
        %1447 = vmatprep.subr.mxu0 %v781
        %1448 = vmatpush1.msra.mxu0 %v780
        %1449 = vmatprep.subr.mxu0 %v787
        %1450 = vmatpush1.msra.mxu0 %v786
        %1451 = vmatprep.subr.mxu0 %v793
        %1452 = vmatpush1.msra.mxu0 %v792
        %1453 = vmatprep.subr.mxu0 %v799
        %1454 = vmatpush1.msra.mxu0 %v798
        %1455 = vmatprep.subr.mxu0 %v805
        %1456 = vmatpush1.msra.mxu0 %v804
        %1457 = vmatprep.subr.mxu0 %v811
        %1458 = vmatpush1.msra.mxu0 %v810
        %1459 = vmatprep.subr.mxu0 %v817
        %1460 = vmatpush1.msra.mxu0 %v816
        %1461 = vmatprep.subr.mxu0 %v823
        %1462 = vmatpush1.msra.mxu0 %v822
        %1463 = vmatprep.subr.mxu0 %v829
        %1464 = vmatpush1.msra.mxu0 %v828
        %1465 = vmatprep.subr.mxu0 %v835
        %1466 = vmatpush1.msra.mxu0 %v834
        %1467 = vmatprep.subr.mxu0 %v841
        %1468 = vmatpush1.msra.mxu0 %v840
        %1469 = vmatprep.subr.mxu0 %v847
        %1470 = vmatpush1.msra.mxu0 %v846
        %1471 = vmatprep.subr.mxu0 %v853
        %1472 = vmatpush1.msra.mxu0 %v852
        %1473 = vmatprep.subr.mxu0 %v859
        %1474 = vmatpush1.msra.mxu0 %v858
        %1475 = vmatprep.mubr.f32.mxu0 %v657
        %1476 = vmatmul.mubr.f32.gmra.mrb[0].mxu0 %v656
        %v1477 = vpop.f32.mrb[0].mxu0
        %v1478 = vadd.f32 %v1139, %v1477
        %v1479 = vpop.f32.mrb[0].mxu0
        %v1480 = vadd.f32 %v1141, %v1479
        %1481 = vmatprep.mubr.f32.mxu0 %v659
        %1482 = vmatmul.mubr.f32.gmra.mrb[0].mxu0 %v658
        %v1483 = vpop.f32.mrb[0].mxu0
        %v1484 = vadd.f32 %v1145, %v1483
        %v1485 = vpop.f32.mrb[0].mxu0
        %v1486 = vadd.f32 %v1147, %v1485
        %1487 = vmatprep.mubr.f32.mxu0 %v661
        %1488 = vmatmul.mubr.f32.gmra.mrb[0].mxu0 %v660
        %v1489 = vpop.f32.mrb[0].mxu0
        %v1490 = vadd.f32 %v1151, %v1489
        %v1491 = vpop.f32.mrb[0].mxu0
        %v1492 = vadd.f32 %v1153, %v1491
        %1493 = vmatprep.mubr.f32.mxu0 %v663
        %1494 = vmatmul.mubr.f32.gmra.mrb[0].mxu0 %v662
        %v1495 = vpop.f32.mrb[0].mxu0
        %v1496 = vadd.f32 %v1157, %v1495
        %v1497 = vpop.f32.mrb[0].mxu0
        %v1498 = vadd.f32 %v1159, %v1497
        %1499 = vmatprep.mubr.f32.mxu0 %v665
        %1500 = vmatmul.mubr.f32.gmra.mrb[0].mxu0 %v664
        %v1501 = vpop.f32.mrb[0].mxu0
        %v1502 = vadd.f32 %v1163, %v1501
        %v1503 = vpop.f32.mrb[0].mxu0
        %v1504 = vadd.f32 %v1165, %v1503
        %1505 = vmatprep.mubr.f32.mxu0 %v667
        %1506 = vmatmul.mubr.f32.gmra.mrb[0].mxu0 %v666
        %v1507 = vpop.f32.mrb[0].mxu0
        %v1508 = vadd.f32 %v1169, %v1507
        %v1509 = vpop.f32.mrb[0].mxu0
        %v1510 = vadd.f32 %v1171, %v1509
        %1511 = vmatprep.mubr.f32.mxu0 %v669
        %1512 = vmatmul.mubr.f32.gmra.mrb[0].mxu0 %v668
        %v1513 = vpop.f32.mrb[0].mxu0
        %v1514 = vadd.f32 %v1175, %v1513
        %v1515 = vpop.f32.mrb[0].mxu0
        %v1516 = vadd.f32 %v1177, %v1515
        %1517 = vmatprep.mubr.f32.mxu0 %v671
        %1518 = vmatmul.mubr.f32.gmra.mrb[0].mxu0 %v670
        %v1519 = vpop.f32.mrb[0].mxu0
        %v1520 = vadd.f32 %v1181, %v1519
        %v1521 = vpop.f32.mrb[0].mxu0
        %v1522 = vadd.f32 %v1183, %v1521
        %1523 = vdwg.mxu0
        %1524 = vmatprep.subr.mxu0 %v675
        %1525 = vmatpush1.msra.mxu0 %v674
        %1526 = vmatprep.subr.mxu0 %v681
        %1527 = vmatpush1.msra.mxu0 %v680
        %1528 = vmatprep.subr.mxu0 %v687
        %1529 = vmatpush1.msra.mxu0 %v686
        %1530 = vmatprep.subr.mxu0 %v693
        %1531 = vmatpush1.msra.mxu0 %v692
        %1532 = vmatprep.subr.mxu0 %v699
        %1533 = vmatpush1.msra.mxu0 %v698
        %1534 = vmatprep.subr.mxu0 %v705
        %1535 = vmatpush1.msra.mxu0 %v704
        %1536 = vmatprep.subr.mxu0 %v711
        %1537 = vmatpush1.msra.mxu0 %v710
        %1538 = vmatprep.subr.mxu0 %v717
        %1539 = vmatpush1.msra.mxu0 %v716
        %1540 = vmatprep.subr.mxu0 %v723
        %1541 = vmatpush1.msra.mxu0 %v722
        %1542 = vmatprep.subr.mxu0 %v729
        %1543 = vmatpush1.msra.mxu0 %v728
        %1544 = vmatprep.subr.mxu0 %v735
        %1545 = vmatpush1.msra.mxu0 %v734
        %1546 = vmatprep.subr.mxu0 %v741
        %1547 = vmatpush1.msra.mxu0 %v740
        %1548 = vmatprep.subr.mxu0 %v747
        %1549 = vmatpush1.msra.mxu0 %v746
        %1550 = vmatprep.subr.mxu0 %v753
        %1551 = vmatpush1.msra.mxu0 %v752
        %1552 = vmatprep.subr.mxu0 %v759
        %1553 = vmatpush1.msra.mxu0 %v758
        %1554 = vmatprep.subr.mxu0 %v765
        %1555 = vmatpush1.msra.mxu0 %v764
        %1556 = vmatprep.subr.mxu0 %v771
        %1557 = vmatpush1.msra.mxu0 %v770
        %1558 = vmatprep.subr.mxu0 %v777
        %1559 = vmatpush1.msra.mxu0 %v776
        %1560 = vmatprep.subr.mxu0 %v783
        %1561 = vmatpush1.msra.mxu0 %v782
        %1562 = vmatprep.subr.mxu0 %v789
        %1563 = vmatpush1.msra.mxu0 %v788
        %1564 = vmatprep.subr.mxu0 %v795
        %1565 = vmatpush1.msra.mxu0 %v794
        %1566 = vmatprep.subr.mxu0 %v801
        %1567 = vmatpush1.msra.mxu0 %v800
        %1568 = vmatprep.subr.mxu0 %v807
        %1569 = vmatpush1.msra.mxu0 %v806
        %1570 = vmatprep.subr.mxu0 %v813
        %1571 = vmatpush1.msra.mxu0 %v812
        %1572 = vmatprep.subr.mxu0 %v819
        %1573 = vmatpush1.msra.mxu0 %v818
        %1574 = vmatprep.subr.mxu0 %v825
        %1575 = vmatpush1.msra.mxu0 %v824
        %1576 = vmatprep.subr.mxu0 %v831
        %1577 = vmatpush1.msra.mxu0 %v830
        %1578 = vmatprep.subr.mxu0 %v837
        %1579 = vmatpush1.msra.mxu0 %v836
        %1580 = vmatprep.subr.mxu0 %v843
        %1581 = vmatpush1.msra.mxu0 %v842
        %1582 = vmatprep.subr.mxu0 %v849
        %1583 = vmatpush1.msra.mxu0 %v848
        %1584 = vmatprep.subr.mxu0 %v855
        %1585 = vmatpush1.msra.mxu0 %v854
        %1586 = vmatprep.subr.mxu0 %v861
        %1587 = vmatpush1.msra.mxu0 %v860
        %1588 = vmatprep.mubr.f32.mxu0 %v657
        %1589 = vmatmul.mubr.f32.gmra.mrb[0].mxu0 %v656
        %v1590 = vpop.f32.mrb[0].mxu0
        %v1591 = vadd.f32 %v1252, %v1590
        %v1592 = vpop.f32.mrb[0].mxu0
        %v1593 = vadd.f32 %v1254, %v1592
        %1594 = vmatprep.mubr.f32.mxu0 %v659
        %1595 = vmatmul.mubr.f32.gmra.mrb[0].mxu0 %v658
        %v1596 = vpop.f32.mrb[0].mxu0
        %v1597 = vadd.f32 %v1258, %v1596
        %v1598 = vpop.f32.mrb[0].mxu0
        %v1599 = vadd.f32 %v1260, %v1598
        %1600 = vmatprep.mubr.f32.mxu0 %v661
        %1601 = vmatmul.mubr.f32.gmra.mrb[0].mxu0 %v660
        %v1602 = vpop.f32.mrb[0].mxu0
        %v1603 = vadd.f32 %v1264, %v1602
        %v1604 = vpop.f32.mrb[0].mxu0
        %v1605 = vadd.f32 %v1266, %v1604
        %1606 = vmatprep.mubr.f32.mxu0 %v663
        %1607 = vmatmul.mubr.f32.gmra.mrb[0].mxu0 %v662
        %v1608 = vpop.f32.mrb[0].mxu0
        %v1609 = vadd.f32 %v1270, %v1608
        %v1610 = vpop.f32.mrb[0].mxu0
        %v1611 = vadd.f32 %v1272, %v1610
        %1612 = vmatprep.mubr.f32.mxu0 %v665
        %1613 = vmatmul.mubr.f32.gmra.mrb[0].mxu0 %v664
        %v1614 = vpop.f32.mrb[0].mxu0
        %v1615 = vadd.f32 %v1276, %v1614
        %v1616 = vpop.f32.mrb[0].mxu0
        %v1617 = vadd.f32 %v1278, %v1616
        %1618 = vmatprep.mubr.f32.mxu0 %v667
        %1619 = vmatmul.mubr.f32.gmra.mrb[0].mxu0 %v666
        %v1620 = vpop.f32.mrb[0].mxu0
        %v1621 = vadd.f32 %v1282, %v1620
        %v1622 = vpop.f32.mrb[0].mxu0
        %v1623 = vadd.f32 %v1284, %v1622
        %1624 = vmatprep.mubr.f32.mxu0 %v669
        %1625 = vmatmul.mubr.f32.gmra.mrb[0].mxu0 %v668
        %v1626 = vpop.f32.mrb[0].mxu0
        %v1627 = vadd.f32 %v1288, %v1626
        %v1628 = vpop.f32.mrb[0].mxu0
        %v1629 = vadd.f32 %v1290, %v1628
        %1630 = vmatprep.mubr.f32.mxu0 %v671
        %1631 = vmatmul.mubr.f32.gmra.mrb[0].mxu0 %v670
        %v1632 = vpop.f32.mrb[0].mxu0
        %v1633 = vadd.f32 %v1294, %v1632
        %v1634 = vpop.f32.mrb[0].mxu0
        %v1635 = vadd.f32 %v1296, %v1634
        %1636 = vdwg.mxu0
        %1637 = vmatprep.subr.mxu0 %v677
        %1638 = vmatpush1.msra.mxu0 %v676
        %1639 = vmatprep.subr.mxu0 %v683
        %1640 = vmatpush1.msra.mxu0 %v682
        %1641 = vmatprep.subr.mxu0 %v689
        %1642 = vmatpush1.msra.mxu0 %v688
        %1643 = vmatprep.subr.mxu0 %v695
        %1644 = vmatpush1.msra.mxu0 %v694
        %1645 = vmatprep.subr.mxu0 %v701
        %1646 = vmatpush1.msra.mxu0 %v700
        %1647 = vmatprep.subr.mxu0 %v707
        %1648 = vmatpush1.msra.mxu0 %v706
        %1649 = vmatprep.subr.mxu0 %v713
        %1650 = vmatpush1.msra.mxu0 %v712
        %1651 = vmatprep.subr.mxu0 %v719
        %1652 = vmatpush1.msra.mxu0 %v718
        %1653 = vmatprep.subr.mxu0 %v725
        %1654 = vmatpush1.msra.mxu0 %v724
        %1655 = vmatprep.subr.mxu0 %v731
        %1656 = vmatpush1.msra.mxu0 %v730
        %1657 = vmatprep.subr.mxu0 %v737
        %1658 = vmatpush1.msra.mxu0 %v736
        %1659 = vmatprep.subr.mxu0 %v743
        %1660 = vmatpush1.msra.mxu0 %v742
        %1661 = vmatprep.subr.mxu0 %v749
        %1662 = vmatpush1.msra.mxu0 %v748
        %1663 = vmatprep.subr.mxu0 %v755
        %1664 = vmatpush1.msra.mxu0 %v754
        %1665 = vmatprep.subr.mxu0 %v761
        %1666 = vmatpush1.msra.mxu0 %v760
        %1667 = vmatprep.subr.mxu0 %v767
        %1668 = vmatpush1.msra.mxu0 %v766
        %1669 = vmatprep.subr.mxu0 %v773
        %1670 = vmatpush1.msra.mxu0 %v772
        %1671 = vmatprep.subr.mxu0 %v779
        %1672 = vmatpush1.msra.mxu0 %v778
        %1673 = vmatprep.subr.mxu0 %v785
        %1674 = vmatpush1.msra.mxu0 %v784
        %1675 = vmatprep.subr.mxu0 %v791
        %1676 = vmatpush1.msra.mxu0 %v790
        %1677 = vmatprep.subr.mxu0 %v797
        %1678 = vmatpush1.msra.mxu0 %v796
        %1679 = vmatprep.subr.mxu0 %v803
        %1680 = vmatpush1.msra.mxu0 %v802
        %1681 = vmatprep.subr.mxu0 %v809
        %1682 = vmatpush1.msra.mxu0 %v808
        %1683 = vmatprep.subr.mxu0 %v815
        %1684 = vmatpush1.msra.mxu0 %v814
        %1685 = vmatprep.subr.mxu0 %v821
        %1686 = vmatpush1.msra.mxu0 %v820
        %1687 = vmatprep.subr.mxu0 %v827
        %1688 = vmatpush1.msra.mxu0 %v826
        %1689 = vmatprep.subr.mxu0 %v833
        %1690 = vmatpush1.msra.mxu0 %v832
        %1691 = vmatprep.subr.mxu0 %v839
        %1692 = vmatpush1.msra.mxu0 %v838
        %1693 = vmatprep.subr.mxu0 %v845
        %1694 = vmatpush1.msra.mxu0 %v844
        %1695 = vmatprep.subr.mxu0 %v851
        %1696 = vmatpush1.msra.mxu0 %v850
        %1697 = vmatprep.subr.mxu0 %v857
        %1698 = vmatpush1.msra.mxu0 %v856
        %1699 = vmatprep.subr.mxu0 %v863
        %1700 = vmatpush1.msra.mxu0 %v862
        %1701 = vmatprep.mubr.f32.mxu0 %v657
        %1702 = vmatmul.mubr.f32.gmra.mrb[0].mxu0 %v656
        %v1703 = vpop.f32.mrb[0].mxu0
        %v1704 = vadd.f32 %v1365, %v1703
        %v1705 = vpop.f32.mrb[0].mxu0
        %v1706 = vadd.f32 %v1367, %v1705
        %1707 = vmatprep.mubr.f32.mxu0 %v659
        %1708 = vmatmul.mubr.f32.gmra.mrb[0].mxu0 %v658
        %v1709 = vpop.f32.mrb[0].mxu0
        %v1710 = vadd.f32 %v1371, %v1709
        %v1711 = vpop.f32.mrb[0].mxu0
        %v1712 = vadd.f32 %v1373, %v1711
        %1713 = vmatprep.mubr.f32.mxu0 %v661
        %1714 = vmatmul.mubr.f32.gmra.mrb[0].mxu0 %v660
        %v1715 = vpop.f32.mrb[0].mxu0
        %v1716 = vadd.f32 %v1377, %v1715
        %v1717 = vpop.f32.mrb[0].mxu0
        %v1718 = vadd.f32 %v1379, %v1717
        %1719 = vmatprep.mubr.f32.mxu0 %v663
        %1720 = vmatmul.mubr.f32.gmra.mrb[0].mxu0 %v662
        %v1721 = vpop.f32.mrb[0].mxu0
        %v1722 = vadd.f32 %v1383, %v1721
        %v1723 = vpop.f32.mrb[0].mxu0
        %v1724 = vadd.f32 %v1385, %v1723
        %1725 = vmatprep.mubr.f32.mxu0 %v665
        %1726 = vmatmul.mubr.f32.gmra.mrb[0].mxu0 %v664
        %v1727 = vpop.f32.mrb[0].mxu0
        %v1728 = vadd.f32 %v1389, %v1727
        %v1729 = vpop.f32.mrb[0].mxu0
        %v1730 = vadd.f32 %v1391, %v1729
        %1731 = vmatprep.mubr.f32.mxu0 %v667
        %1732 = vmatmul.mubr.f32.gmra.mrb[0].mxu0 %v666
        %v1733 = vpop.f32.mrb[0].mxu0
        %v1734 = vadd.f32 %v1395, %v1733
        %v1735 = vpop.f32.mrb[0].mxu0
        %v1736 = vadd.f32 %v1397, %v1735
        %1737 = vmatprep.mubr.f32.mxu0 %v669
        %1738 = vmatmul.mubr.f32.gmra.mrb[0].mxu0 %v668
        %v1739 = vpop.f32.mrb[0].mxu0
        %v1740 = vadd.f32 %v1401, %v1739
        %v1741 = vpop.f32.mrb[0].mxu0
        %v1742 = vadd.f32 %v1403, %v1741
        %1743 = vmatprep.mubr.f32.mxu0 %v671
        %1744 = vmatmul.mubr.f32.gmra.mrb[0].mxu0 %v670
        %v1745 = vpop.f32.mrb[0].mxu0
        %v1746 = vadd.f32 %v1407, %v1745
        %v1747 = vpop.f32.mrb[0].mxu0
        %v1748 = vadd.f32 %v1409, %v1747
        %1749 = vdwg.mxu0
        %v1751 = vlaneseq
        %v1752 = vshrl.u32 %v1751, 7
        %v1753 = vsub.s32 0, %v1752
        %v1754 = vrot.slane %v304, %v1753
        %v1755 = vlaneseq
        %v1756 = vshrl.u32 %v1755, 7
        %v1757 = vsub.s32 1, %v1756
        %v1758 = vrot.slane %v304, %v1757
        %v1759 = vlaneseq
        %v1760 = vshrl.u32 %v1759, 7
        %v1761 = vsub.s32 2, %v1760
        %v1762 = vrot.slane %v304, %v1761
        %v1763 = vlaneseq
        %v1764 = vshrl.u32 %v1763, 7
        %v1765 = vsub.s32 3, %v1764
        %v1766 = vrot.slane %v304, %v1765
        %v1767 = vlaneseq
        %v1768 = vshrl.u32 %v1767, 7
        %v1769 = vsub.s32 4, %v1768
        %v1770 = vrot.slane %v304, %v1769
        %v1771 = vlaneseq
        %v1772 = vshrl.u32 %v1771, 7
        %v1773 = vsub.s32 5, %v1772
        %v1774 = vrot.slane %v304, %v1773
        %v1781 = vadd.f32 %v1478, %v1754
        %v1782 = vadd.f32 %v1480, %v1758
        %v1783 = vadd.f32 %v1591, %v1762
        %v1784 = vadd.f32 %v1593, %v1766
        %v1785 = vadd.f32 %v1704, %v1770
        %v1786 = vadd.f32 %v1706, %v1774
        %v1787 = vadd.f32 %v1484, %v1754
        %v1788 = vadd.f32 %v1486, %v1758
        %v1789 = vadd.f32 %v1597, %v1762
        %v1790 = vadd.f32 %v1599, %v1766
        %v1791 = vadd.f32 %v1710, %v1770
        %v1792 = vadd.f32 %v1712, %v1774
        %v1793 = vadd.f32 %v1490, %v1754
        %v1794 = vadd.f32 %v1492, %v1758
        %v1795 = vadd.f32 %v1603, %v1762
        %v1796 = vadd.f32 %v1605, %v1766
        %v1797 = vadd.f32 %v1716, %v1770
        %v1798 = vadd.f32 %v1718, %v1774
        %v1799 = vadd.f32 %v1496, %v1754
        %v1800 = vadd.f32 %v1498, %v1758
        %v1801 = vadd.f32 %v1609, %v1762
        %v1802 = vadd.f32 %v1611, %v1766
        %v1803 = vadd.f32 %v1722, %v1770
        %v1804 = vadd.f32 %v1724, %v1774
        %v1805 = vadd.f32 %v1502, %v1754
        %v1806 = vadd.f32 %v1504, %v1758
        %v1807 = vadd.f32 %v1615, %v1762
        %v1808 = vadd.f32 %v1617, %v1766
        %v1809 = vadd.f32 %v1728, %v1770
        %v1810 = vadd.f32 %v1730, %v1774
        %v1811 = vadd.f32 %v1508, %v1754
        %v1812 = vadd.f32 %v1510, %v1758
        %v1813 = vadd.f32 %v1621, %v1762
        %v1814 = vadd.f32 %v1623, %v1766
        %v1815 = vadd.f32 %v1734, %v1770
        %v1816 = vadd.f32 %v1736, %v1774
        %v1817 = vadd.f32 %v1514, %v1754
        %v1818 = vadd.f32 %v1516, %v1758
        %v1819 = vadd.f32 %v1627, %v1762
        %v1820 = vadd.f32 %v1629, %v1766
        %v1821 = vadd.f32 %v1740, %v1770
        %v1822 = vadd.f32 %v1742, %v1774
        %v1823 = vadd.f32 %v1520, %v1754
        %v1824 = vadd.f32 %v1522, %v1758
        %v1825 = vadd.f32 %v1633, %v1762
        %v1826 = vadd.f32 %v1635, %v1766
        %v1827 = vadd.f32 %v1746, %v1770
        %v1828 = vadd.f32 %v1748, %v1774
        %1829 = vst [vmem:[#allocation3] sm:$0xff] %v1781
        %1830 = vst [vmem:[#allocation3 + $0x8] sm:$0xff] %v1782
        %1831 = vst [vmem:[#allocation3 + $0x10] sm:$0xff] %v1783
        %1832 = vst [vmem:[#allocation3 + $0x18] sm:$0xff] %v1784
        %1833 = vst [vmem:[#allocation3 + $0x20] sm:$0xff] %v1785
        %1834 = vst [vmem:[#allocation3 + $0x28] sm:$0xff] %v1786
        %1835 = vst [vmem:[#allocation3 + $0x30] sm:$0xff] %v1787
        %1836 = vst [vmem:[#allocation3 + $0x38] sm:$0xff] %v1788
        %1837 = vst [vmem:[#allocation3 + $0x40] sm:$0xff] %v1789
        %1838 = vst [vmem:[#allocation3 + $0x48] sm:$0xff] %v1790
        %1839 = vst [vmem:[#allocation3 + $0x50] sm:$0xff] %v1791
        %1840 = vst [vmem:[#allocation3 + $0x58] sm:$0xff] %v1792
        %1841 = vst [vmem:[#allocation3 + $0x60] sm:$0xff] %v1793
        %1842 = vst [vmem:[#allocation3 + $0x68] sm:$0xff] %v1794
        %1843 = vst [vmem:[#allocation3 + $0x70] sm:$0xff] %v1795
        %1844 = vst [vmem:[#allocation3 + $0x78] sm:$0xff] %v1796
        %1845 = vst [vmem:[#allocation3 + $0x80] sm:$0xff] %v1797
        %1846 = vst [vmem:[#allocation3 + $0x88] sm:$0xff] %v1798
        %1847 = vst [vmem:[#allocation3 + $0x90] sm:$0xff] %v1799
        %1848 = vst [vmem:[#allocation3 + $0x98] sm:$0xff] %v1800
        %1849 = vst [vmem:[#allocation3 + $0xa0] sm:$0xff] %v1801
        %1850 = vst [vmem:[#allocation3 + $0xa8] sm:$0xff] %v1802
        %1851 = vst [vmem:[#allocation3 + $0xb0] sm:$0xff] %v1803
        %1852 = vst [vmem:[#allocation3 + $0xb8] sm:$0xff] %v1804
        %1853 = vst [vmem:[#allocation3 + $0xc0] sm:$0xff] %v1805
        %1854 = vst [vmem:[#allocation3 + $0xc8] sm:$0xff] %v1806
        %1855 = vst [vmem:[#allocation3 + $0xd0] sm:$0xff] %v1807
        %1856 = vst [vmem:[#allocation3 + $0xd8] sm:$0xff] %v1808
        %1857 = vst [vmem:[#allocation3 + $0xe0] sm:$0xff] %v1809
        %1858 = vst [vmem:[#allocation3 + $0xe8] sm:$0xff] %v1810
        %1859 = vst [vmem:[#allocation3 + $0xf0] sm:$0xff] %v1811
        %1860 = vst [vmem:[#allocation3 + $0xf8] sm:$0xff] %v1812
        %1861 = vst [vmem:[#allocation3 + $0x100] sm:$0xff] %v1813
        %1862 = vst [vmem:[#allocation3 + $0x108] sm:$0xff] %v1814
        %1863 = vst [vmem:[#allocation3 + $0x110] sm:$0xff] %v1815
        %1864 = vst [vmem:[#allocation3 + $0x118] sm:$0xff] %v1816
        %1865 = vst [vmem:[#allocation3 + $0x120] sm:$0xff] %v1817
        %1866 = vst [vmem:[#allocation3 + $0x128] sm:$0xff] %v1818
        %1867 = vst [vmem:[#allocation3 + $0x130] sm:$0xff] %v1819
        %1868 = vst [vmem:[#allocation3 + $0x138] sm:$0xff] %v1820
        %1869 = vst [vmem:[#allocation3 + $0x140] sm:$0xff] %v1821
        %1870 = vst [vmem:[#allocation3 + $0x148] sm:$0xff] %v1822
        %1871 = vst [vmem:[#allocation3 + $0x150] sm:$0xff] %v1823
        %1872 = vst [vmem:[#allocation3 + $0x158] sm:$0xff] %v1824
        %1873 = vst [vmem:[#allocation3 + $0x160] sm:$0xff] %v1825
        %1874 = vst [vmem:[#allocation3 + $0x168] sm:$0xff] %v1826
        %1875 = vst [vmem:[#allocation3 + $0x170] sm:$0xff] %v1827
        %1876 = vst [vmem:[#allocation3 + $0x178] sm:$0xff] %v1828
        loop: start=0, step=1, limit=8
        $region113: #{rnn_forward.6} parent=39 // loop_pre_header
          _
        $region114: #{rnn_forward.6} parent=39 // loop_header
          %s1878 = sphi 0, %s1882
          %p1879 = scmp.ge.s32.totalorder %s1878, 8
        $region115: #{rnn_forward.6} parent=39 // loop_header_branch
          %1881 = sbr.rel (%p1879) target = $region119
        $region116: #{rnn_forward.6} parent=39 // loop_body
          %s1883 = ssub.s32 1, %s22
          %s1884 = smul.u32 %s1883, %s1878
          %s1885 = ssub.s32 7, %s1878
          %s1886 = smul.u32 %s22, %s1885
          %s1887 = sadd.s32 %s1884, %s1886
          %s1888 = smul.u32 %s1887, 6
          %s1889 = smul.addr %s1888, 8
          %s1890 = scalar_lea.vmem [#allocation3], %s1889
          %v1891 = vld [vmem:[%s1890] sm:$0xff]
          %v1892 = vld [vmem:[%s1890 + $0x8] sm:$0xff]
          %v1893 = vld [vmem:[%s1890 + $0x10] sm:$0xff]
          %v1894 = vld [vmem:[%s1890 + $0x18] sm:$0xff]
          %v1895 = vld [vmem:[%s1890 + $0x20] sm:$0xff]
          %v1896 = vld [vmem:[%s1890 + $0x28] sm:$0xff]
          %v1897 = vld [vmem:[#allocation5] sm:$0xff]
          %v1898 = vld [vmem:[#allocation5 + $0x8] sm:$0xff]
          %1899 = vmatprep.subr.mxu0 %v307
          %1900 = vmatpush1.msra.mxu0 %v306
          %1901 = vmatprep.subr.mxu0 %v313
          %1902 = vmatpush1.msra.mxu0 %v312
          %1903 = vmatprep.subr.mxu0 %v319
          %1904 = vmatpush1.msra.mxu0 %v318
          %1905 = vmatprep.subr.mxu0 %v325
          %1906 = vmatpush1.msra.mxu0 %v324
          %1907 = vmatprep.subr.mxu0 %v331
          %1908 = vmatpush1.msra.mxu0 %v330
          %1909 = vmatprep.subr.mxu0 %v337
          %1910 = vmatpush1.msra.mxu0 %v336
          %1911 = vmatprep.subr.mxu0 %v343
          %1912 = vmatpush1.msra.mxu0 %v342
          %1913 = vmatprep.subr.mxu0 %v349
          %1914 = vmatpush1.msra.mxu0 %v348
          %1915 = vmatprep.subr.mxu0 %v355
          %1916 = vmatpush1.msra.mxu0 %v354
          %1917 = vmatprep.subr.mxu0 %v361
          %1918 = vmatpush1.msra.mxu0 %v360
          %1919 = vmatprep.subr.mxu0 %v367
          %1920 = vmatpush1.msra.mxu0 %v366
          %1921 = vmatprep.subr.mxu0 %v373
          %1922 = vmatpush1.msra.mxu0 %v372
          %1923 = vmatprep.subr.mxu0 %v379
          %1924 = vmatpush1.msra.mxu0 %v378
          %1925 = vmatprep.subr.mxu0 %v385
          %1926 = vmatpush1.msra.mxu0 %v384
          %1927 = vmatprep.subr.mxu0 %v391
          %1928 = vmatpush1.msra.mxu0 %v390
          %1929 = vmatprep.subr.mxu0 %v397
          %1930 = vmatpush1.msra.mxu0 %v396
          %1931 = vmatprep.subr.mxu0 %v403
          %1932 = vmatpush1.msra.mxu0 %v402
          %1933 = vmatprep.subr.mxu0 %v409
          %1934 = vmatpush1.msra.mxu0 %v408
          %1935 = vmatprep.subr.mxu0 %v415
          %1936 = vmatpush1.msra.mxu0 %v414
          %1937 = vmatprep.subr.mxu0 %v421
          %1938 = vmatpush1.msra.mxu0 %v420
          %1939 = vmatprep.subr.mxu0 %v427
          %1940 = vmatpush1.msra.mxu0 %v426
          %1941 = vmatprep.subr.mxu0 %v433
          %1942 = vmatpush1.msra.mxu0 %v432
          %1943 = vmatprep.subr.mxu0 %v439
          %1944 = vmatpush1.msra.mxu0 %v438
          %1945 = vmatprep.subr.mxu0 %v445
          %1946 = vmatpush1.msra.mxu0 %v444
          %1947 = vmatprep.subr.mxu0 %v451
          %1948 = vmatpush1.msra.mxu0 %v450
          %1949 = vmatprep.subr.mxu0 %v457
          %1950 = vmatpush1.msra.mxu0 %v456
          %1951 = vmatprep.subr.mxu0 %v463
          %1952 = vmatpush1.msra.mxu0 %v462
          %1953 = vmatprep.subr.mxu0 %v469
          %1954 = vmatpush1.msra.mxu0 %v468
          %1955 = vmatprep.subr.mxu0 %v475
          %1956 = vmatpush1.msra.mxu0 %v474
          %1957 = vmatprep.subr.mxu0 %v481
          %1958 = vmatpush1.msra.mxu0 %v480
          %1959 = vmatprep.subr.mxu0 %v487
          %1960 = vmatpush1.msra.mxu0 %v486
          %1961 = vmatprep.subr.mxu0 %v493
          %1962 = vmatpush1.msra.mxu0 %v492
          %1963 = vmatprep.mubr.f32.mxu0 %v1898
          %1964 = vmatmul.mubr.f32.gmra.mrb[0].mxu0 %v1897
          %v1965 = vpop.f32.mrb[0].mxu0
          %v1966 = vadd.f32 0.0, %v1965
          %v1967 = vpop.f32.mrb[0].mxu0
          %v1968 = vadd.f32 0.0, %v1967
          %1969 = vdwg.mxu0
          %1970 = vmatprep.subr.mxu0 %v309
          %1971 = vmatpush1.msra.mxu0 %v308
          %1972 = vmatprep.subr.mxu0 %v315
          %1973 = vmatpush1.msra.mxu0 %v314
          %1974 = vmatprep.subr.mxu0 %v321
          %1975 = vmatpush1.msra.mxu0 %v320
          %1976 = vmatprep.subr.mxu0 %v327
          %1977 = vmatpush1.msra.mxu0 %v326
          %1978 = vmatprep.subr.mxu0 %v333
          %1979 = vmatpush1.msra.mxu0 %v332
          %1980 = vmatprep.subr.mxu0 %v339
          %1981 = vmatpush1.msra.mxu0 %v338
          %1982 = vmatprep.subr.mxu0 %v345
          %1983 = vmatpush1.msra.mxu0 %v344
          %1984 = vmatprep.subr.mxu0 %v351
          %1985 = vmatpush1.msra.mxu0 %v350
          %1986 = vmatprep.subr.mxu0 %v357
          %1987 = vmatpush1.msra.mxu0 %v356
          %1988 = vmatprep.subr.mxu0 %v363
          %1989 = vmatpush1.msra.mxu0 %v362
          %1990 = vmatprep.subr.mxu0 %v369
          %1991 = vmatpush1.msra.mxu0 %v368
          %1992 = vmatprep.subr.mxu0 %v375
          %1993 = vmatpush1.msra.mxu0 %v374
          %1994 = vmatprep.subr.mxu0 %v381
          %1995 = vmatpush1.msra.mxu0 %v380
          %1996 = vmatprep.subr.mxu0 %v387
          %1997 = vmatpush1.msra.mxu0 %v386
          %1998 = vmatprep.subr.mxu0 %v393
          %1999 = vmatpush1.msra.mxu0 %v392
          %2000 = vmatprep.subr.mxu0 %v399
          %2001 = vmatpush1.msra.mxu0 %v398
          %2002 = vmatprep.subr.mxu0 %v405
          %2003 = vmatpush1.msra.mxu0 %v404
          %2004 = vmatprep.subr.mxu0 %v411
          %2005 = vmatpush1.msra.mxu0 %v410
          %2006 = vmatprep.subr.mxu0 %v417
          %2007 = vmatpush1.msra.mxu0 %v416
          %2008 = vmatprep.subr.mxu0 %v423
          %2009 = vmatpush1.msra.mxu0 %v422
          %2010 = vmatprep.subr.mxu0 %v429
          %2011 = vmatpush1.msra.mxu0 %v428
          %2012 = vmatprep.subr.mxu0 %v435
          %2013 = vmatpush1.msra.mxu0 %v434
          %2014 = vmatprep.subr.mxu0 %v441
          %2015 = vmatpush1.msra.mxu0 %v440
          %2016 = vmatprep.subr.mxu0 %v447
          %2017 = vmatpush1.msra.mxu0 %v446
          %2018 = vmatprep.subr.mxu0 %v453
          %2019 = vmatpush1.msra.mxu0 %v452
          %2020 = vmatprep.subr.mxu0 %v459
          %2021 = vmatpush1.msra.mxu0 %v458
          %2022 = vmatprep.subr.mxu0 %v465
          %2023 = vmatpush1.msra.mxu0 %v464
          %2024 = vmatprep.subr.mxu0 %v471
          %2025 = vmatpush1.msra.mxu0 %v470
          %2026 = vmatprep.subr.mxu0 %v477
          %2027 = vmatpush1.msra.mxu0 %v476
          %2028 = vmatprep.subr.mxu0 %v483
          %2029 = vmatpush1.msra.mxu0 %v482
          %2030 = vmatprep.subr.mxu0 %v489
          %2031 = vmatpush1.msra.mxu0 %v488
          %2032 = vmatprep.subr.mxu0 %v495
          %2033 = vmatpush1.msra.mxu0 %v494
          %2034 = vmatprep.mubr.f32.mxu0 %v1898
          %2035 = vmatmul.mubr.f32.gmra.mrb[0].mxu0 %v1897
          %v2036 = vpop.f32.mrb[0].mxu0
          %v2037 = vadd.f32 0.0, %v2036
          %v2038 = vpop.f32.mrb[0].mxu0
          %v2039 = vadd.f32 0.0, %v2038
          %2040 = vdwg.mxu0
          %2041 = vmatprep.subr.mxu0 %v311
          %2042 = vmatpush1.msra.mxu0 %v310
          %2043 = vmatprep.subr.mxu0 %v317
          %2044 = vmatpush1.msra.mxu0 %v316
          %2045 = vmatprep.subr.mxu0 %v323
          %2046 = vmatpush1.msra.mxu0 %v322
          %2047 = vmatprep.subr.mxu0 %v329
          %2048 = vmatpush1.msra.mxu0 %v328
          %2049 = vmatprep.subr.mxu0 %v335
          %2050 = vmatpush1.msra.mxu0 %v334
          %2051 = vmatprep.subr.mxu0 %v341
          %2052 = vmatpush1.msra.mxu0 %v340
          %2053 = vmatprep.subr.mxu0 %v347
          %2054 = vmatpush1.msra.mxu0 %v346
          %2055 = vmatprep.subr.mxu0 %v353
          %2056 = vmatpush1.msra.mxu0 %v352
          %2057 = vmatprep.subr.mxu0 %v359
          %2058 = vmatpush1.msra.mxu0 %v358
          %2059 = vmatprep.subr.mxu0 %v365
          %2060 = vmatpush1.msra.mxu0 %v364
          %2061 = vmatprep.subr.mxu0 %v371
          %2062 = vmatpush1.msra.mxu0 %v370
          %2063 = vmatprep.subr.mxu0 %v377
          %2064 = vmatpush1.msra.mxu0 %v376
          %2065 = vmatprep.subr.mxu0 %v383
          %2066 = vmatpush1.msra.mxu0 %v382
          %2067 = vmatprep.subr.mxu0 %v389
          %2068 = vmatpush1.msra.mxu0 %v388
          %2069 = vmatprep.subr.mxu0 %v395
          %2070 = vmatpush1.msra.mxu0 %v394
          %2071 = vmatprep.subr.mxu0 %v401
          %2072 = vmatpush1.msra.mxu0 %v400
          %2073 = vmatprep.subr.mxu0 %v407
          %2074 = vmatpush1.msra.mxu0 %v406
          %2075 = vmatprep.subr.mxu0 %v413
          %2076 = vmatpush1.msra.mxu0 %v412
          %2077 = vmatprep.subr.mxu0 %v419
          %2078 = vmatpush1.msra.mxu0 %v418
          %2079 = vmatprep.subr.mxu0 %v425
          %2080 = vmatpush1.msra.mxu0 %v424
          %2081 = vmatprep.subr.mxu0 %v431
          %2082 = vmatpush1.msra.mxu0 %v430
          %2083 = vmatprep.subr.mxu0 %v437
          %2084 = vmatpush1.msra.mxu0 %v436
          %2085 = vmatprep.subr.mxu0 %v443
          %2086 = vmatpush1.msra.mxu0 %v442
          %2087 = vmatprep.subr.mxu0 %v449
          %2088 = vmatpush1.msra.mxu0 %v448
          %2089 = vmatprep.subr.mxu0 %v455
          %2090 = vmatpush1.msra.mxu0 %v454
          %2091 = vmatprep.subr.mxu0 %v461
          %2092 = vmatpush1.msra.mxu0 %v460
          %2093 = vmatprep.subr.mxu0 %v467
          %2094 = vmatpush1.msra.mxu0 %v466
          %2095 = vmatprep.subr.mxu0 %v473
          %2096 = vmatpush1.msra.mxu0 %v472
          %2097 = vmatprep.subr.mxu0 %v479
          %2098 = vmatpush1.msra.mxu0 %v478
          %2099 = vmatprep.subr.mxu0 %v485
          %2100 = vmatpush1.msra.mxu0 %v484
          %2101 = vmatprep.subr.mxu0 %v491
          %2102 = vmatpush1.msra.mxu0 %v490
          %2103 = vmatprep.subr.mxu0 %v497
          %2104 = vmatpush1.msra.mxu0 %v496
          %2105 = vmatprep.mubr.f32.mxu0 %v1898
          %2106 = vmatmul.mubr.f32.gmra.mrb[0].mxu0 %v1897
          %v2107 = vpop.f32.mrb[0].mxu0
          %v2108 = vadd.f32 0.0, %v2107
          %v2109 = vpop.f32.mrb[0].mxu0
          %v2110 = vadd.f32 0.0, %v2109
          %2111 = vdwg.mxu0
          %v2112 = vadd.f32 %v1891, %v1966
          %v2113 = vadd.f32 %v1892, %v1968
          %v2114 = vxor.u32 %v2112, 2147483648
          %v2115 = vxor.u32 %v2113, 2147483648
          %v2116 = vmul.f32 %v2114, 1.442695
          %v2117 = vpow.pop %v2116
          %v2118 = vmul.f32 %v2115, 1.442695
          %v2119 = vpow.pop %v2118
          %v2120 = vadd.f32 %v2117, 1.0
          %v2121 = vadd.f32 %v2119, 1.0
          %v2122 = vrcp.pop %v2120
          %v2123 = vmul.f32 1.0, %v2122
          %v2124 = vrcp.pop %v2121
          %v2125 = vmul.f32 1.0, %v2124
          %v2126 = vadd.f32 %v1893, %v2037
          %v2127 = vadd.f32 %v1894, %v2039
          %v2128 = vxor.u32 %v2126, 2147483648
          %v2129 = vxor.u32 %v2127, 2147483648
          %v2130 = vmul.f32 %v2128, 1.442695
          %v2131 = vpow.pop %v2130
          %v2132 = vmul.f32 %v2129, 1.442695
          %v2133 = vpow.pop %v2132
          %v2134 = vadd.f32 %v2131, 1.0
          %v2135 = vadd.f32 %v2133, 1.0
          %v2136 = vrcp.pop %v2134
          %v2137 = vmul.f32 1.0, %v2136
          %v2138 = vrcp.pop %v2135
          %v2139 = vmul.f32 1.0, %v2138
          %v2141 = vlaneseq
          %v2142 = vshrl.u32 %v2141, 7
          %v2143 = vsub.s32 0, %v2142
          %v2144 = vrot.slane %v305, %v2143
          %v2145 = vlaneseq
          %v2146 = vshrl.u32 %v2145, 7
          %v2147 = vsub.s32 1, %v2146
          %v2148 = vrot.slane %v305, %v2147
          %v2151 = vadd.f32 %v2108, %v2144
          %v2152 = vadd.f32 %v2110, %v2148
          %v2153 = vmul.f32 %v2123, %v2151
          %v2154 = vmul.f32 %v2125, %v2152
          %v2155 = vadd.f32 %v1895, %v2153
          %v2156 = vadd.f32 %v1896, %v2154
          %v2157 = vtanh.pop %v2155
          %v2158 = vtanh.pop %v2156
          %v2159 = vsub.f32 1.0, %v2137
          %v2160 = vsub.f32 1.0, %v2139
          %v2161 = vmul.f32 %v2159, %v2157
          %v2162 = vmul.f32 %v2160, %v2158
          %v2163 = vmul.f32 %v2137, %v1897
          %v2164 = vmul.f32 %v2139, %v1898
          %v2165 = vadd.f32 %v2161, %v2163
          %v2166 = vadd.f32 %v2162, %v2164
          %v2167 = vstv %s1887
          %vm2168 = vcmp.lt.s32.totalorder %v2167, %v302
          %v2169 = vsel %vm2168, 1, 0
          %2170 = vset.pattern.permute.xlu0 0
          %2171 = vperm.xlu0 %2170, %v2169
          %v2172 = vpop.permute.xlu0 %2171
          %vm2173 = vcmp.eq.s32.totalorder %v2172, 1
          %v2174 = vsel %vm2173, %v2165, %v1897
          %v2175 = vsel %vm2173, %v2166, %v1898
          %2176 = vst [vmem:[#allocation5] sm:$0xff] %v2174
          %2177 = vst [vmem:[#allocation5 + $0x8] sm:$0xff] %v2175
          %v2178 = vsel %vm2173, %v2165, 0.0
          %v2179 = vsel %vm2173, %v2166, 0.0
          %s2180 = smul.u32 %s1887, 2
          %s2181 = smul.addr %s2180, 8
          %s2182 = scalar_lea.vmem [#allocation4], %s2181
          %2183 = vst [vmem:[%s2182] sm:$0xff] %v2178
          %2184 = vst [vmem:[%s2182 + $0x8] sm:$0xff] %v2179
          %vm2185 = vcmp.eq.s32.totalorder %v2167, %v303
          %v2186 = vld [vmem:[%s301] sm:$0xff]
          %v2187 = vld [vmem:[%s301 + $0x8] sm:$0xff]
          %v2188 = vsel %vm2185, 1, 0
          %2189 = vset.pattern.permute.xlu0 0
          %2190 = vperm.xlu0 %2189, %v2188
          %v2191 = vpop.permute.xlu0 %2190
          %vm2192 = vcmp.eq.s32.totalorder %v2191, 1
          %v2193 = vsel %vm2192, %v2174, %v2186
          %v2194 = vsel %vm2192, %v2175, %v2187
          %2195 = vst [vmem:[%s301] sm:$0xff] %v2193
          %2196 = vst [vmem:[%s301 + $0x8] sm:$0xff] %v2194
        $region117: #{rnn_forward.6} parent=39 // loop_footer
          %s1882 = sadd.s32 1, %s1878
        $region118: #{rnn_forward.6} parent=39 // loop_footer_branch
          %1877 = sbr.rel target = $region114
        $region119: #{rnn_forward.6} parent=39 // loop_exit
          _
        %s2197 = smul.u32 %s22, 8
        %s2198 = smul.u32 %s2197, 2
        %s2199 = smul.addr %s2198, 128
        %s2200 = scalar_lea.hbm %s6, %s2199
        // Predicated region
        $region120: #{rnn_forward.6} parent=39 // pred_check
          _
        $region121: #{rnn_forward.6} parent=39 // pred_check_branch
          %2202 = sbr.rel target = $region123
        $region122: #{rnn_forward.6} parent=39 // pred_region
          %2203 = sst [smem:[#allocation14]] [#allocation13]
          %2204 = sst [smem:[#allocation15]] [#allocation12]
        $region123: #{rnn_forward.6} parent=39 // pred_fallthru
          _
        %2206 = shalt.err (0)
        %s2208 = sshll.u32 [#allocation4], 4
        %s2209 = int_to_ptr.vmem [resolvable:$true] %s2208
        %2211 = dma.vmem_to_hbm [thread:$0]  %s2209, 2048, %s2200, [#allocation7]
        %s2212 = sshll.u32 %s651, 4
        %2213 = dma.done [#allocation7], %s2212
        %p2214 = scmp.lt.s32.totalorder %s22, 1
        %s2215 = scalar_select %p2214, %s22, 1
        %s2216 = smul.addr %s2215, 2
        %s2217 = smul.addr %s2216, 8
        %s2218 = scalar_lea.vmem %s7, %s2217
        // Predicated region
        $region124: #{rnn_forward.6} parent=39 // pred_check
          %p2219 = pneg %p165
        $region125: #{rnn_forward.6} parent=39 // pred_check_branch
          %2221 = sbr.rel (%p2219) target = $region127
        $region126: #{rnn_forward.6} parent=39 // pred_region
          _
        $region127: #{rnn_forward.6} parent=39 // pred_fallthru
          _
      $region40: #{rnn_forward.6} parent=5 // pred_fallthru
        _
      %p2222 = scmp.le.s32.totalorder 2, %s17
      // Predicated region
      $region128: #{rnn_forward.6} parent=5 // pred_check
        %p2223 = pneg %p2222
      $region129: #{rnn_forward.6} parent=5 // pred_check_branch
        %2225 = sbr.rel (%p2223) target = $region131
      $region130: #{rnn_forward.6} parent=5 // pred_region
        %s2226 = ssub.s32 %s17, 2
        // Predicated region
        $region132: #{rnn_forward.6} parent=130 // pred_check
          %p2227 = pneg %p171
        $region133: #{rnn_forward.6} parent=130 // pred_check_branch
          %2229 = sbr.rel (%p2227) target = $region135
        $region134: #{rnn_forward.6} parent=130 // pred_region
          %p2230 = scmp.lt.s32.totalorder %s23, 1
          %s2231 = scalar_select %p2230, %s23, 1
          %s2232 = smul.addr %s2231, 2
          %s2233 = smul.addr %s2232, 8
          %s2234 = scalar_lea.vmem %s7, %s2233
        $region135: #{rnn_forward.6} parent=130 // pred_fallthru
          _
      $region131: #{rnn_forward.6} parent=5 // pred_fallthru
        _
    $region6: #{rnn_forward.6} parent=1 // loop_footer
      %s21 = sadd.s32 1, %s17
    $region7: #{rnn_forward.6} parent=1 // loop_footer_branch
      %16 = sbr.rel target = $region3
    $region8: #{rnn_forward.6} parent=1 // loop_exit
      _
    %2235 = vsyncpa [#allocation9], 1
    %s2236 = scalar_lea.sflag [#allocation9], 1
    %2237 = vsyncpa %s2236, 1
  %2238 = vsyncmov [#allocation6]
  %s2239 = vpop.sfrf %2238
  %p2240 = scmp.eq.s32.totalorder %s2239, 0
  %p2241 = pneg %p2240
  %2243 = shalt.err (%p2241)
  %s2244 = scalar_lea.sflag [#allocation6], 1
  %2245 = vsyncmov %s2244
  %s2246 = vpop.sfrf %2245
  %p2247 = scmp.eq.s32.totalorder %s2246, 0
  %p2248 = pneg %p2247
  %2250 = shalt.err (%p2248)
  %s2251 = scalar_lea.sflag [#allocation6], 2
  %2252 = vsyncmov %s2251
  %s2253 = vpop.sfrf %2252
  %p2254 = scmp.eq.s32.totalorder %s2253, 0
  %p2255 = pneg %p2254
  %2257 = shalt.err (%p2255)
  %s2258 = scalar_lea.sflag [#allocation6], 3
  %2259 = vsyncmov %s2258
  %s2260 = vpop.sfrf %2259
  %p2261 = scmp.eq.s32.totalorder %s2260, 0
  %p2262 = pneg %p2261
  %2264 = shalt.err (%p2262)
  %2265 = vsyncmov [#allocation7]
  %s2266 = vpop.sfrf %2265
  %p2267 = scmp.eq.s32.totalorder %s2266, 0
  %p2268 = pneg %p2267
  %2270 = shalt.err (%p2268)
  %s2271 = scalar_lea.sflag [#allocation7], 1
  %2272 = vsyncmov %s2271
  %s2273 = vpop.sfrf %2272
  %p2274 = scmp.eq.s32.totalorder %s2273, 0
  %p2275 = pneg %p2274
  %2277 = shalt.err (%p2275)

</llo_original>
